<compile_context>
chip_gen: v7x
topology: tpu7x:2x2x1
jax: 0.10.0
libtpu: 0.0.40
codegen_flags: <defaults>
</compile_context>

<pallas_src>
import math
from functools import partial

import numpy as np
import jax
import jax.numpy as jnp
from jax.experimental import pallas as pl
from jax.experimental.pallas import tpu as pltpu

_MATMUL_DTYPE = jnp.bfloat16     # MXU operand dtype (accumulation is f32)
_KV_CHUNK = 256                  # flash-style KV tile inside the fused block
_LN_EPS = 1e-5


# ----------------------------------------------------------------------------
# small in-kernel helpers (traced inside the Pallas kernels)
# ----------------------------------------------------------------------------

def _mm(a, b, dtype=_MATMUL_DTYPE):
    """a @ b on the MXU with f32 accumulation."""
    return jnp.dot(a.astype(dtype), b.astype(dtype),
                   preferred_element_type=jnp.float32)


def _mm_nt(a, b, dtype=_MATMUL_DTYPE):
    """a @ b.T without materializing the transpose."""
    return jax.lax.dot_general(a.astype(dtype), b.astype(dtype),
                               (((1,), (1,)), ((), ())),
                               preferred_element_type=jnp.float32)


def _layernorm(x, g, b, eps):
    mu = jnp.mean(x, axis=-1, keepdims=True)
    xc = x - mu
    var = jnp.mean(xc * xc, axis=-1, keepdims=True)
    return xc * jax.lax.rsqrt(var + eps) * g + b


def _attend(q, k, v, scale, kv_chunk):
    """Per-head softmax attention; online softmax over KV chunks so the
    (S, S) score matrix never materializes for long sequences."""
    sq, hd = q.shape
    sk = k.shape[0]
    if sk <= kv_chunk:
        s = _mm_nt(q, k) * scale
        s = s - jnp.max(s, axis=-1, keepdims=True)
        p = jnp.exp(s)
        inv = pl.reciprocal(jnp.sum(p, axis=-1, keepdims=True), approx=True)
        return _mm(p, v) * inv
    nchunks = (sk + kv_chunk - 1) // kv_chunk
    m = jnp.full((sq, 1), -jnp.inf, jnp.float32)
    l = jnp.zeros((sq, 1), jnp.float32)
    acc = jnp.zeros((sq, hd), jnp.float32)
    for c in range(nchunks):                        # static unroll
        lo = c * kv_chunk
        hi = min(lo + kv_chunk, sk)
        kc = jax.lax.slice(k, (lo, 0), (hi, hd))
        vc = jax.lax.slice(v, (lo, 0), (hi, hd))
        s = _mm_nt(q, kc) * scale
        m_new = jnp.maximum(m, jnp.max(s, axis=-1, keepdims=True))
        alpha = jnp.exp(m - m_new)
        p = jnp.exp(s - m_new)
        l = alpha * l + jnp.sum(p, axis=-1, keepdims=True)
        acc = alpha * acc + _mm(p, vc)
        m = m_new
    return acc * pl.reciprocal(l, approx=True)


def _conv1d_same_relu(x, w_ref, b_ref, pad_ref, dtype=_MATMUL_DTYPE):
    """'same'-padded Conv1d + ReLU.  Padding lives in a VMEM scratch (no HBM
    pad pass); each of the K taps is one (S, Cin) @ (Cin, Cout) MXU matmul."""
    s = x.shape[0]
    k_sz = w_ref.shape[0]
    cout = w_ref.shape[2]
    p = (k_sz - 1) // 2
    pad_ref[...] = jnp.zeros_like(pad_ref)
    pad_ref[p:p + s, :] = x
    xp = pad_ref[...]                               # (S + K - 1, Cin)
    acc = jnp.zeros((s, cout), jnp.float32)
    for k in range(k_sz):                           # static unroll over taps
        acc = acc + _mm(xp[k:k + s, :], w_ref[k], dtype)
    return jnp.maximum(acc + b_ref[...], 0.0)


# ----------------------------------------------------------------------------
# fused Pallas kernels
# ----------------------------------------------------------------------------

def _fft_block_kernel(x_ref, wqkv_ref, wcomb_ref, ln1g_ref, ln1b_ref,
                      w1_ref, b1_ref, w2_ref, b2_ref, ln2g_ref, ln2b_ref,
                      o_ref, pad_d_ref, pad_f_ref, *, nhead, kv_chunk, eps):
    # x_ref: (1, S, D); wqkv_ref: (nhead, 3, D, h_dim); wcomb_ref: (nhead, h_dim, D)
    x = x_ref[0]                                    # (S, D) f32
    s, d = x.shape
    h_dim = wqkv_ref.shape[3]
    scale = 1.0 / math.sqrt(h_dim)

    # ---- multi-head self-attention (+ ReLU on the combiner output) ----
    mha = jnp.zeros((s, d), jnp.float32)
    for h in range(nhead):                          # nhead is small / static
        q = _mm(x, wqkv_ref[h, 0])
        k = _mm(x, wqkv_ref[h, 1])
        v = _mm(x, wqkv_ref[h, 2])
        z = _attend(q, k, v, scale, kv_chunk)
        mha = mha + _mm(z, wcomb_ref[h])            # per-head combiner block
    mha = jnp.maximum(mha, 0.0)

    # residual + pre-LayerNorm (pln=True path of the reference module)
    res1 = x + _layernorm(mha, ln1g_ref[...], ln1b_ref[...], eps)

    # ---- ConvNet1d: Conv1d+ReLU, Conv1d+ReLU ----
    c = _conv1d_same_relu(res1, w1_ref, b1_ref, pad_d_ref)
    c = _conv1d_same_relu(c, w2_ref, b2_ref, pad_f_ref)

    o_ref[0] = res1 + _layernorm(c, ln2g_ref[...], ln2b_ref[...], eps)


def _dur_pred_kernel(x_ref,
                     c1w1, c1b1, c1w2, c1b2, ln1g, ln1b,
                     c2w1, c2b1, c2w2, c2b2, ln2g, ln2b,
                     wlin, blin,
                     o_ref, pad_d_ref, pad_f_ref, *, eps):
    # Full DurationPredictor fused; kept in f32 (durations feed a round()).
    f32 = jnp.float32
    x = x_ref[0]
    h = _conv1d_same_relu(x, c1w1, c1b1, pad_d_ref, dtype=f32)
    h = _conv1d_same_relu(h, c1w2, c1b2, pad_f_ref, dtype=f32)
    h = _layernorm(h, ln1g[...], ln1b[...], eps)
    h = _conv1d_same_relu(h, c2w1, c2b1, pad_d_ref, dtype=f32)
    h = _conv1d_same_relu(h, c2w2, c2b2, pad_f_ref, dtype=f32)
    h = _layernorm(h, ln2g[...], ln2b[...], eps)
    # final Linear(d_model, 1) as a lane reduction (wlin passed as (1, D))
    o_ref[0] = jnp.sum(h * wlin[...], axis=-1, keepdims=True) + blin[...]


def _linear_bias_kernel(x_ref, w_ref, b_ref, o_ref):
    o_ref[...] = _mm(x_ref[...], w_ref[...]) + b_ref[...]


# ----------------------------------------------------------------------------
# pallas_call wrappers
# ----------------------------------------------------------------------------

def _rep_spec(shape):
    """Whole-array block replicated across the grid (fetched once)."""
    return pl.BlockSpec(shape, lambda *args, _n=len(shape): (0,) * _n)


def fft_block_forward(x, p, nhead, kv_chunk=_KV_CHUNK):
    b, s, d = x.shape
    wqkv = p['mha']['wqkv']                         # (nhead, 3, D, h_dim)
    wcomb = p['mha']['wcomb']                       # (nhead, h_dim, D)
    k_sz, _, f = p['conv']['w1'].shape

    kern = partial(_fft_block_kernel, nhead=nhead, kv_chunk=kv_chunk,
                   eps=_LN_EPS)
    return pl.pallas_call(
        kern,
        grid=(b,),
        out_shape=jax.ShapeDtypeStruct((b, s, d), jnp.float32),
        in_specs=[
            pl.BlockSpec((1, s, d), lambda i: (i, 0, 0)),
            _rep_spec(wqkv.shape),
            _rep_spec(wcomb.shape),
            _rep_spec((1, d)), _rep_spec((1, d)),
            _rep_spec((k_sz, d, f)), _rep_spec((1, f)),
            _rep_spec((k_sz, f, d)), _rep_spec((1, d)),
            _rep_spec((1, d)), _rep_spec((1, d)),
        ],
        out_specs=pl.BlockSpec((1, s, d), lambda i: (i, 0, 0)),
        scratch_shapes=[pltpu.VMEM((s + k_sz - 1, d), jnp.float32),
                        pltpu.VMEM((s + k_sz - 1, f), jnp.float32)],
        compiler_params=pltpu.CompilerParams(
            dimension_semantics=("parallel",)),
    )(x,
      wqkv, wcomb,
      p['ln1_g'].reshape(1, d), p['ln1_b'].reshape(1, d),
      p['conv']['w1'], p['conv']['b1'].reshape(1, f),
      p['conv']['w2'], p['conv']['b2'].reshape(1, d),
      p['ln2_g'].reshape(1, d), p['ln2_b'].reshape(1, d))


def duration_predictor_forward(x, p):
    b, s, d = x.shape
    k_sz, _, f = p['cn1']['w1'].shape

    kern = partial(_dur_pred_kernel, eps=_LN_EPS)
    return pl.pallas_call(
        kern,
        grid=(b,),
        out_shape=jax.ShapeDtypeStruct((b, s, 1), jnp.float32),
        in_specs=[
            pl.BlockSpec((1, s, d), lambda i: (i, 0, 0)),
            _rep_spec((k_sz, d, f)), _rep_spec((1, f)),
            _rep_spec((k_sz, f, d)), _rep_spec((1, d)),
            _rep_spec((1, d)), _rep_spec((1, d)),
            _rep_spec((k_sz, d, f)), _rep_spec((1, f)),
            _rep_spec((k_sz, f, d)), _rep_spec((1, d)),
            _rep_spec((1, d)), _rep_spec((1, d)),
            _rep_spec((1, d)), _rep_spec((1, 1)),
        ],
        out_specs=pl.BlockSpec((1, s, 1), lambda i: (i, 0, 0)),
        scratch_shapes=[pltpu.VMEM((s + k_sz - 1, d), jnp.float32),
                        pltpu.VMEM((s + k_sz - 1, f), jnp.float32)],
        compiler_params=pltpu.CompilerParams(
            dimension_semantics=("parallel",)),
    )(x,
      p['cn1']['w1'], p['cn1']['b1'].reshape(1, f),
      p['cn1']['w2'], p['cn1']['b2'].reshape(1, d),
      p['ln1_g'].reshape(1, d), p['ln1_b'].reshape(1, d),
      p['cn2']['w1'], p['cn2']['b1'].reshape(1, f),
      p['cn2']['w2'], p['cn2']['b2'].reshape(1, d),
      p['ln2_g'].reshape(1, d), p['ln2_b'].reshape(1, d),
      p['w'].reshape(1, d), p['b'].reshape(1, 1))


def linear_bias_rows(x2d, w, b, row_tile=512):
    """Row-tiled (pipelined) Linear + bias for the mel projection."""
    n, din = x2d.shape
    dout = w.shape[1]
    if n <= row_tile:
        rows, n_pad, xp = n, n, x2d
    else:
        rows = row_tile
        n_pad = ((n + rows - 1) // rows) * rows
        xp = jnp.pad(x2d, ((0, n_pad - n), (0, 0))) if n_pad != n else x2d
    out = pl.pallas_call(
        _linear_bias_kernel,
        grid=(n_pad // rows,),
        out_shape=jax.ShapeDtypeStruct((n_pad, dout), jnp.float32),
        in_specs=[pl.BlockSpec((rows, din), lambda i: (i, 0)),
                  _rep_spec((din, dout)),
                  _rep_spec((1, dout))],
        out_specs=pl.BlockSpec((rows, dout), lambda i: (i, 0)),
        compiler_params=pltpu.CompilerParams(
            dimension_semantics=("parallel",)),
    )(xp, w, b.reshape(1, dout))
    return out if n_pad == n else out[:n]


# ----------------------------------------------------------------------------
# model glue (device-side, jitted); Pallas kernels do all the heavy math
# ----------------------------------------------------------------------------

def _length_regulate(y, durs, t_out):
    """Device-side repeat_interleave + pad_sequence via cumsum + gather."""
    b, s, _ = y.shape
    cum = jnp.cumsum(durs, axis=1)                              # (B, S)
    total = cum[:, -1:]                                         # (B, 1)
    t = jnp.arange(t_out, dtype=jnp.int32)                      # (T,)
    idx = jnp.sum((t[None, :, None] >= cum[:, None, :]).astype(jnp.int32),
                  axis=-1)                                      # (B, T)
    idx = jnp.minimum(idx, s - 1)
    idx = jnp.broadcast_to(idx[:, :, None], (b, t_out, y.shape[2]))
    frames = jnp.take_along_axis(y, idx, axis=1)                # (B, T, D)
    valid = (t[None, :] < total).astype(y.dtype)                # (B, T)
    return frames * valid[:, :, None]


@partial(jax.jit, static_argnames=('nhead',))
def _encoder_half(params, tokens, token_lengths, alpha, *, nhead):
    d_model = params['embedding'].shape[1]
    out = params['embedding'][tokens] * math.sqrt(d_model)
    out = out + params['pe_phon'][:tokens.shape[1]][None, :, :]
    for blk in params['encoder']:
        out = fft_block_forward(out, blk, nhead)
    log_d = duration_predictor_forward(out, params['lr'])[..., 0]   # (B, S)
    durs = jnp.round(alpha * jnp.exp(log_d)).astype(jnp.int32)
    mask = jnp.arange(tokens.shape[1])[None, :] < token_lengths[:, None]
    durs = jnp.where(mask, durs, 0)
    totals = jnp.sum(durs, axis=1)
    return out, durs, totals


@partial(jax.jit, static_argnames=('t_out', 'nhead'))
def _decoder_half(params, enc_out, durs, *, t_out, nhead):
    y = _length_regulate(enc_out, durs, t_out)
    y = y + params['pe_frame'][:t_out][None, :, :]
    for blk in params['decoder']:
        y = fft_block_forward(y, blk, nhead)
    b, t, d = y.shape
    mel = linear_bias_rows(y.reshape(b * t, d),
                           params['pred_w'], params['pred_b'])
    return mel.reshape(b, t, -1)


def fastspeech_forward(params, tokens, token_lengths, cfg):
    tl = jnp.asarray(token_lengths, dtype=jnp.int32)
    enc, durs, totals = _encoder_half(params, tokens, tl, cfg['alpha'],
                                      nhead=cfg['nhead'])
    # TODO(synk): the regulated length is data-dependent (pad_sequence); one
    # scalar device->host sync fixes the decoder's static shape.  A fully
    # jittable variant would pad to a fixed frame cap, but padded frames would
    # then be attended to (all-ones eval mask), changing the reference output.
    t_out = max(int(jax.device_get(jnp.max(totals))), 1)
    return _decoder_half(params, enc, durs, t_out=t_out, nhead=cfg['nhead'])


# ----------------------------------------------------------------------------
# deterministic parameter initialization (mirrors module __init__ shapes)
# ----------------------------------------------------------------------------

def _xavier_normal(key, shape, gain, fan_in, fan_out):
    std = gain * math.sqrt(2.0 / (fan_in + fan_out))
    return std * jax.random.normal(key, shape, jnp.float32)


def _default_linear(key, in_f, out_f):
    kw, kb = jax.random.split(key)
    bound = 1.0 / math.sqrt(in_f)
    w = jax.random.uniform(kw, (in_f, out_f), jnp.float32, -bound, bound)
    b = jax.random.uniform(kb, (out_f,), jnp.float32, -bound, bound)
    return w, b


def init_convnet(key, d_model, filt, ksz, gain):
    k1, k2 = jax.random.split(key)
    w1 = _xavier_normal(k1, (filt, d_model, ksz), gain, d_model * ksz, filt * ksz)
    w2 = _xavier_normal(k2, (d_model, filt, ksz), gain, filt * ksz, d_model * ksz)
    return {'w1': jnp.transpose(w1, (2, 1, 0)),      # (K, Cin, Cout)
            'b1': jnp.zeros((filt,), jnp.float32),
            'w2': jnp.transpose(w2, (2, 1, 0)),
            'b2': jnp.zeros((d_model,), jnp.float32)}


def init_mha(key, d_model, d_hid, nhead, gain):
    k1, k2 = jax.random.split(key)
    h_dim = d_model // nhead
    wqkv = _xavier_normal(k1, (3 * d_hid, d_model), gain, d_model, 3 * d_hid)
    wcomb = _xavier_normal(k2, (d_model, d_hid), gain, d_hid, d_model)
    # pre-split per head so the kernel never lane-slices activations
    wqkv_heads = wqkv.T.reshape(d_model, nhead, 3, h_dim).transpose(1, 2, 0, 3)
    wcomb_heads = wcomb.T.reshape(nhead, h_dim, d_model)
    return {'wqkv': wqkv_heads, 'wcomb': wcomb_heads}


def init_fft_block(key, cfg, gain):
    d = cfg['d_model']
    k1, k2 = jax.random.split(key)
    return {'mha': init_mha(k1, d, cfg['d_hid'], cfg['nhead'], gain),
            'conv': init_convnet(k2, d, cfg['filter_sz'], cfg['kernel_sz'], gain),
            'ln1_g': jnp.ones((d,), jnp.float32), 'ln1_b': jnp.zeros((d,), jnp.float32),
            'ln2_g': jnp.ones((d,), jnp.float32), 'ln2_b': jnp.zeros((d,), jnp.float32)}


def init_duration_predictor(key, cfg, gain):
    d = cfg['d_model']
    k1, k2, k3 = jax.random.split(key, 3)
    w, b = _default_linear(k3, d, 1)
    return {'cn1': init_convnet(k1, d, cfg['dur_pred_filter_sz'], cfg['kernel_sz'], gain),
            'cn2': init_convnet(k2, d, cfg['dur_pred_filter_sz'], cfg['kernel_sz'], gain),
            'ln1_g': jnp.ones((d,), jnp.float32), 'ln1_b': jnp.zeros((d,), jnp.float32),
            'ln2_g': jnp.ones((d,), jnp.float32), 'ln2_b': jnp.zeros((d,), jnp.float32),
            'w': w, 'b': b}


def make_pe(max_len, d_model):
    position = np.arange(max_len, dtype=np.float32)[:, None]
    div_term = np.exp(np.arange(0, d_model, 2, dtype=np.float32)
                      * (-math.log(10000.0) / d_model))
    pe = np.zeros((max_len, d_model), np.float32)
    pe[:, 0::2] = np.sin(position * div_term)
    pe[:, 1::2] = np.cos(position * div_term)
    return jnp.asarray(pe)


def init_fastspeech(key, cfg):
    assert cfg['d_model'] % cfg['nhead'] == 0
    # the reference module's reshape requires d_hid == nhead * (d_model // nhead)
    assert cfg['d_hid'] == cfg['nhead'] * (cfg['d_model'] // cfg['nhead'])
    gain = math.sqrt(2.0 / 5.0)
    keys = jax.random.split(key, 4 + 2 * cfg['nlayers'])
    params = {
        'embedding': jax.random.normal(keys[0], (cfg['ntoken'], cfg['d_model']),
                                       jnp.float32),
        'pe_phon': make_pe(cfg['phon_max'], cfg['d_model']),
        'pe_frame': make_pe(cfg['frame_max'], cfg['d_model']),
        'encoder': [init_fft_block(keys[2 + i], cfg, gain)
                    for i in range(cfg['nlayers'])],
        'decoder': [init_fft_block(keys[2 + cfg['nlayers'] + i], cfg, gain)
                    for i in range(cfg['nlayers'])],
        'lr': init_duration_predictor(keys[1], cfg, gain),
    }
    pw, pb = _default_linear(keys[-1], cfg['d_model'], cfg['n_mels'])
    params['pred_w'] = pw
    params['pred_b'] = pb
    return params


# ----------------------------------------------------------------------------
if __name__ == "__main__":
    cfg = dict(ntoken=40, d_model=32, nhead=4, d_hid=32,   # d_hid must equal d_model
               kernel_sz=3, filter_sz=48, dur_pred_filter_sz=48,
               nlayers=2, n_mels=20, phon_max=300, frame_max=5000, alpha=1.0)

    key = jax.random.PRNGKey(0)
    k_par, k_tok = jax.random.split(key)
    params = init_fastspeech(k_par, cfg)

    B, S = 2, 8
    tokens = jax.random.randint(k_tok, (B, S), 0, cfg['ntoken'], dtype=jnp.int32)
    token_lengths = [8, 6]

    mel = fastspeech_forward(params, tokens, token_lengths, cfg)
    jax.block_until_ready(mel)
    assert mel.ndim == 3 and mel.shape[0] == B and mel.shape[2] == cfg['n_mels']
    print("KERNEL_OK")
</pallas_src>

<mosaic_0001>
module attributes {stable_mosaic.version = 11 : i64} {
  func.func @_fft_block_kernel(%arg0: i32, %arg1: memref<1x8x32xf32, #tpu.memory_space<vmem>>, %arg2: memref<4x3x32x8xf32, #tpu.memory_space<vmem>>, %arg3: memref<4x8x32xf32, #tpu.memory_space<vmem>>, %arg4: memref<1x32xf32, #tpu.memory_space<vmem>>, %arg5: memref<1x32xf32, #tpu.memory_space<vmem>>, %arg6: memref<3x32x48xf32, #tpu.memory_space<vmem>>, %arg7: memref<1x48xf32, #tpu.memory_space<vmem>>, %arg8: memref<3x48x32xf32, #tpu.memory_space<vmem>>, %arg9: memref<1x32xf32, #tpu.memory_space<vmem>>, %arg10: memref<1x32xf32, #tpu.memory_space<vmem>>, %arg11: memref<1x32xf32, #tpu.memory_space<vmem>>, %arg12: memref<1x8x32xf32, #tpu.memory_space<vmem>>, %arg13: memref<10x32xf32, #tpu.memory_space<vmem>>, %arg14: memref<10x48xf32, #tpu.memory_space<vmem>>) attributes {dimension_semantics = [#tpu.dimension_semantics<parallel>], iteration_bounds = array<i64: 2>, scalar_prefetch = 0 : i64, scratch_operands = 2 : i64, tpu.core_type = #tpu.core_type<tc>, window_params = [{transform_indices = @transform_0, window_bounds = array<i64: 1, 8, 32>}, {pipeline_mode = #tpu.pipeline_mode<synchronous>, transform_indices = @transform_1, window_bounds = array<i64: 4, 3, 32, 8>}, {pipeline_mode = #tpu.pipeline_mode<synchronous>, transform_indices = @transform_2, window_bounds = array<i64: 4, 8, 32>}, {pipeline_mode = #tpu.pipeline_mode<synchronous>, transform_indices = @transform_3, window_bounds = array<i64: 1, 32>}, {pipeline_mode = #tpu.pipeline_mode<synchronous>, transform_indices = @transform_4, window_bounds = array<i64: 1, 32>}, {pipeline_mode = #tpu.pipeline_mode<synchronous>, transform_indices = @transform_5, window_bounds = array<i64: 3, 32, 48>}, {pipeline_mode = #tpu.pipeline_mode<synchronous>, transform_indices = @transform_6, window_bounds = array<i64: 1, 48>}, {pipeline_mode = #tpu.pipeline_mode<synchronous>, transform_indices = @transform_7, window_bounds = array<i64: 3, 48, 32>}, {pipeline_mode = #tpu.pipeline_mode<synchronous>, transform_indices = @transform_8, window_bounds = array<i64: 1, 32>}, {pipeline_mode = #tpu.pipeline_mode<synchronous>, transform_indices = @transform_9, window_bounds = array<i64: 1, 32>}, {pipeline_mode = #tpu.pipeline_mode<synchronous>, transform_indices = @transform_10, window_bounds = array<i64: 1, 32>}, {transform_indices = @transform_11, window_bounds = array<i64: 1, 8, 32>}]} {
    %c0 = arith.constant 0 : index
    %c0_0 = arith.constant 0 : index
    %c0_1 = arith.constant 0 : index
    %0 = vector.load %arg1[%c0, %c0_0, %c0_1] : memref<1x8x32xf32, #tpu.memory_space<vmem>>, vector<1x8x32xf32>
    %1 = vector.shape_cast %0 : vector<1x8x32xf32> to vector<8x32xf32>
    %cst = arith.constant 0.000000e+00 : f32
    %2 = vector.broadcast %cst : f32 to vector<8x32xf32>
    %c0_2 = arith.constant 0 : index
    %c0_3 = arith.constant 0 : index
    %c0_4 = arith.constant 0 : index
    %c0_5 = arith.constant 0 : index
    %3 = vector.load %arg2[%c0_2, %c0_3, %c0_4, %c0_5] : memref<4x3x32x8xf32, #tpu.memory_space<vmem>>, vector<1x1x32x8xf32>
    %4 = vector.shape_cast %3 : vector<1x1x32x8xf32> to vector<32x8xf32>
    %5 = arith.truncf %1 : vector<8x32xf32> to vector<8x32xbf16>
    %6 = arith.truncf %4 : vector<32x8xf32> to vector<32x8xbf16>
    %cst_6 = arith.constant dense<0.000000e+00> : vector<8x8xf32>
    %7 = tpu.matmul %5, %6, %cst_6 {dimension_numbers = #tpu.dot_dimension_numbers<[1], [0], [0], [1], [0, 0, 1, 1], [], []>} : vector<8x32xbf16>, vector<32x8xbf16>, vector<8x8xf32> -> vector<8x8xf32>
    %c0_7 = arith.constant 0 : index
    %c1 = arith.constant 1 : index
    %c0_8 = arith.constant 0 : index
    %c0_9 = arith.constant 0 : index
    %8 = vector.load %arg2[%c0_7, %c1, %c0_8, %c0_9] : memref<4x3x32x8xf32, #tpu.memory_space<vmem>>, vector<1x1x32x8xf32>
    %9 = vector.shape_cast %8 : vector<1x1x32x8xf32> to vector<32x8xf32>
    %10 = arith.truncf %1 : vector<8x32xf32> to vector<8x32xbf16>
    %11 = arith.truncf %9 : vector<32x8xf32> to vector<32x8xbf16>
    %cst_10 = arith.constant dense<0.000000e+00> : vector<8x8xf32>
    %12 = tpu.matmul %10, %11, %cst_10 {dimension_numbers = #tpu.dot_dimension_numbers<[1], [0], [0], [1], [0, 0, 1, 1], [], []>} : vector<8x32xbf16>, vector<32x8xbf16>, vector<8x8xf32> -> vector<8x8xf32>
    %c0_11 = arith.constant 0 : index
    %c2 = arith.constant 2 : index
    %c0_12 = arith.constant 0 : index
    %c0_13 = arith.constant 0 : index
    %13 = vector.load %arg2[%c0_11, %c2, %c0_12, %c0_13] : memref<4x3x32x8xf32, #tpu.memory_space<vmem>>, vector<1x1x32x8xf32>
    %14 = vector.shape_cast %13 : vector<1x1x32x8xf32> to vector<32x8xf32>
    %15 = arith.truncf %1 : vector<8x32xf32> to vector<8x32xbf16>
    %16 = arith.truncf %14 : vector<32x8xf32> to vector<32x8xbf16>
    %cst_14 = arith.constant dense<0.000000e+00> : vector<8x8xf32>
    %17 = tpu.matmul %15, %16, %cst_14 {dimension_numbers = #tpu.dot_dimension_numbers<[1], [0], [0], [1], [0, 0, 1, 1], [], []>} : vector<8x32xbf16>, vector<32x8xbf16>, vector<8x8xf32> -> vector<8x8xf32>
    %18 = arith.truncf %7 : vector<8x8xf32> to vector<8x8xbf16>
    %19 = arith.truncf %12 : vector<8x8xf32> to vector<8x8xbf16>
    %cst_15 = arith.constant dense<0.000000e+00> : vector<8x8xf32>
    %20 = tpu.matmul %18, %19, %cst_15 {dimension_numbers = #tpu.dot_dimension_numbers<[1], [1], [0], [0], [0, 0, 1, 0], [], []>} : vector<8x8xbf16>, vector<8x8xbf16>, vector<8x8xf32> -> vector<8x8xf32>
    %cst_16 = arith.constant 0.353553385 : f32
    %21 = vector.broadcast %cst_16 : f32 to vector<8x8xf32>
    %22 = arith.mulf %20, %21 : vector<8x8xf32>
    %cst_17 = arith.constant dense<0xFF800000> : vector<8xf32>
    %23 = vector.multi_reduction <maximumf>, %22, %cst_17 [1] : vector<8x8xf32> to vector<8xf32>
    %24 = vector.shape_cast %23 : vector<8xf32> to vector<8x1xf32>
    %25 = vector.broadcast %24 : vector<8x1xf32> to vector<8x8xf32>
    %26 = arith.subf %22, %25 : vector<8x8xf32>
    %27 = math.exp %26 : vector<8x8xf32>
    %cst_18 = arith.constant dense<0.000000e+00> : vector<8xf32>
    %28 = vector.multi_reduction <add>, %27, %cst_18 [1] : vector<8x8xf32> to vector<8xf32>
    %29 = vector.shape_cast %28 : vector<8xf32> to vector<8x1xf32>
    %30 = tpu.reciprocal %29 {approx = true} : vector<8x1xf32> -> vector<8x1xf32>
    %31 = arith.truncf %27 : vector<8x8xf32> to vector<8x8xbf16>
    %32 = arith.truncf %17 : vector<8x8xf32> to vector<8x8xbf16>
    %cst_19 = arith.constant dense<0.000000e+00> : vector<8x8xf32>
    %33 = tpu.matmul %31, %32, %cst_19 {dimension_numbers = #tpu.dot_dimension_numbers<[1], [0], [0], [1], [0, 0, 1, 1], [], []>} : vector<8x8xbf16>, vector<8x8xbf16>, vector<8x8xf32> -> vector<8x8xf32>
    %34 = vector.broadcast %30 : vector<8x1xf32> to vector<8x8xf32>
    %35 = arith.mulf %33, %34 : vector<8x8xf32>
    %c0_20 = arith.constant 0 : index
    %c0_21 = arith.constant 0 : index
    %c0_22 = arith.constant 0 : index
    %36 = vector.load %arg3[%c0_20, %c0_21, %c0_22] : memref<4x8x32xf32, #tpu.memory_space<vmem>>, vector<1x8x32xf32>
    %37 = vector.shape_cast %36 : vector<1x8x32xf32> to vector<8x32xf32>
    %38 = arith.truncf %35 : vector<8x8xf32> to vector<8x8xbf16>
    %39 = arith.truncf %37 : vector<8x32xf32> to vector<8x32xbf16>
    %cst_23 = arith.constant dense<0.000000e+00> : vector<8x32xf32>
    %40 = tpu.matmul %38, %39, %cst_23 {dimension_numbers = #tpu.dot_dimension_numbers<[1], [0], [0], [1], [0, 0, 1, 1], [], []>} : vector<8x8xbf16>, vector<8x32xbf16>, vector<8x32xf32> -> vector<8x32xf32>
    %41 = arith.addf %2, %40 : vector<8x32xf32>
    %c1_24 = arith.constant 1 : index
    %c0_25 = arith.constant 0 : index
    %c0_26 = arith.constant 0 : index
    %c0_27 = arith.constant 0 : index
    %42 = vector.load %arg2[%c1_24, %c0_25, %c0_26, %c0_27] : memref<4x3x32x8xf32, #tpu.memory_space<vmem>>, vector<1x1x32x8xf32>
    %43 = vector.shape_cast %42 : vector<1x1x32x8xf32> to vector<32x8xf32>
    %44 = arith.truncf %1 : vector<8x32xf32> to vector<8x32xbf16>
    %45 = arith.truncf %43 : vector<32x8xf32> to vector<32x8xbf16>
    %cst_28 = arith.constant dense<0.000000e+00> : vector<8x8xf32>
    %46 = tpu.matmul %44, %45, %cst_28 {dimension_numbers = #tpu.dot_dimension_numbers<[1], [0], [0], [1], [0, 0, 1, 1], [], []>} : vector<8x32xbf16>, vector<32x8xbf16>, vector<8x8xf32> -> vector<8x8xf32>
    %c1_29 = arith.constant 1 : index
    %c1_30 = arith.constant 1 : index
    %c0_31 = arith.constant 0 : index
    %c0_32 = arith.constant 0 : index
    %47 = vector.load %arg2[%c1_29, %c1_30, %c0_31, %c0_32] : memref<4x3x32x8xf32, #tpu.memory_space<vmem>>, vector<1x1x32x8xf32>
    %48 = vector.shape_cast %47 : vector<1x1x32x8xf32> to vector<32x8xf32>
    %49 = arith.truncf %1 : vector<8x32xf32> to vector<8x32xbf16>
    %50 = arith.truncf %48 : vector<32x8xf32> to vector<32x8xbf16>
    %cst_33 = arith.constant dense<0.000000e+00> : vector<8x8xf32>
    %51 = tpu.matmul %49, %50, %cst_33 {dimension_numbers = #tpu.dot_dimension_numbers<[1], [0], [0], [1], [0, 0, 1, 1], [], []>} : vector<8x32xbf16>, vector<32x8xbf16>, vector<8x8xf32> -> vector<8x8xf32>
    %c1_34 = arith.constant 1 : index
    %c2_35 = arith.constant 2 : index
    %c0_36 = arith.constant 0 : index
    %c0_37 = arith.constant 0 : index
    %52 = vector.load %arg2[%c1_34, %c2_35, %c0_36, %c0_37] : memref<4x3x32x8xf32, #tpu.memory_space<vmem>>, vector<1x1x32x8xf32>
    %53 = vector.shape_cast %52 : vector<1x1x32x8xf32> to vector<32x8xf32>
    %54 = arith.truncf %1 : vector<8x32xf32> to vector<8x32xbf16>
    %55 = arith.truncf %53 : vector<32x8xf32> to vector<32x8xbf16>
    %cst_38 = arith.constant dense<0.000000e+00> : vector<8x8xf32>
    %56 = tpu.matmul %54, %55, %cst_38 {dimension_numbers = #tpu.dot_dimension_numbers<[1], [0], [0], [1], [0, 0, 1, 1], [], []>} : vector<8x32xbf16>, vector<32x8xbf16>, vector<8x8xf32> -> vector<8x8xf32>
    %57 = arith.truncf %46 : vector<8x8xf32> to vector<8x8xbf16>
    %58 = arith.truncf %51 : vector<8x8xf32> to vector<8x8xbf16>
    %cst_39 = arith.constant dense<0.000000e+00> : vector<8x8xf32>
    %59 = tpu.matmul %57, %58, %cst_39 {dimension_numbers = #tpu.dot_dimension_numbers<[1], [1], [0], [0], [0, 0, 1, 0], [], []>} : vector<8x8xbf16>, vector<8x8xbf16>, vector<8x8xf32> -> vector<8x8xf32>
    %cst_40 = arith.constant 0.353553385 : f32
    %60 = vector.broadcast %cst_40 : f32 to vector<8x8xf32>
    %61 = arith.mulf %59, %60 : vector<8x8xf32>
    %cst_41 = arith.constant dense<0xFF800000> : vector<8xf32>
    %62 = vector.multi_reduction <maximumf>, %61, %cst_41 [1] : vector<8x8xf32> to vector<8xf32>
    %63 = vector.shape_cast %62 : vector<8xf32> to vector<8x1xf32>
    %64 = vector.broadcast %63 : vector<8x1xf32> to vector<8x8xf32>
    %65 = arith.subf %61, %64 : vector<8x8xf32>
    %66 = math.exp %65 : vector<8x8xf32>
    %cst_42 = arith.constant dense<0.000000e+00> : vector<8xf32>
    %67 = vector.multi_reduction <add>, %66, %cst_42 [1] : vector<8x8xf32> to vector<8xf32>
    %68 = vector.shape_cast %67 : vector<8xf32> to vector<8x1xf32>
    %69 = tpu.reciprocal %68 {approx = true} : vector<8x1xf32> -> vector<8x1xf32>
    %70 = arith.truncf %66 : vector<8x8xf32> to vector<8x8xbf16>
    %71 = arith.truncf %56 : vector<8x8xf32> to vector<8x8xbf16>
    %cst_43 = arith.constant dense<0.000000e+00> : vector<8x8xf32>
    %72 = tpu.matmul %70, %71, %cst_43 {dimension_numbers = #tpu.dot_dimension_numbers<[1], [0], [0], [1], [0, 0, 1, 1], [], []>} : vector<8x8xbf16>, vector<8x8xbf16>, vector<8x8xf32> -> vector<8x8xf32>
    %73 = vector.broadcast %69 : vector<8x1xf32> to vector<8x8xf32>
    %74 = arith.mulf %72, %73 : vector<8x8xf32>
    %c1_44 = arith.constant 1 : index
    %c0_45 = arith.constant 0 : index
    %c0_46 = arith.constant 0 : index
    %75 = vector.load %arg3[%c1_44, %c0_45, %c0_46] : memref<4x8x32xf32, #tpu.memory_space<vmem>>, vector<1x8x32xf32>
    %76 = vector.shape_cast %75 : vector<1x8x32xf32> to vector<8x32xf32>
    %77 = arith.truncf %74 : vector<8x8xf32> to vector<8x8xbf16>
    %78 = arith.truncf %76 : vector<8x32xf32> to vector<8x32xbf16>
    %cst_47 = arith.constant dense<0.000000e+00> : vector<8x32xf32>
    %79 = tpu.matmul %77, %78, %cst_47 {dimension_numbers = #tpu.dot_dimension_numbers<[1], [0], [0], [1], [0, 0, 1, 1], [], []>} : vector<8x8xbf16>, vector<8x32xbf16>, vector<8x32xf32> -> vector<8x32xf32>
    %80 = arith.addf %41, %79 : vector<8x32xf32>
    %c2_48 = arith.constant 2 : index
    %c0_49 = arith.constant 0 : index
    %c0_50 = arith.constant 0 : index
    %c0_51 = arith.constant 0 : index
    %81 = vector.load %arg2[%c2_48, %c0_49, %c0_50, %c0_51] : memref<4x3x32x8xf32, #tpu.memory_space<vmem>>, vector<1x1x32x8xf32>
    %82 = vector.shape_cast %81 : vector<1x1x32x8xf32> to vector<32x8xf32>
    %83 = arith.truncf %1 : vector<8x32xf32> to vector<8x32xbf16>
    %84 = arith.truncf %82 : vector<32x8xf32> to vector<32x8xbf16>
    %cst_52 = arith.constant dense<0.000000e+00> : vector<8x8xf32>
    %85 = tpu.matmul %83, %84, %cst_52 {dimension_numbers = #tpu.dot_dimension_numbers<[1], [0], [0], [1], [0, 0, 1, 1], [], []>} : vector<8x32xbf16>, vector<32x8xbf16>, vector<8x8xf32> -> vector<8x8xf32>
    %c2_53 = arith.constant 2 : index
    %c1_54 = arith.constant 1 : index
    %c0_55 = arith.constant 0 : index
    %c0_56 = arith.constant 0 : index
    %86 = vector.load %arg2[%c2_53, %c1_54, %c0_55, %c0_56] : memref<4x3x32x8xf32, #tpu.memory_space<vmem>>, vector<1x1x32x8xf32>
    %87 = vector.shape_cast %86 : vector<1x1x32x8xf32> to vector<32x8xf32>
    %88 = arith.truncf %1 : vector<8x32xf32> to vector<8x32xbf16>
    %89 = arith.truncf %87 : vector<32x8xf32> to vector<32x8xbf16>
    %cst_57 = arith.constant dense<0.000000e+00> : vector<8x8xf32>
    %90 = tpu.matmul %88, %89, %cst_57 {dimension_numbers = #tpu.dot_dimension_numbers<[1], [0], [0], [1], [0, 0, 1, 1], [], []>} : vector<8x32xbf16>, vector<32x8xbf16>, vector<8x8xf32> -> vector<8x8xf32>
    %c2_58 = arith.constant 2 : index
    %c2_59 = arith.constant 2 : index
    %c0_60 = arith.constant 0 : index
    %c0_61 = arith.constant 0 : index
    %91 = vector.load %arg2[%c2_58, %c2_59, %c0_60, %c0_61] : memref<4x3x32x8xf32, #tpu.memory_space<vmem>>, vector<1x1x32x8xf32>
    %92 = vector.shape_cast %91 : vector<1x1x32x8xf32> to vector<32x8xf32>
    %93 = arith.truncf %1 : vector<8x32xf32> to vector<8x32xbf16>
    %94 = arith.truncf %92 : vector<32x8xf32> to vector<32x8xbf16>
    %cst_62 = arith.constant dense<0.000000e+00> : vector<8x8xf32>
    %95 = tpu.matmul %93, %94, %cst_62 {dimension_numbers = #tpu.dot_dimension_numbers<[1], [0], [0], [1], [0, 0, 1, 1], [], []>} : vector<8x32xbf16>, vector<32x8xbf16>, vector<8x8xf32> -> vector<8x8xf32>
    %96 = arith.truncf %85 : vector<8x8xf32> to vector<8x8xbf16>
    %97 = arith.truncf %90 : vector<8x8xf32> to vector<8x8xbf16>
    %cst_63 = arith.constant dense<0.000000e+00> : vector<8x8xf32>
    %98 = tpu.matmul %96, %97, %cst_63 {dimension_numbers = #tpu.dot_dimension_numbers<[1], [1], [0], [0], [0, 0, 1, 0], [], []>} : vector<8x8xbf16>, vector<8x8xbf16>, vector<8x8xf32> -> vector<8x8xf32>
    %cst_64 = arith.constant 0.353553385 : f32
    %99 = vector.broadcast %cst_64 : f32 to vector<8x8xf32>
    %100 = arith.mulf %98, %99 : vector<8x8xf32>
    %cst_65 = arith.constant dense<0xFF800000> : vector<8xf32>
    %101 = vector.multi_reduction <maximumf>, %100, %cst_65 [1] : vector<8x8xf32> to vector<8xf32>
    %102 = vector.shape_cast %101 : vector<8xf32> to vector<8x1xf32>
    %103 = vector.broadcast %102 : vector<8x1xf32> to vector<8x8xf32>
    %104 = arith.subf %100, %103 : vector<8x8xf32>
    %105 = math.exp %104 : vector<8x8xf32>
    %cst_66 = arith.constant dense<0.000000e+00> : vector<8xf32>
    %106 = vector.multi_reduction <add>, %105, %cst_66 [1] : vector<8x8xf32> to vector<8xf32>
    %107 = vector.shape_cast %106 : vector<8xf32> to vector<8x1xf32>
    %108 = tpu.reciprocal %107 {approx = true} : vector<8x1xf32> -> vector<8x1xf32>
    %109 = arith.truncf %105 : vector<8x8xf32> to vector<8x8xbf16>
    %110 = arith.truncf %95 : vector<8x8xf32> to vector<8x8xbf16>
    %cst_67 = arith.constant dense<0.000000e+00> : vector<8x8xf32>
    %111 = tpu.matmul %109, %110, %cst_67 {dimension_numbers = #tpu.dot_dimension_numbers<[1], [0], [0], [1], [0, 0, 1, 1], [], []>} : vector<8x8xbf16>, vector<8x8xbf16>, vector<8x8xf32> -> vector<8x8xf32>
    %112 = vector.broadcast %108 : vector<8x1xf32> to vector<8x8xf32>
    %113 = arith.mulf %111, %112 : vector<8x8xf32>
    %c2_68 = arith.constant 2 : index
    %c0_69 = arith.constant 0 : index
    %c0_70 = arith.constant 0 : index
    %114 = vector.load %arg3[%c2_68, %c0_69, %c0_70] : memref<4x8x32xf32, #tpu.memory_space<vmem>>, vector<1x8x32xf32>
    %115 = vector.shape_cast %114 : vector<1x8x32xf32> to vector<8x32xf32>
    %116 = arith.truncf %113 : vector<8x8xf32> to vector<8x8xbf16>
    %117 = arith.truncf %115 : vector<8x32xf32> to vector<8x32xbf16>
    %cst_71 = arith.constant dense<0.000000e+00> : vector<8x32xf32>
    %118 = tpu.matmul %116, %117, %cst_71 {dimension_numbers = #tpu.dot_dimension_numbers<[1], [0], [0], [1], [0, 0, 1, 1], [], []>} : vector<8x8xbf16>, vector<8x32xbf16>, vector<8x32xf32> -> vector<8x32xf32>
    %119 = arith.addf %80, %118 : vector<8x32xf32>
    %c3 = arith.constant 3 : index
    %c0_72 = arith.constant 0 : index
    %c0_73 = arith.constant 0 : index
    %c0_74 = arith.constant 0 : index
    %120 = vector.load %arg2[%c3, %c0_72, %c0_73, %c0_74] : memref<4x3x32x8xf32, #tpu.memory_space<vmem>>, vector<1x1x32x8xf32>
    %121 = vector.shape_cast %120 : vector<1x1x32x8xf32> to vector<32x8xf32>
    %122 = arith.truncf %1 : vector<8x32xf32> to vector<8x32xbf16>
    %123 = arith.truncf %121 : vector<32x8xf32> to vector<32x8xbf16>
    %cst_75 = arith.constant dense<0.000000e+00> : vector<8x8xf32>
    %124 = tpu.matmul %122, %123, %cst_75 {dimension_numbers = #tpu.dot_dimension_numbers<[1], [0], [0], [1], [0, 0, 1, 1], [], []>} : vector<8x32xbf16>, vector<32x8xbf16>, vector<8x8xf32> -> vector<8x8xf32>
    %c3_76 = arith.constant 3 : index
    %c1_77 = arith.constant 1 : index
    %c0_78 = arith.constant 0 : index
    %c0_79 = arith.constant 0 : index
    %125 = vector.load %arg2[%c3_76, %c1_77, %c0_78, %c0_79] : memref<4x3x32x8xf32, #tpu.memory_space<vmem>>, vector<1x1x32x8xf32>
    %126 = vector.shape_cast %125 : vector<1x1x32x8xf32> to vector<32x8xf32>
    %127 = arith.truncf %1 : vector<8x32xf32> to vector<8x32xbf16>
    %128 = arith.truncf %126 : vector<32x8xf32> to vector<32x8xbf16>
    %cst_80 = arith.constant dense<0.000000e+00> : vector<8x8xf32>
    %129 = tpu.matmul %127, %128, %cst_80 {dimension_numbers = #tpu.dot_dimension_numbers<[1], [0], [0], [1], [0, 0, 1, 1], [], []>} : vector<8x32xbf16>, vector<32x8xbf16>, vector<8x8xf32> -> vector<8x8xf32>
    %c3_81 = arith.constant 3 : index
    %c2_82 = arith.constant 2 : index
    %c0_83 = arith.constant 0 : index
    %c0_84 = arith.constant 0 : index
    %130 = vector.load %arg2[%c3_81, %c2_82, %c0_83, %c0_84] : memref<4x3x32x8xf32, #tpu.memory_space<vmem>>, vector<1x1x32x8xf32>
    %131 = vector.shape_cast %130 : vector<1x1x32x8xf32> to vector<32x8xf32>
    %132 = arith.truncf %1 : vector<8x32xf32> to vector<8x32xbf16>
    %133 = arith.truncf %131 : vector<32x8xf32> to vector<32x8xbf16>
    %cst_85 = arith.constant dense<0.000000e+00> : vector<8x8xf32>
    %134 = tpu.matmul %132, %133, %cst_85 {dimension_numbers = #tpu.dot_dimension_numbers<[1], [0], [0], [1], [0, 0, 1, 1], [], []>} : vector<8x32xbf16>, vector<32x8xbf16>, vector<8x8xf32> -> vector<8x8xf32>
    %135 = arith.truncf %124 : vector<8x8xf32> to vector<8x8xbf16>
    %136 = arith.truncf %129 : vector<8x8xf32> to vector<8x8xbf16>
    %cst_86 = arith.constant dense<0.000000e+00> : vector<8x8xf32>
    %137 = tpu.matmul %135, %136, %cst_86 {dimension_numbers = #tpu.dot_dimension_numbers<[1], [1], [0], [0], [0, 0, 1, 0], [], []>} : vector<8x8xbf16>, vector<8x8xbf16>, vector<8x8xf32> -> vector<8x8xf32>
    %cst_87 = arith.constant 0.353553385 : f32
    %138 = vector.broadcast %cst_87 : f32 to vector<8x8xf32>
    %139 = arith.mulf %137, %138 : vector<8x8xf32>
    %cst_88 = arith.constant dense<0xFF800000> : vector<8xf32>
    %140 = vector.multi_reduction <maximumf>, %139, %cst_88 [1] : vector<8x8xf32> to vector<8xf32>
    %141 = vector.shape_cast %140 : vector<8xf32> to vector<8x1xf32>
    %142 = vector.broadcast %141 : vector<8x1xf32> to vector<8x8xf32>
    %143 = arith.subf %139, %142 : vector<8x8xf32>
    %144 = math.exp %143 : vector<8x8xf32>
    %cst_89 = arith.constant dense<0.000000e+00> : vector<8xf32>
    %145 = vector.multi_reduction <add>, %144, %cst_89 [1] : vector<8x8xf32> to vector<8xf32>
    %146 = vector.shape_cast %145 : vector<8xf32> to vector<8x1xf32>
    %147 = tpu.reciprocal %146 {approx = true} : vector<8x1xf32> -> vector<8x1xf32>
    %148 = arith.truncf %144 : vector<8x8xf32> to vector<8x8xbf16>
    %149 = arith.truncf %134 : vector<8x8xf32> to vector<8x8xbf16>
    %cst_90 = arith.constant dense<0.000000e+00> : vector<8x8xf32>
    %150 = tpu.matmul %148, %149, %cst_90 {dimension_numbers = #tpu.dot_dimension_numbers<[1], [0], [0], [1], [0, 0, 1, 1], [], []>} : vector<8x8xbf16>, vector<8x8xbf16>, vector<8x8xf32> -> vector<8x8xf32>
    %151 = vector.broadcast %147 : vector<8x1xf32> to vector<8x8xf32>
    %152 = arith.mulf %150, %151 : vector<8x8xf32>
    %c3_91 = arith.constant 3 : index
    %c0_92 = arith.constant 0 : index
    %c0_93 = arith.constant 0 : index
    %153 = vector.load %arg3[%c3_91, %c0_92, %c0_93] : memref<4x8x32xf32, #tpu.memory_space<vmem>>, vector<1x8x32xf32>
    %154 = vector.shape_cast %153 : vector<1x8x32xf32> to vector<8x32xf32>
    %155 = arith.truncf %152 : vector<8x8xf32> to vector<8x8xbf16>
    %156 = arith.truncf %154 : vector<8x32xf32> to vector<8x32xbf16>
    %cst_94 = arith.constant dense<0.000000e+00> : vector<8x32xf32>
    %157 = tpu.matmul %155, %156, %cst_94 {dimension_numbers = #tpu.dot_dimension_numbers<[1], [0], [0], [1], [0, 0, 1, 1], [], []>} : vector<8x8xbf16>, vector<8x32xbf16>, vector<8x32xf32> -> vector<8x32xf32>
    %158 = arith.addf %119, %157 : vector<8x32xf32>
    %cst_95 = arith.constant 0.000000e+00 : f32
    %159 = vector.broadcast %cst_95 : f32 to vector<8x32xf32>
    %160 = arith.maximumf %158, %159 : vector<8x32xf32>
    %c0_96 = arith.constant 0 : index
    %c0_97 = arith.constant 0 : index
    %161 = vector.load %arg4[%c0_96, %c0_97] : memref<1x32xf32, #tpu.memory_space<vmem>>, vector<1x32xf32>
    %c0_98 = arith.constant 0 : index
    %c0_99 = arith.constant 0 : index
    %162 = vector.load %arg5[%c0_98, %c0_99] : memref<1x32xf32, #tpu.memory_space<vmem>>, vector<1x32xf32>
    %cst_100 = arith.constant dense<0.000000e+00> : vector<8xf32>
    %163 = vector.multi_reduction <add>, %160, %cst_100 [1] : vector<8x32xf32> to vector<8xf32>
    %164 = vector.shape_cast %163 : vector<8xf32> to vector<8x1xf32>
    %cst_101 = arith.constant 3.200000e+01 : f32
    %165 = vector.broadcast %cst_101 : f32 to vector<8x1xf32>
    %166 = arith.divf %164, %165 : vector<8x1xf32>
    %167 = vector.broadcast %166 : vector<8x1xf32> to vector<8x32xf32>
    %168 = arith.subf %160, %167 : vector<8x32xf32>
    %169 = arith.mulf %168, %168 : vector<8x32xf32>
    %cst_102 = arith.constant dense<0.000000e+00> : vector<8xf32>
    %170 = vector.multi_reduction <add>, %169, %cst_102 [1] : vector<8x32xf32> to vector<8xf32>
    %171 = vector.shape_cast %170 : vector<8xf32> to vector<8x1xf32>
    %cst_103 = arith.constant 3.200000e+01 : f32
    %172 = vector.broadcast %cst_103 : f32 to vector<8x1xf32>
    %173 = arith.divf %171, %172 : vector<8x1xf32>
    %cst_104 = arith.constant 9.99999974E-6 : f32
    %174 = vector.broadcast %cst_104 : f32 to vector<8x1xf32>
    %175 = arith.addf %173, %174 : vector<8x1xf32>
    %176 = math.rsqrt %175 : vector<8x1xf32>
    %177 = vector.broadcast %176 : vector<8x1xf32> to vector<8x32xf32>
    %178 = arith.mulf %168, %177 : vector<8x32xf32>
    %179 = vector.broadcast %161 : vector<1x32xf32> to vector<8x32xf32>
    %180 = arith.mulf %178, %179 : vector<8x32xf32>
    %181 = vector.broadcast %162 : vector<1x32xf32> to vector<8x32xf32>
    %182 = arith.addf %180, %181 : vector<8x32xf32>
    %183 = arith.addf %1, %182 : vector<8x32xf32>
    %cst_105 = arith.constant 0.000000e+00 : f32
    %184 = vector.broadcast %cst_105 : f32 to vector<10x32xf32>
    %c0_106 = arith.constant 0 : index
    %c0_107 = arith.constant 0 : index
    %185 = vector.load %arg13[%c0_106, %c0_107] : memref<10x32xf32, #tpu.memory_space<vmem>>, vector<10x32xf32>
    tpu.vector_store %arg13[%c0_106, %c0_107], %184 {strides = array<i32>} : memref<10x32xf32, #tpu.memory_space<vmem>>, vector<10x32xf32>,
    %c1_108 = arith.constant 1 : index
    %c0_109 = arith.constant 0 : index
    %186 = vector.load %arg13[%c1_108, %c0_109] : memref<10x32xf32, #tpu.memory_space<vmem>>, vector<8x32xf32>
    tpu.vector_store %arg13[%c1_108, %c0_109], %183 {strides = array<i32>} : memref<10x32xf32, #tpu.memory_space<vmem>>, vector<8x32xf32>,
    %c0_110 = arith.constant 0 : index
    %c0_111 = arith.constant 0 : index
    %187 = vector.load %arg13[%c0_110, %c0_111] : memref<10x32xf32, #tpu.memory_space<vmem>>, vector<10x32xf32>
    %cst_112 = arith.constant 0.000000e+00 : f32
    %188 = vector.broadcast %cst_112 : f32 to vector<8x48xf32>
    %189 = vector.extract_strided_slice %187 {offsets = [0, 0], sizes = [8, 32], strides = [1, 1]} : vector<10x32xf32> to vector<8x32xf32>
    %c0_113 = arith.constant 0 : index
    %c0_114 = arith.constant 0 : index
    %c0_115 = arith.constant 0 : index
    %190 = vector.load %arg6[%c0_113, %c0_114, %c0_115] : memref<3x32x48xf32, #tpu.memory_space<vmem>>, vector<1x32x48xf32>
    %191 = vector.shape_cast %190 : vector<1x32x48xf32> to vector<32x48xf32>
    %192 = arith.truncf %189 : vector<8x32xf32> to vector<8x32xbf16>
    %193 = arith.truncf %191 : vector<32x48xf32> to vector<32x48xbf16>
    %cst_116 = arith.constant dense<0.000000e+00> : vector<8x48xf32>
    %194 = tpu.matmul %192, %193, %cst_116 {dimension_numbers = #tpu.dot_dimension_numbers<[1], [0], [0], [1], [0, 0, 1, 1], [], []>} : vector<8x32xbf16>, vector<32x48xbf16>, vector<8x48xf32> -> vector<8x48xf32>
    %195 = arith.addf %188, %194 : vector<8x48xf32>
    %196 = vector.extract_strided_slice %187 {offsets = [1, 0], sizes = [8, 32], strides = [1, 1]} : vector<10x32xf32> to vector<8x32xf32>
    %c1_117 = arith.constant 1 : index
    %c0_118 = arith.constant 0 : index
    %c0_119 = arith.constant 0 : index
    %197 = vector.load %arg6[%c1_117, %c0_118, %c0_119] : memref<3x32x48xf32, #tpu.memory_space<vmem>>, vector<1x32x48xf32>
    %198 = vector.shape_cast %197 : vector<1x32x48xf32> to vector<32x48xf32>
    %199 = arith.truncf %196 : vector<8x32xf32> to vector<8x32xbf16>
    %200 = arith.truncf %198 : vector<32x48xf32> to vector<32x48xbf16>
    %cst_120 = arith.constant dense<0.000000e+00> : vector<8x48xf32>
    %201 = tpu.matmul %199, %200, %cst_120 {dimension_numbers = #tpu.dot_dimension_numbers<[1], [0], [0], [1], [0, 0, 1, 1], [], []>} : vector<8x32xbf16>, vector<32x48xbf16>, vector<8x48xf32> -> vector<8x48xf32>
    %202 = arith.addf %195, %201 : vector<8x48xf32>
    %203 = vector.extract_strided_slice %187 {offsets = [2, 0], sizes = [8, 32], strides = [1, 1]} : vector<10x32xf32> to vector<8x32xf32>
    %c2_121 = arith.constant 2 : index
    %c0_122 = arith.constant 0 : index
    %c0_123 = arith.constant 0 : index
    %204 = vector.load %arg6[%c2_121, %c0_122, %c0_123] : memref<3x32x48xf32, #tpu.memory_space<vmem>>, vector<1x32x48xf32>
    %205 = vector.shape_cast %204 : vector<1x32x48xf32> to vector<32x48xf32>
    %206 = arith.truncf %203 : vector<8x32xf32> to vector<8x32xbf16>
    %207 = arith.truncf %205 : vector<32x48xf32> to vector<32x48xbf16>
    %cst_124 = arith.constant dense<0.000000e+00> : vector<8x48xf32>
    %208 = tpu.matmul %206, %207, %cst_124 {dimension_numbers = #tpu.dot_dimension_numbers<[1], [0], [0], [1], [0, 0, 1, 1], [], []>} : vector<8x32xbf16>, vector<32x48xbf16>, vector<8x48xf32> -> vector<8x48xf32>
    %209 = arith.addf %202, %208 : vector<8x48xf32>
    %c0_125 = arith.constant 0 : index
    %c0_126 = arith.constant 0 : index
    %210 = vector.load %arg7[%c0_125, %c0_126] : memref<1x48xf32, #tpu.memory_space<vmem>>, vector<1x48xf32>
    %211 = vector.broadcast %210 : vector<1x48xf32> to vector<8x48xf32>
    %212 = arith.addf %209, %211 : vector<8x48xf32>
    %cst_127 = arith.constant 0.000000e+00 : f32
    %213 = vector.broadcast %cst_127 : f32 to vector<8x48xf32>
    %214 = arith.maximumf %212, %213 : vector<8x48xf32>
    %cst_128 = arith.constant 0.000000e+00 : f32
    %215 = vector.broadcast %cst_128 : f32 to vector<10x48xf32>
    %c0_129 = arith.constant 0 : index
    %c0_130 = arith.constant 0 : index
    %216 = vector.load %arg14[%c0_129, %c0_130] : memref<10x48xf32, #tpu.memory_space<vmem>>, vector<10x48xf32>
    tpu.vector_store %arg14[%c0_129, %c0_130], %215 {strides = array<i32>} : memref<10x48xf32, #tpu.memory_space<vmem>>, vector<10x48xf32>,
    %c1_131 = arith.constant 1 : index
    %c0_132 = arith.constant 0 : index
    %217 = vector.load %arg14[%c1_131, %c0_132] : memref<10x48xf32, #tpu.memory_space<vmem>>, vector<8x48xf32>
    tpu.vector_store %arg14[%c1_131, %c0_132], %214 {strides = array<i32>} : memref<10x48xf32, #tpu.memory_space<vmem>>, vector<8x48xf32>,
    %c0_133 = arith.constant 0 : index
    %c0_134 = arith.constant 0 : index
    %218 = vector.load %arg14[%c0_133, %c0_134] : memref<10x48xf32, #tpu.memory_space<vmem>>, vector<10x48xf32>
    %cst_135 = arith.constant 0.000000e+00 : f32
    %219 = vector.broadcast %cst_135 : f32 to vector<8x32xf32>
    %220 = vector.extract_strided_slice %218 {offsets = [0, 0], sizes = [8, 48], strides = [1, 1]} : vector<10x48xf32> to vector<8x48xf32>
    %c0_136 = arith.constant 0 : index
    %c0_137 = arith.constant 0 : index
    %c0_138 = arith.constant 0 : index
    %221 = vector.load %arg8[%c0_136, %c0_137, %c0_138] : memref<3x48x32xf32, #tpu.memory_space<vmem>>, vector<1x48x32xf32>
    %222 = vector.shape_cast %221 : vector<1x48x32xf32> to vector<48x32xf32>
    %223 = arith.truncf %220 : vector<8x48xf32> to vector<8x48xbf16>
    %224 = arith.truncf %222 : vector<48x32xf32> to vector<48x32xbf16>
    %cst_139 = arith.constant dense<0.000000e+00> : vector<8x32xf32>
    %225 = tpu.matmul %223, %224, %cst_139 {dimension_numbers = #tpu.dot_dimension_numbers<[1], [0], [0], [1], [0, 0, 1, 1], [], []>} : vector<8x48xbf16>, vector<48x32xbf16>, vector<8x32xf32> -> vector<8x32xf32>
    %226 = arith.addf %219, %225 : vector<8x32xf32>
    %227 = vector.extract_strided_slice %218 {offsets = [1, 0], sizes = [8, 48], strides = [1, 1]} : vector<10x48xf32> to vector<8x48xf32>
    %c1_140 = arith.constant 1 : index
    %c0_141 = arith.constant 0 : index
    %c0_142 = arith.constant 0 : index
    %228 = vector.load %arg8[%c1_140, %c0_141, %c0_142] : memref<3x48x32xf32, #tpu.memory_space<vmem>>, vector<1x48x32xf32>
    %229 = vector.shape_cast %228 : vector<1x48x32xf32> to vector<48x32xf32>
    %230 = arith.truncf %227 : vector<8x48xf32> to vector<8x48xbf16>
    %231 = arith.truncf %229 : vector<48x32xf32> to vector<48x32xbf16>
    %cst_143 = arith.constant dense<0.000000e+00> : vector<8x32xf32>
    %232 = tpu.matmul %230, %231, %cst_143 {dimension_numbers = #tpu.dot_dimension_numbers<[1], [0], [0], [1], [0, 0, 1, 1], [], []>} : vector<8x48xbf16>, vector<48x32xbf16>, vector<8x32xf32> -> vector<8x32xf32>
    %233 = arith.addf %226, %232 : vector<8x32xf32>
    %234 = vector.extract_strided_slice %218 {offsets = [2, 0], sizes = [8, 48], strides = [1, 1]} : vector<10x48xf32> to vector<8x48xf32>
    %c2_144 = arith.constant 2 : index
    %c0_145 = arith.constant 0 : index
    %c0_146 = arith.constant 0 : index
    %235 = vector.load %arg8[%c2_144, %c0_145, %c0_146] : memref<3x48x32xf32, #tpu.memory_space<vmem>>, vector<1x48x32xf32>
    %236 = vector.shape_cast %235 : vector<1x48x32xf32> to vector<48x32xf32>
    %237 = arith.truncf %234 : vector<8x48xf32> to vector<8x48xbf16>
    %238 = arith.truncf %236 : vector<48x32xf32> to vector<48x32xbf16>
    %cst_147 = arith.constant dense<0.000000e+00> : vector<8x32xf32>
    %239 = tpu.matmul %237, %238, %cst_147 {dimension_numbers = #tpu.dot_dimension_numbers<[1], [0], [0], [1], [0, 0, 1, 1], [], []>} : vector<8x48xbf16>, vector<48x32xbf16>, vector<8x32xf32> -> vector<8x32xf32>
    %240 = arith.addf %233, %239 : vector<8x32xf32>
    %c0_148 = arith.constant 0 : index
    %c0_149 = arith.constant 0 : index
    %241 = vector.load %arg9[%c0_148, %c0_149] : memref<1x32xf32, #tpu.memory_space<vmem>>, vector<1x32xf32>
    %242 = vector.broadcast %241 : vector<1x32xf32> to vector<8x32xf32>
    %243 = arith.addf %240, %242 : vector<8x32xf32>
    %cst_150 = arith.constant 0.000000e+00 : f32
    %244 = vector.broadcast %cst_150 : f32 to vector<8x32xf32>
    %245 = arith.maximumf %243, %244 : vector<8x32xf32>
    %c0_151 = arith.constant 0 : index
    %c0_152 = arith.constant 0 : index
    %246 = vector.load %arg10[%c0_151, %c0_152] : memref<1x32xf32, #tpu.memory_space<vmem>>, vector<1x32xf32>
    %c0_153 = arith.constant 0 : index
    %c0_154 = arith.constant 0 : index
    %247 = vector.load %arg11[%c0_153, %c0_154] : memref<1x32xf32, #tpu.memory_space<vmem>>, vector<1x32xf32>
    %cst_155 = arith.constant dense<0.000000e+00> : vector<8xf32>
    %248 = vector.multi_reduction <add>, %245, %cst_155 [1] : vector<8x32xf32> to vector<8xf32>
    %249 = vector.shape_cast %248 : vector<8xf32> to vector<8x1xf32>
    %cst_156 = arith.constant 3.200000e+01 : f32
    %250 = vector.broadcast %cst_156 : f32 to vector<8x1xf32>
    %251 = arith.divf %249, %250 : vector<8x1xf32>
    %252 = vector.broadcast %251 : vector<8x1xf32> to vector<8x32xf32>
    %253 = arith.subf %245, %252 : vector<8x32xf32>
    %254 = arith.mulf %253, %253 : vector<8x32xf32>
    %cst_157 = arith.constant dense<0.000000e+00> : vector<8xf32>
    %255 = vector.multi_reduction <add>, %254, %cst_157 [1] : vector<8x32xf32> to vector<8xf32>
    %256 = vector.shape_cast %255 : vector<8xf32> to vector<8x1xf32>
    %cst_158 = arith.constant 3.200000e+01 : f32
    %257 = vector.broadcast %cst_158 : f32 to vector<8x1xf32>
    %258 = arith.divf %256, %257 : vector<8x1xf32>
    %cst_159 = arith.constant 9.99999974E-6 : f32
    %259 = vector.broadcast %cst_159 : f32 to vector<8x1xf32>
    %260 = arith.addf %258, %259 : vector<8x1xf32>
    %261 = math.rsqrt %260 : vector<8x1xf32>
    %262 = vector.broadcast %261 : vector<8x1xf32> to vector<8x32xf32>
    %263 = arith.mulf %253, %262 : vector<8x32xf32>
    %264 = vector.broadcast %246 : vector<1x32xf32> to vector<8x32xf32>
    %265 = arith.mulf %263, %264 : vector<8x32xf32>
    %266 = vector.broadcast %247 : vector<1x32xf32> to vector<8x32xf32>
    %267 = arith.addf %265, %266 : vector<8x32xf32>
    %268 = arith.addf %183, %267 : vector<8x32xf32>
    %c0_160 = arith.constant 0 : index
    %c0_161 = arith.constant 0 : index
    %c0_162 = arith.constant 0 : index
    %269 = vector.load %arg12[%c0_160, %c0_161, %c0_162] : memref<1x8x32xf32, #tpu.memory_space<vmem>>, vector<1x8x32xf32>
    %270 = vector.shape_cast %269 : vector<1x8x32xf32> to vector<8x32xf32>
    %271 = vector.shape_cast %268 : vector<8x32xf32> to vector<1x8x32xf32>
    tpu.vector_store %arg12[%c0_160, %c0_161, %c0_162], %271 {strides = array<i32>} : memref<1x8x32xf32, #tpu.memory_space<vmem>>, vector<1x8x32xf32>,
    return
  }
  func.func @transform_0(%arg0: i32) -> (i32, i32, i32) {
    %c0_i32 = arith.constant 0 : i32
    %c0_i32_0 = arith.constant 0 : i32
    %c0_i32_1 = arith.constant 0 : i32
    return %arg0, %c0_i32, %c0_i32_0 : i32, i32, i32
  }
  func.func @transform_1(%arg0: i32) -> (i32, i32, i32, i32) {
    %c0_i32 = arith.constant 0 : i32
    %c0_i32_0 = arith.constant 0 : i32
    %c0_i32_1 = arith.constant 0 : i32
    %c0_i32_2 = arith.constant 0 : i32
    %c0_i32_3 = arith.constant 0 : i32
    return %c0_i32, %c0_i32_0, %c0_i32_1, %c0_i32_2 : i32, i32, i32, i32
  }
  func.func @transform_2(%arg0: i32) -> (i32, i32, i32) {
    %c0_i32 = arith.constant 0 : i32
    %c0_i32_0 = arith.constant 0 : i32
    %c0_i32_1 = arith.constant 0 : i32
    %c0_i32_2 = arith.constant 0 : i32
    return %c0_i32, %c0_i32_0, %c0_i32_1 : i32, i32, i32
  }
  func.func @transform_3(%arg0: i32) -> (i32, i32) {
    %c0_i32 = arith.constant 0 : i32
    %c0_i32_0 = arith.constant 0 : i32
    %c0_i32_1 = arith.constant 0 : i32
    return %c0_i32, %c0_i32_0 : i32, i32
  }
  func.func @transform_4(%arg0: i32) -> (i32, i32) {
    %c0_i32 = arith.constant 0 : i32
    %c0_i32_0 = arith.constant 0 : i32
    %c0_i32_1 = arith.constant 0 : i32
    return %c0_i32, %c0_i32_0 : i32, i32
  }
  func.func @transform_5(%arg0: i32) -> (i32, i32, i32) {
    %c0_i32 = arith.constant 0 : i32
    %c0_i32_0 = arith.constant 0 : i32
    %c0_i32_1 = arith.constant 0 : i32
    %c0_i32_2 = arith.constant 0 : i32
    return %c0_i32, %c0_i32_0, %c0_i32_1 : i32, i32, i32
  }
  func.func @transform_6(%arg0: i32) -> (i32, i32) {
    %c0_i32 = arith.constant 0 : i32
    %c0_i32_0 = arith.constant 0 : i32
    %c0_i32_1 = arith.constant 0 : i32
    return %c0_i32, %c0_i32_0 : i32, i32
  }
  func.func @transform_7(%arg0: i32) -> (i32, i32, i32) {
    %c0_i32 = arith.constant 0 : i32
    %c0_i32_0 = arith.constant 0 : i32
    %c0_i32_1 = arith.constant 0 : i32
    %c0_i32_2 = arith.constant 0 : i32
    return %c0_i32, %c0_i32_0, %c0_i32_1 : i32, i32, i32
  }
  func.func @transform_8(%arg0: i32) -> (i32, i32) {
    %c0_i32 = arith.constant 0 : i32
    %c0_i32_0 = arith.constant 0 : i32
    %c0_i32_1 = arith.constant 0 : i32
    return %c0_i32, %c0_i32_0 : i32, i32
  }
  func.func @transform_9(%arg0: i32) -> (i32, i32) {
    %c0_i32 = arith.constant 0 : i32
    %c0_i32_0 = arith.constant 0 : i32
    %c0_i32_1 = arith.constant 0 : i32
    return %c0_i32, %c0_i32_0 : i32, i32
  }
  func.func @transform_10(%arg0: i32) -> (i32, i32) {
    %c0_i32 = arith.constant 0 : i32
    %c0_i32_0 = arith.constant 0 : i32
    %c0_i32_1 = arith.constant 0 : i32
    return %c0_i32, %c0_i32_0 : i32, i32
  }
  func.func @transform_11(%arg0: i32) -> (i32, i32, i32) {
    %c0_i32 = arith.constant 0 : i32
    %c0_i32_0 = arith.constant 0 : i32
    %c0_i32_1 = arith.constant 0 : i32
    return %arg0, %c0_i32, %c0_i32_0 : i32, i32, i32
  }
}

module attributes {stable_mosaic.version = 11 : i64} {
  func.func @_dur_pred_kernel(%arg0: i32, %arg1: memref<1x8x32xf32, #tpu.memory_space<vmem>>, %arg2: memref<3x32x48xf32, #tpu.memory_space<vmem>>, %arg3: memref<1x48xf32, #tpu.memory_space<vmem>>, %arg4: memref<3x48x32xf32, #tpu.memory_space<vmem>>, %arg5: memref<1x32xf32, #tpu.memory_space<vmem>>, %arg6: memref<1x32xf32, #tpu.memory_space<vmem>>, %arg7: memref<1x32xf32, #tpu.memory_space<vmem>>, %arg8: memref<3x32x48xf32, #tpu.memory_space<vmem>>, %arg9: memref<1x48xf32, #tpu.memory_space<vmem>>, %arg10: memref<3x48x32xf32, #tpu.memory_space<vmem>>, %arg11: memref<1x32xf32, #tpu.memory_space<vmem>>, %arg12: memref<1x32xf32, #tpu.memory_space<vmem>>, %arg13: memref<1x32xf32, #tpu.memory_space<vmem>>, %arg14: memref<1x32xf32, #tpu.memory_space<vmem>>, %arg15: memref<1x1xf32, #tpu.memory_space<vmem>>, %arg16: memref<1x8x1xf32, #tpu.memory_space<vmem>>, %arg17: memref<10x32xf32, #tpu.memory_space<vmem>>, %arg18: memref<10x48xf32, #tpu.memory_space<vmem>>) attributes {dimension_semantics = [#tpu.dimension_semantics<parallel>], iteration_bounds = array<i64: 2>, scalar_prefetch = 0 : i64, scratch_operands = 2 : i64, tpu.core_type = #tpu.core_type<tc>, window_params = [{transform_indices = @transform_0, window_bounds = array<i64: 1, 8, 32>}, {pipeline_mode = #tpu.pipeline_mode<synchronous>, transform_indices = @transform_1, window_bounds = array<i64: 3, 32, 48>}, {pipeline_mode = #tpu.pipeline_mode<synchronous>, transform_indices = @transform_2, window_bounds = array<i64: 1, 48>}, {pipeline_mode = #tpu.pipeline_mode<synchronous>, transform_indices = @transform_3, window_bounds = array<i64: 3, 48, 32>}, {pipeline_mode = #tpu.pipeline_mode<synchronous>, transform_indices = @transform_4, window_bounds = array<i64: 1, 32>}, {pipeline_mode = #tpu.pipeline_mode<synchronous>, transform_indices = @transform_5, window_bounds = array<i64: 1, 32>}, {pipeline_mode = #tpu.pipeline_mode<synchronous>, transform_indices = @transform_6, window_bounds = array<i64: 1, 32>}, {pipeline_mode = #tpu.pipeline_mode<synchronous>, transform_indices = @transform_7, window_bounds = array<i64: 3, 32, 48>}, {pipeline_mode = #tpu.pipeline_mode<synchronous>, transform_indices = @transform_8, window_bounds = array<i64: 1, 48>}, {pipeline_mode = #tpu.pipeline_mode<synchronous>, transform_indices = @transform_9, window_bounds = array<i64: 3, 48, 32>}, {pipeline_mode = #tpu.pipeline_mode<synchronous>, transform_indices = @transform_10, window_bounds = array<i64: 1, 32>}, {pipeline_mode = #tpu.pipeline_mode<synchronous>, transform_indices = @transform_11, window_bounds = array<i64: 1, 32>}, {pipeline_mode = #tpu.pipeline_mode<synchronous>, transform_indices = @transform_12, window_bounds = array<i64: 1, 32>}, {pipeline_mode = #tpu.pipeline_mode<synchronous>, transform_indices = @transform_13, window_bounds = array<i64: 1, 32>}, {pipeline_mode = #tpu.pipeline_mode<synchronous>, transform_indices = @transform_14, window_bounds = array<i64: 1, 1>}, {transform_indices = @transform_15, window_bounds = array<i64: 1, 8, 1>}]} {
    %c0 = arith.constant 0 : index
    %c0_0 = arith.constant 0 : index
    %c0_1 = arith.constant 0 : index
    %0 = vector.load %arg1[%c0, %c0_0, %c0_1] : memref<1x8x32xf32, #tpu.memory_space<vmem>>, vector<1x8x32xf32>
    %1 = vector.shape_cast %0 : vector<1x8x32xf32> to vector<8x32xf32>
    %cst = arith.constant 0.000000e+00 : f32
    %2 = vector.broadcast %cst : f32 to vector<10x32xf32>
    %c0_2 = arith.constant 0 : index
    %c0_3 = arith.constant 0 : index
    %3 = vector.load %arg17[%c0_2, %c0_3] : memref<10x32xf32, #tpu.memory_space<vmem>>, vector<10x32xf32>
    tpu.vector_store %arg17[%c0_2, %c0_3], %2 {strides = array<i32>} : memref<10x32xf32, #tpu.memory_space<vmem>>, vector<10x32xf32>,
    %c1 = arith.constant 1 : index
    %c0_4 = arith.constant 0 : index
    %4 = vector.load %arg17[%c1, %c0_4] : memref<10x32xf32, #tpu.memory_space<vmem>>, vector<8x32xf32>
    tpu.vector_store %arg17[%c1, %c0_4], %1 {strides = array<i32>} : memref<10x32xf32, #tpu.memory_space<vmem>>, vector<8x32xf32>,
    %c0_5 = arith.constant 0 : index
    %c0_6 = arith.constant 0 : index
    %5 = vector.load %arg17[%c0_5, %c0_6] : memref<10x32xf32, #tpu.memory_space<vmem>>, vector<10x32xf32>
    %cst_7 = arith.constant 0.000000e+00 : f32
    %6 = vector.broadcast %cst_7 : f32 to vector<8x48xf32>
    %7 = vector.extract_strided_slice %5 {offsets = [0, 0], sizes = [8, 32], strides = [1, 1]} : vector<10x32xf32> to vector<8x32xf32>
    %c0_8 = arith.constant 0 : index
    %c0_9 = arith.constant 0 : index
    %c0_10 = arith.constant 0 : index
    %8 = vector.load %arg2[%c0_8, %c0_9, %c0_10] : memref<3x32x48xf32, #tpu.memory_space<vmem>>, vector<1x32x48xf32>
    %9 = vector.shape_cast %8 : vector<1x32x48xf32> to vector<32x48xf32>
    %cst_11 = arith.constant dense<0.000000e+00> : vector<8x48xf32>
    %10 = tpu.matmul %7, %9, %cst_11 {dimension_numbers = #tpu.dot_dimension_numbers<[1], [0], [0], [1], [0, 0, 1, 1], [], []>} : vector<8x32xf32>, vector<32x48xf32>, vector<8x48xf32> -> vector<8x48xf32>
    %11 = arith.addf %6, %10 : vector<8x48xf32>
    %12 = vector.extract_strided_slice %5 {offsets = [1, 0], sizes = [8, 32], strides = [1, 1]} : vector<10x32xf32> to vector<8x32xf32>
    %c1_12 = arith.constant 1 : index
    %c0_13 = arith.constant 0 : index
    %c0_14 = arith.constant 0 : index
    %13 = vector.load %arg2[%c1_12, %c0_13, %c0_14] : memref<3x32x48xf32, #tpu.memory_space<vmem>>, vector<1x32x48xf32>
    %14 = vector.shape_cast %13 : vector<1x32x48xf32> to vector<32x48xf32>
    %cst_15 = arith.constant dense<0.000000e+00> : vector<8x48xf32>
    %15 = tpu.matmul %12, %14, %cst_15 {dimension_numbers = #tpu.dot_dimension_numbers<[1], [0], [0], [1], [0, 0, 1, 1], [], []>} : vector<8x32xf32>, vector<32x48xf32>, vector<8x48xf32> -> vector<8x48xf32>
    %16 = arith.addf %11, %15 : vector<8x48xf32>
    %17 = vector.extract_strided_slice %5 {offsets = [2, 0], sizes = [8, 32], strides = [1, 1]} : vector<10x32xf32> to vector<8x32xf32>
    %c2 = arith.constant 2 : index
    %c0_16 = arith.constant 0 : index
    %c0_17 = arith.constant 0 : index
    %18 = vector.load %arg2[%c2, %c0_16, %c0_17] : memref<3x32x48xf32, #tpu.memory_space<vmem>>, vector<1x32x48xf32>
    %19 = vector.shape_cast %18 : vector<1x32x48xf32> to vector<32x48xf32>
    %cst_18 = arith.constant dense<0.000000e+00> : vector<8x48xf32>
    %20 = tpu.matmul %17, %19, %cst_18 {dimension_numbers = #tpu.dot_dimension_numbers<[1], [0], [0], [1], [0, 0, 1, 1], [], []>} : vector<8x32xf32>, vector<32x48xf32>, vector<8x48xf32> -> vector<8x48xf32>
    %21 = arith.addf %16, %20 : vector<8x48xf32>
    %c0_19 = arith.constant 0 : index
    %c0_20 = arith.constant 0 : index
    %22 = vector.load %arg3[%c0_19, %c0_20] : memref<1x48xf32, #tpu.memory_space<vmem>>, vector<1x48xf32>
    %23 = vector.broadcast %22 : vector<1x48xf32> to vector<8x48xf32>
    %24 = arith.addf %21, %23 : vector<8x48xf32>
    %cst_21 = arith.constant 0.000000e+00 : f32
    %25 = vector.broadcast %cst_21 : f32 to vector<8x48xf32>
    %26 = arith.maximumf %24, %25 : vector<8x48xf32>
    %cst_22 = arith.constant 0.000000e+00 : f32
    %27 = vector.broadcast %cst_22 : f32 to vector<10x48xf32>
    %c0_23 = arith.constant 0 : index
    %c0_24 = arith.constant 0 : index
    %28 = vector.load %arg18[%c0_23, %c0_24] : memref<10x48xf32, #tpu.memory_space<vmem>>, vector<10x48xf32>
    tpu.vector_store %arg18[%c0_23, %c0_24], %27 {strides = array<i32>} : memref<10x48xf32, #tpu.memory_space<vmem>>, vector<10x48xf32>,
    %c1_25 = arith.constant 1 : index
    %c0_26 = arith.constant 0 : index
    %29 = vector.load %arg18[%c1_25, %c0_26] : memref<10x48xf32, #tpu.memory_space<vmem>>, vector<8x48xf32>
    tpu.vector_store %arg18[%c1_25, %c0_26], %26 {strides = array<i32>} : memref<10x48xf32, #tpu.memory_space<vmem>>, vector<8x48xf32>,
    %c0_27 = arith.constant 0 : index
    %c0_28 = arith.constant 0 : index
    %30 = vector.load %arg18[%c0_27, %c0_28] : memref<10x48xf32, #tpu.memory_space<vmem>>, vector<10x48xf32>
    %cst_29 = arith.constant 0.000000e+00 : f32
    %31 = vector.broadcast %cst_29 : f32 to vector<8x32xf32>
    %32 = vector.extract_strided_slice %30 {offsets = [0, 0], sizes = [8, 48], strides = [1, 1]} : vector<10x48xf32> to vector<8x48xf32>
    %c0_30 = arith.constant 0 : index
    %c0_31 = arith.constant 0 : index
    %c0_32 = arith.constant 0 : index
    %33 = vector.load %arg4[%c0_30, %c0_31, %c0_32] : memref<3x48x32xf32, #tpu.memory_space<vmem>>, vector<1x48x32xf32>
    %34 = vector.shape_cast %33 : vector<1x48x32xf32> to vector<48x32xf32>
    %cst_33 = arith.constant dense<0.000000e+00> : vector<8x32xf32>
    %35 = tpu.matmul %32, %34, %cst_33 {dimension_numbers = #tpu.dot_dimension_numbers<[1], [0], [0], [1], [0, 0, 1, 1], [], []>} : vector<8x48xf32>, vector<48x32xf32>, vector<8x32xf32> -> vector<8x32xf32>
    %36 = arith.addf %31, %35 : vector<8x32xf32>
    %37 = vector.extract_strided_slice %30 {offsets = [1, 0], sizes = [8, 48], strides = [1, 1]} : vector<10x48xf32> to vector<8x48xf32>
    %c1_34 = arith.constant 1 : index
    %c0_35 = arith.constant 0 : index
    %c0_36 = arith.constant 0 : index
    %38 = vector.load %arg4[%c1_34, %c0_35, %c0_36] : memref<3x48x32xf32, #tpu.memory_space<vmem>>, vector<1x48x32xf32>
    %39 = vector.shape_cast %38 : vector<1x48x32xf32> to vector<48x32xf32>
    %cst_37 = arith.constant dense<0.000000e+00> : vector<8x32xf32>
    %40 = tpu.matmul %37, %39, %cst_37 {dimension_numbers = #tpu.dot_dimension_numbers<[1], [0], [0], [1], [0, 0, 1, 1], [], []>} : vector<8x48xf32>, vector<48x32xf32>, vector<8x32xf32> -> vector<8x32xf32>
    %41 = arith.addf %36, %40 : vector<8x32xf32>
    %42 = vector.extract_strided_slice %30 {offsets = [2, 0], sizes = [8, 48], strides = [1, 1]} : vector<10x48xf32> to vector<8x48xf32>
    %c2_38 = arith.constant 2 : index
    %c0_39 = arith.constant 0 : index
    %c0_40 = arith.constant 0 : index
    %43 = vector.load %arg4[%c2_38, %c0_39, %c0_40] : memref<3x48x32xf32, #tpu.memory_space<vmem>>, vector<1x48x32xf32>
    %44 = vector.shape_cast %43 : vector<1x48x32xf32> to vector<48x32xf32>
    %cst_41 = arith.constant dense<0.000000e+00> : vector<8x32xf32>
    %45 = tpu.matmul %42, %44, %cst_41 {dimension_numbers = #tpu.dot_dimension_numbers<[1], [0], [0], [1], [0, 0, 1, 1], [], []>} : vector<8x48xf32>, vector<48x32xf32>, vector<8x32xf32> -> vector<8x32xf32>
    %46 = arith.addf %41, %45 : vector<8x32xf32>
    %c0_42 = arith.constant 0 : index
    %c0_43 = arith.constant 0 : index
    %47 = vector.load %arg5[%c0_42, %c0_43] : memref<1x32xf32, #tpu.memory_space<vmem>>, vector<1x32xf32>
    %48 = vector.broadcast %47 : vector<1x32xf32> to vector<8x32xf32>
    %49 = arith.addf %46, %48 : vector<8x32xf32>
    %cst_44 = arith.constant 0.000000e+00 : f32
    %50 = vector.broadcast %cst_44 : f32 to vector<8x32xf32>
    %51 = arith.maximumf %49, %50 : vector<8x32xf32>
    %c0_45 = arith.constant 0 : index
    %c0_46 = arith.constant 0 : index
    %52 = vector.load %arg6[%c0_45, %c0_46] : memref<1x32xf32, #tpu.memory_space<vmem>>, vector<1x32xf32>
    %c0_47 = arith.constant 0 : index
    %c0_48 = arith.constant 0 : index
    %53 = vector.load %arg7[%c0_47, %c0_48] : memref<1x32xf32, #tpu.memory_space<vmem>>, vector<1x32xf32>
    %cst_49 = arith.constant dense<0.000000e+00> : vector<8xf32>
    %54 = vector.multi_reduction <add>, %51, %cst_49 [1] : vector<8x32xf32> to vector<8xf32>
    %55 = vector.shape_cast %54 : vector<8xf32> to vector<8x1xf32>
    %cst_50 = arith.constant 3.200000e+01 : f32
    %56 = vector.broadcast %cst_50 : f32 to vector<8x1xf32>
    %57 = arith.divf %55, %56 : vector<8x1xf32>
    %58 = vector.broadcast %57 : vector<8x1xf32> to vector<8x32xf32>
    %59 = arith.subf %51, %58 : vector<8x32xf32>
    %60 = arith.mulf %59, %59 : vector<8x32xf32>
    %cst_51 = arith.constant dense<0.000000e+00> : vector<8xf32>
    %61 = vector.multi_reduction <add>, %60, %cst_51 [1] : vector<8x32xf32> to vector<8xf32>
    %62 = vector.shape_cast %61 : vector<8xf32> to vector<8x1xf32>
    %cst_52 = arith.constant 3.200000e+01 : f32
    %63 = vector.broadcast %cst_52 : f32 to vector<8x1xf32>
    %64 = arith.divf %62, %63 : vector<8x1xf32>
    %cst_53 = arith.constant 9.99999974E-6 : f32
    %65 = vector.broadcast %cst_53 : f32 to vector<8x1xf32>
    %66 = arith.addf %64, %65 : vector<8x1xf32>
    %67 = math.rsqrt %66 : vector<8x1xf32>
    %68 = vector.broadcast %67 : vector<8x1xf32> to vector<8x32xf32>
    %69 = arith.mulf %59, %68 : vector<8x32xf32>
    %70 = vector.broadcast %52 : vector<1x32xf32> to vector<8x32xf32>
    %71 = arith.mulf %69, %70 : vector<8x32xf32>
    %72 = vector.broadcast %53 : vector<1x32xf32> to vector<8x32xf32>
    %73 = arith.addf %71, %72 : vector<8x32xf32>
    %cst_54 = arith.constant 0.000000e+00 : f32
    %74 = vector.broadcast %cst_54 : f32 to vector<10x32xf32>
    %c0_55 = arith.constant 0 : index
    %c0_56 = arith.constant 0 : index
    %75 = vector.load %arg17[%c0_55, %c0_56] : memref<10x32xf32, #tpu.memory_space<vmem>>, vector<10x32xf32>
    tpu.vector_store %arg17[%c0_55, %c0_56], %74 {strides = array<i32>} : memref<10x32xf32, #tpu.memory_space<vmem>>, vector<10x32xf32>,
    %c1_57 = arith.constant 1 : index
    %c0_58 = arith.constant 0 : index
    %76 = vector.load %arg17[%c1_57, %c0_58] : memref<10x32xf32, #tpu.memory_space<vmem>>, vector<8x32xf32>
    tpu.vector_store %arg17[%c1_57, %c0_58], %73 {strides = array<i32>} : memref<10x32xf32, #tpu.memory_space<vmem>>, vector<8x32xf32>,
    %c0_59 = arith.constant 0 : index
    %c0_60 = arith.constant 0 : index
    %77 = vector.load %arg17[%c0_59, %c0_60] : memref<10x32xf32, #tpu.memory_space<vmem>>, vector<10x32xf32>
    %cst_61 = arith.constant 0.000000e+00 : f32
    %78 = vector.broadcast %cst_61 : f32 to vector<8x48xf32>
    %79 = vector.extract_strided_slice %77 {offsets = [0, 0], sizes = [8, 32], strides = [1, 1]} : vector<10x32xf32> to vector<8x32xf32>
    %c0_62 = arith.constant 0 : index
    %c0_63 = arith.constant 0 : index
    %c0_64 = arith.constant 0 : index
    %80 = vector.load %arg8[%c0_62, %c0_63, %c0_64] : memref<3x32x48xf32, #tpu.memory_space<vmem>>, vector<1x32x48xf32>
    %81 = vector.shape_cast %80 : vector<1x32x48xf32> to vector<32x48xf32>
    %cst_65 = arith.constant dense<0.000000e+00> : vector<8x48xf32>
    %82 = tpu.matmul %79, %81, %cst_65 {dimension_numbers = #tpu.dot_dimension_numbers<[1], [0], [0], [1], [0, 0, 1, 1], [], []>} : vector<8x32xf32>, vector<32x48xf32>, vector<8x48xf32> -> vector<8x48xf32>
    %83 = arith.addf %78, %82 : vector<8x48xf32>
    %84 = vector.extract_strided_slice %77 {offsets = [1, 0], sizes = [8, 32], strides = [1, 1]} : vector<10x32xf32> to vector<8x32xf32>
    %c1_66 = arith.constant 1 : index
    %c0_67 = arith.constant 0 : index
    %c0_68 = arith.constant 0 : index
    %85 = vector.load %arg8[%c1_66, %c0_67, %c0_68] : memref<3x32x48xf32, #tpu.memory_space<vmem>>, vector<1x32x48xf32>
    %86 = vector.shape_cast %85 : vector<1x32x48xf32> to vector<32x48xf32>
    %cst_69 = arith.constant dense<0.000000e+00> : vector<8x48xf32>
    %87 = tpu.matmul %84, %86, %cst_69 {dimension_numbers = #tpu.dot_dimension_numbers<[1], [0], [0], [1], [0, 0, 1, 1], [], []>} : vector<8x32xf32>, vector<32x48xf32>, vector<8x48xf32> -> vector<8x48xf32>
    %88 = arith.addf %83, %87 : vector<8x48xf32>
    %89 = vector.extract_strided_slice %77 {offsets = [2, 0], sizes = [8, 32], strides = [1, 1]} : vector<10x32xf32> to vector<8x32xf32>
    %c2_70 = arith.constant 2 : index
    %c0_71 = arith.constant 0 : index
    %c0_72 = arith.constant 0 : index
    %90 = vector.load %arg8[%c2_70, %c0_71, %c0_72] : memref<3x32x48xf32, #tpu.memory_space<vmem>>, vector<1x32x48xf32>
    %91 = vector.shape_cast %90 : vector<1x32x48xf32> to vector<32x48xf32>
    %cst_73 = arith.constant dense<0.000000e+00> : vector<8x48xf32>
    %92 = tpu.matmul %89, %91, %cst_73 {dimension_numbers = #tpu.dot_dimension_numbers<[1], [0], [0], [1], [0, 0, 1, 1], [], []>} : vector<8x32xf32>, vector<32x48xf32>, vector<8x48xf32> -> vector<8x48xf32>
    %93 = arith.addf %88, %92 : vector<8x48xf32>
    %c0_74 = arith.constant 0 : index
    %c0_75 = arith.constant 0 : index
    %94 = vector.load %arg9[%c0_74, %c0_75] : memref<1x48xf32, #tpu.memory_space<vmem>>, vector<1x48xf32>
    %95 = vector.broadcast %94 : vector<1x48xf32> to vector<8x48xf32>
    %96 = arith.addf %93, %95 : vector<8x48xf32>
    %cst_76 = arith.constant 0.000000e+00 : f32
    %97 = vector.broadcast %cst_76 : f32 to vector<8x48xf32>
    %98 = arith.maximumf %96, %97 : vector<8x48xf32>
    %cst_77 = arith.constant 0.000000e+00 : f32
    %99 = vector.broadcast %cst_77 : f32 to vector<10x48xf32>
    %c0_78 = arith.constant 0 : index
    %c0_79 = arith.constant 0 : index
    %100 = vector.load %arg18[%c0_78, %c0_79] : memref<10x48xf32, #tpu.memory_space<vmem>>, vector<10x48xf32>
    tpu.vector_store %arg18[%c0_78, %c0_79], %99 {strides = array<i32>} : memref<10x48xf32, #tpu.memory_space<vmem>>, vector<10x48xf32>,
    %c1_80 = arith.constant 1 : index
    %c0_81 = arith.constant 0 : index
    %101 = vector.load %arg18[%c1_80, %c0_81] : memref<10x48xf32, #tpu.memory_space<vmem>>, vector<8x48xf32>
    tpu.vector_store %arg18[%c1_80, %c0_81], %98 {strides = array<i32>} : memref<10x48xf32, #tpu.memory_space<vmem>>, vector<8x48xf32>,
    %c0_82 = arith.constant 0 : index
    %c0_83 = arith.constant 0 : index
    %102 = vector.load %arg18[%c0_82, %c0_83] : memref<10x48xf32, #tpu.memory_space<vmem>>, vector<10x48xf32>
    %cst_84 = arith.constant 0.000000e+00 : f32
    %103 = vector.broadcast %cst_84 : f32 to vector<8x32xf32>
    %104 = vector.extract_strided_slice %102 {offsets = [0, 0], sizes = [8, 48], strides = [1, 1]} : vector<10x48xf32> to vector<8x48xf32>
    %c0_85 = arith.constant 0 : index
    %c0_86 = arith.constant 0 : index
    %c0_87 = arith.constant 0 : index
    %105 = vector.load %arg10[%c0_85, %c0_86, %c0_87] : memref<3x48x32xf32, #tpu.memory_space<vmem>>, vector<1x48x32xf32>
    %106 = vector.shape_cast %105 : vector<1x48x32xf32> to vector<48x32xf32>
    %cst_88 = arith.constant dense<0.000000e+00> : vector<8x32xf32>
    %107 = tpu.matmul %104, %106, %cst_88 {dimension_numbers = #tpu.dot_dimension_numbers<[1], [0], [0], [1], [0, 0, 1, 1], [], []>} : vector<8x48xf32>, vector<48x32xf32>, vector<8x32xf32> -> vector<8x32xf32>
    %108 = arith.addf %103, %107 : vector<8x32xf32>
    %109 = vector.extract_strided_slice %102 {offsets = [1, 0], sizes = [8, 48], strides = [1, 1]} : vector<10x48xf32> to vector<8x48xf32>
    %c1_89 = arith.constant 1 : index
    %c0_90 = arith.constant 0 : index
    %c0_91 = arith.constant 0 : index
    %110 = vector.load %arg10[%c1_89, %c0_90, %c0_91] : memref<3x48x32xf32, #tpu.memory_space<vmem>>, vector<1x48x32xf32>
    %111 = vector.shape_cast %110 : vector<1x48x32xf32> to vector<48x32xf32>
    %cst_92 = arith.constant dense<0.000000e+00> : vector<8x32xf32>
    %112 = tpu.matmul %109, %111, %cst_92 {dimension_numbers = #tpu.dot_dimension_numbers<[1], [0], [0], [1], [0, 0, 1, 1], [], []>} : vector<8x48xf32>, vector<48x32xf32>, vector<8x32xf32> -> vector<8x32xf32>
    %113 = arith.addf %108, %112 : vector<8x32xf32>
    %114 = vector.extract_strided_slice %102 {offsets = [2, 0], sizes = [8, 48], strides = [1, 1]} : vector<10x48xf32> to vector<8x48xf32>
    %c2_93 = arith.constant 2 : index
    %c0_94 = arith.constant 0 : index
    %c0_95 = arith.constant 0 : index
    %115 = vector.load %arg10[%c2_93, %c0_94, %c0_95] : memref<3x48x32xf32, #tpu.memory_space<vmem>>, vector<1x48x32xf32>
    %116 = vector.shape_cast %115 : vector<1x48x32xf32> to vector<48x32xf32>
    %cst_96 = arith.constant dense<0.000000e+00> : vector<8x32xf32>
    %117 = tpu.matmul %114, %116, %cst_96 {dimension_numbers = #tpu.dot_dimension_numbers<[1], [0], [0], [1], [0, 0, 1, 1], [], []>} : vector<8x48xf32>, vector<48x32xf32>, vector<8x32xf32> -> vector<8x32xf32>
    %118 = arith.addf %113, %117 : vector<8x32xf32>
    %c0_97 = arith.constant 0 : index
    %c0_98 = arith.constant 0 : index
    %119 = vector.load %arg11[%c0_97, %c0_98] : memref<1x32xf32, #tpu.memory_space<vmem>>, vector<1x32xf32>
    %120 = vector.broadcast %119 : vector<1x32xf32> to vector<8x32xf32>
    %121 = arith.addf %118, %120 : vector<8x32xf32>
    %cst_99 = arith.constant 0.000000e+00 : f32
    %122 = vector.broadcast %cst_99 : f32 to vector<8x32xf32>
    %123 = arith.maximumf %121, %122 : vector<8x32xf32>
    %c0_100 = arith.constant 0 : index
    %c0_101 = arith.constant 0 : index
    %124 = vector.load %arg12[%c0_100, %c0_101] : memref<1x32xf32, #tpu.memory_space<vmem>>, vector<1x32xf32>
    %c0_102 = arith.constant 0 : index
    %c0_103 = arith.constant 0 : index
    %125 = vector.load %arg13[%c0_102, %c0_103] : memref<1x32xf32, #tpu.memory_space<vmem>>, vector<1x32xf32>
    %cst_104 = arith.constant dense<0.000000e+00> : vector<8xf32>
    %126 = vector.multi_reduction <add>, %123, %cst_104 [1] : vector<8x32xf32> to vector<8xf32>
    %127 = vector.shape_cast %126 : vector<8xf32> to vector<8x1xf32>
    %cst_105 = arith.constant 3.200000e+01 : f32
    %128 = vector.broadcast %cst_105 : f32 to vector<8x1xf32>
    %129 = arith.divf %127, %128 : vector<8x1xf32>
    %130 = vector.broadcast %129 : vector<8x1xf32> to vector<8x32xf32>
    %131 = arith.subf %123, %130 : vector<8x32xf32>
    %132 = arith.mulf %131, %131 : vector<8x32xf32>
    %cst_106 = arith.constant dense<0.000000e+00> : vector<8xf32>
    %133 = vector.multi_reduction <add>, %132, %cst_106 [1] : vector<8x32xf32> to vector<8xf32>
    %134 = vector.shape_cast %133 : vector<8xf32> to vector<8x1xf32>
    %cst_107 = arith.constant 3.200000e+01 : f32
    %135 = vector.broadcast %cst_107 : f32 to vector<8x1xf32>
    %136 = arith.divf %134, %135 : vector<8x1xf32>
    %cst_108 = arith.constant 9.99999974E-6 : f32
    %137 = vector.broadcast %cst_108 : f32 to vector<8x1xf32>
    %138 = arith.addf %136, %137 : vector<8x1xf32>
    %139 = math.rsqrt %138 : vector<8x1xf32>
    %140 = vector.broadcast %139 : vector<8x1xf32> to vector<8x32xf32>
    %141 = arith.mulf %131, %140 : vector<8x32xf32>
    %142 = vector.broadcast %124 : vector<1x32xf32> to vector<8x32xf32>
    %143 = arith.mulf %141, %142 : vector<8x32xf32>
    %144 = vector.broadcast %125 : vector<1x32xf32> to vector<8x32xf32>
    %145 = arith.addf %143, %144 : vector<8x32xf32>
    %c0_109 = arith.constant 0 : index
    %c0_110 = arith.constant 0 : index
    %146 = vector.load %arg14[%c0_109, %c0_110] : memref<1x32xf32, #tpu.memory_space<vmem>>, vector<1x32xf32>
    %147 = vector.broadcast %146 : vector<1x32xf32> to vector<8x32xf32>
    %148 = arith.mulf %145, %147 : vector<8x32xf32>
    %cst_111 = arith.constant dense<0.000000e+00> : vector<8xf32>
    %149 = vector.multi_reduction <add>, %148, %cst_111 [1] : vector<8x32xf32> to vector<8xf32>
    %150 = vector.shape_cast %149 : vector<8xf32> to vector<8x1xf32>
    %c0_112 = arith.constant 0 : index
    %c0_113 = arith.constant 0 : index
    %151 = vector.load %arg15[%c0_112, %c0_113] : memref<1x1xf32, #tpu.memory_space<vmem>>, vector<1x1xf32>
    %152 = vector.broadcast %151 : vector<1x1xf32> to vector<8x1xf32>
    %153 = arith.addf %150, %152 : vector<8x1xf32>
    %c0_114 = arith.constant 0 : index
    %c0_115 = arith.constant 0 : index
    %c0_116 = arith.constant 0 : index
    %154 = vector.load %arg16[%c0_114, %c0_115, %c0_116] : memref<1x8x1xf32, #tpu.memory_space<vmem>>, vector<1x8x1xf32>
    %155 = vector.shape_cast %154 : vector<1x8x1xf32> to vector<8x1xf32>
    %156 = vector.shape_cast %153 : vector<8x1xf32> to vector<1x8x1xf32>
    tpu.vector_store %arg16[%c0_114, %c0_115, %c0_116], %156 {strides = array<i32>} : memref<1x8x1xf32, #tpu.memory_space<vmem>>, vector<1x8x1xf32>,
    return
  }
  func.func @transform_0(%arg0: i32) -> (i32, i32, i32) {
    %c0_i32 = arith.constant 0 : i32
    %c0_i32_0 = arith.constant 0 : i32
    %c0_i32_1 = arith.constant 0 : i32
    return %arg0, %c0_i32, %c0_i32_0 : i32, i32, i32
  }
  func.func @transform_1(%arg0: i32) -> (i32, i32, i32) {
    %c0_i32 = arith.constant 0 : i32
    %c0_i32_0 = arith.constant 0 : i32
    %c0_i32_1 = arith.constant 0 : i32
    %c0_i32_2 = arith.constant 0 : i32
    return %c0_i32, %c0_i32_0, %c0_i32_1 : i32, i32, i32
  }
  func.func @transform_2(%arg0: i32) -> (i32, i32) {
    %c0_i32 = arith.constant 0 : i32
    %c0_i32_0 = arith.constant 0 : i32
    %c0_i32_1 = arith.constant 0 : i32
    return %c0_i32, %c0_i32_0 : i32, i32
  }
  func.func @transform_3(%arg0: i32) -> (i32, i32, i32) {
    %c0_i32 = arith.constant 0 : i32
    %c0_i32_0 = arith.constant 0 : i32
    %c0_i32_1 = arith.constant 0 : i32
    %c0_i32_2 = arith.constant 0 : i32
    return %c0_i32, %c0_i32_0, %c0_i32_1 : i32, i32, i32
  }
  func.func @transform_4(%arg0: i32) -> (i32, i32) {
    %c0_i32 = arith.constant 0 : i32
    %c0_i32_0 = arith.constant 0 : i32
    %c0_i32_1 = arith.constant 0 : i32
    return %c0_i32, %c0_i32_0 : i32, i32
  }
  func.func @transform_5(%arg0: i32) -> (i32, i32) {
    %c0_i32 = arith.constant 0 : i32
    %c0_i32_0 = arith.constant 0 : i32
    %c0_i32_1 = arith.constant 0 : i32
    return %c0_i32, %c0_i32_0 : i32, i32
  }
  func.func @transform_6(%arg0: i32) -> (i32, i32) {
    %c0_i32 = arith.constant 0 : i32
    %c0_i32_0 = arith.constant 0 : i32
    %c0_i32_1 = arith.constant 0 : i32
    return %c0_i32, %c0_i32_0 : i32, i32
  }
  func.func @transform_7(%arg0: i32) -> (i32, i32, i32) {
    %c0_i32 = arith.constant 0 : i32
    %c0_i32_0 = arith.constant 0 : i32
    %c0_i32_1 = arith.constant 0 : i32
    %c0_i32_2 = arith.constant 0 : i32
    return %c0_i32, %c0_i32_0, %c0_i32_1 : i32, i32, i32
  }
  func.func @transform_8(%arg0: i32) -> (i32, i32) {
    %c0_i32 = arith.constant 0 : i32
    %c0_i32_0 = arith.constant 0 : i32
    %c0_i32_1 = arith.constant 0 : i32
    return %c0_i32, %c0_i32_0 : i32, i32
  }
  func.func @transform_9(%arg0: i32) -> (i32, i32, i32) {
    %c0_i32 = arith.constant 0 : i32
    %c0_i32_0 = arith.constant 0 : i32
    %c0_i32_1 = arith.constant 0 : i32
    %c0_i32_2 = arith.constant 0 : i32
    return %c0_i32, %c0_i32_0, %c0_i32_1 : i32, i32, i32
  }
  func.func @transform_10(%arg0: i32) -> (i32, i32) {
    %c0_i32 = arith.constant 0 : i32
    %c0_i32_0 = arith.constant 0 : i32
    %c0_i32_1 = arith.constant 0 : i32
    return %c0_i32, %c0_i32_0 : i32, i32
  }
  func.func @transform_11(%arg0: i32) -> (i32, i32) {
    %c0_i32 = arith.constant 0 : i32
    %c0_i32_0 = arith.constant 0 : i32
    %c0_i32_1 = arith.constant 0 : i32
    return %c0_i32, %c0_i32_0 : i32, i32
  }
  func.func @transform_12(%arg0: i32) -> (i32, i32) {
    %c0_i32 = arith.constant 0 : i32
    %c0_i32_0 = arith.constant 0 : i32
    %c0_i32_1 = arith.constant 0 : i32
    return %c0_i32, %c0_i32_0 : i32, i32
  }
  func.func @transform_13(%arg0: i32) -> (i32, i32) {
    %c0_i32 = arith.constant 0 : i32
    %c0_i32_0 = arith.constant 0 : i32
    %c0_i32_1 = arith.constant 0 : i32
    return %c0_i32, %c0_i32_0 : i32, i32
  }
  func.func @transform_14(%arg0: i32) -> (i32, i32) {
    %c0_i32 = arith.constant 0 : i32
    %c0_i32_0 = arith.constant 0 : i32
    %c0_i32_1 = arith.constant 0 : i32
    return %c0_i32, %c0_i32_0 : i32, i32
  }
  func.func @transform_15(%arg0: i32) -> (i32, i32, i32) {
    %c0_i32 = arith.constant 0 : i32
    %c0_i32_0 = arith.constant 0 : i32
    %c0_i32_1 = arith.constant 0 : i32
    return %arg0, %c0_i32, %c0_i32_0 : i32, i32, i32
  }
}

</mosaic_0001>

<llo_original>
// kernel: _encoder_half.5
$region0: #{_encoder_half.5}
  #allocation0 [shape = 'u32[]', space=smem, size = 0x4, offset = 0x4, fixed_abs, tag = 'smem constant byte address 0x4 - core index']
  #allocation1 [shape = 'u32[144,128]{1,0:T(1,128)}', space=vmem, size = 0x12000, scoped, tag = 'internal scratch']
  #allocation2 [shape = 'f32[10,32]{1,0:T(8,128)}', space=vmem, size = 0x2000, scoped, tag = 'scratch operand']
  #allocation3 [shape = 'f32[10,48]{1,0:T(8,128)}', space=vmem, size = 0x2000, scoped, tag = 'scratch operand']
  #allocation4 [shape = 'f32[1,1]{1,0:T(1,128)S(1)}', space=vmem, size = 0x200, scoped, tag = 'scoped memory for _encoder_half.5']
  %s0 = inlined_call_operand.vmem [shape: f32[2,8,32], index: 0, kind: input, shape index: {}]
  %s1 = inlined_call_operand.vmem [shape: f32[3,32,48], index: 1, kind: input, shape index: {}]
  %s2 = inlined_call_operand.vmem [shape: f32[1,48], index: 2, kind: input, shape index: {}]
  %s3 = inlined_call_operand.vmem [shape: f32[3,48,32], index: 3, kind: input, shape index: {}]
  %s4 = inlined_call_operand.vmem [shape: f32[1,32], index: 4, kind: input, shape index: {}]
  %s5 = inlined_call_operand.vmem [shape: f32[1,32], index: 5, kind: input, shape index: {}]
  %s6 = inlined_call_operand.vmem [shape: f32[1,32], index: 6, kind: input, shape index: {}]
  %s7 = inlined_call_operand.vmem [shape: f32[3,32,48], index: 7, kind: input, shape index: {}]
  %s8 = inlined_call_operand.vmem [shape: f32[1,48], index: 8, kind: input, shape index: {}]
  %s9 = inlined_call_operand.vmem [shape: f32[3,48,32], index: 9, kind: input, shape index: {}]
  %s10 = inlined_call_operand.vmem [shape: f32[1,32], index: 10, kind: input, shape index: {}]
  %s11 = inlined_call_operand.vmem [shape: f32[1,32], index: 11, kind: input, shape index: {}]
  %s12 = inlined_call_operand.vmem [shape: f32[1,32], index: 12, kind: input, shape index: {}]
  %s13 = inlined_call_operand.vmem [shape: f32[1,32], index: 13, kind: input, shape index: {}]
  %s14 = inlined_call_operand.<no memory space> [shape: f32[1,1], index: 14, kind: input, shape index: {}]
  %s15 = inlined_call_operand.vmem [shape: f32[2,8,1], index: 15, kind: output, shape index: {}]
  %s16 = sld [smem:[#allocation0]]
  $region93: #{_encoder_half.5} parent=0
    _
  %s18 = ssub.s32 1, %s16
  %s19 = scalar_select 0, %s18, %s16
  %v20 = vstv %s14
  %21 = vst [vmem:[#allocation4] sm:$0x1] %v20
  loop: start=0, step=1, limit=4
  $region2: #{_encoder_half.5} parent=0 // loop_pre_header
    _
  $region3: #{_encoder_half.5} parent=0 // loop_header
    %s23 = sphi 0, %s27
    %p24 = scmp.ge.s32.totalorder %s23, 4
    %s33 = sphi 0, %s35
    %s36 = sphi 0, %s33
    %s37 = sphi 0, %s36
    %s53 = sphi 0, %s37
    %s57 = sphi 0, %s57
    %s59 = sphi 0, %s57
    %s60 = sphi 0, %s59
    %s74 = sphi 0, %s60
    %s78 = sphi 0, %s78
    %s80 = sphi 0, %s78
    %s81 = sphi 0, %s80
    %s95 = sphi 0, %s81
    %s99 = sphi 0, %s99
    %s101 = sphi 0, %s99
    %s102 = sphi 0, %s101
    %s116 = sphi 0, %s102
    %s120 = sphi 0, %s120
    %s122 = sphi 0, %s120
    %s123 = sphi 0, %s122
    %s137 = sphi 0, %s123
    %s141 = sphi 0, %s141
    %s143 = sphi 0, %s141
    %s144 = sphi 0, %s143
    %s158 = sphi 0, %s144
    %s162 = sphi 0, %s162
    %s164 = sphi 0, %s162
    %s165 = sphi 0, %s164
    %s179 = sphi 0, %s165
    %s183 = sphi 0, %s183
    %s185 = sphi 0, %s183
    %s186 = sphi 0, %s185
    %s200 = sphi 0, %s186
    %s204 = sphi 0, %s204
    %s206 = sphi 0, %s204
    %s207 = sphi 0, %s206
    %s221 = sphi 0, %s207
    %s225 = sphi 0, %s225
    %s227 = sphi 0, %s225
    %s228 = sphi 0, %s227
    %s242 = sphi 0, %s228
    %s246 = sphi 0, %s246
    %s248 = sphi 0, %s246
    %s249 = sphi 0, %s248
    %s263 = sphi 0, %s249
    %s267 = sphi 0, %s267
    %s269 = sphi 0, %s267
    %s270 = sphi 0, %s269
    %s284 = sphi 0, %s270
    %s288 = sphi 0, %s288
    %s290 = sphi 0, %s288
    %s291 = sphi 0, %s290
    %s305 = sphi 0, %s291
    %s309 = sphi 0, %s309
    %s311 = sphi 0, %s309
    %s312 = sphi 0, %s311
    %s326 = sphi 0, %s312
    %s330 = sphi 0, %s330
    %s332 = sphi 0, %s330
    %s333 = sphi 0, %s332
    %s347 = sphi 0, %s333
    %s353 = sphi 0, %s355
    %s356 = sphi 0, %s353
    %s357 = sphi 0, %s356
    %s373 = sphi 0, %s357
  $region4: #{_encoder_half.5} parent=0 // loop_header_branch
    %26 = sbr.rel (%p24) target = $region8
  $region5: #{_encoder_half.5} parent=0 // loop_body
    %s28 = ssub.s32 %s23, 1
    %s29 = ssub.s32 %s23, 2
    %s30 = sadd.s32 %s23, 1
    %s31 = ssub.s32 %s23, %s30
    %p32 = scmp.eq.s32.totalorder %s31, 0
    %s34 = sadd.s32 %s33, 1
    %s35 = scalar_select %p32, %s33, %s34
    %p38 = pneg %p32
    %p39 = scmp.eq.s32.totalorder %s23, 1
    %p40 = por %p38, %p39
    %p41 = scmp.ne.s32.totalorder %s33, %s36
    %p42 = scmp.eq.s32.totalorder %s23, 0
    %p43 = por %p41, %p42
    %p44 = scmp.ne.s32.totalorder %s33, %s36
    %p45 = scmp.eq.s32.totalorder %s28, 1
    %p46 = por %p44, %p45
    %p47 = scmp.ne.s32.totalorder %s36, %s37
    %p48 = scmp.eq.s32.totalorder %s28, 0
    %p49 = por %p47, %p48
    %p50 = scmp.ne.s32.totalorder %s36, %s37
    %p51 = scmp.eq.s32.totalorder %s29, 1
    %p52 = por %p50, %p51
    %p54 = scmp.ne.s32.totalorder %s37, %s53
    %p55 = scmp.eq.s32.totalorder %s29, 0
    %p56 = por %p54, %p55
    %s58 = sadd.s32 %s57, 1
    %p61 = scmp.eq.s32.totalorder %s23, 1
    %p62 = scmp.ne.s32.totalorder %s57, %s59
    %p63 = scmp.eq.s32.totalorder %s23, 0
    %p64 = por %p62, %p63
    %p65 = scmp.ne.s32.totalorder %s57, %s59
    %p66 = scmp.eq.s32.totalorder %s28, 1
    %p67 = por %p65, %p66
    %p68 = scmp.ne.s32.totalorder %s59, %s60
    %p69 = scmp.eq.s32.totalorder %s28, 0
    %p70 = por %p68, %p69
    %p71 = scmp.ne.s32.totalorder %s59, %s60
    %p72 = scmp.eq.s32.totalorder %s29, 1
    %p73 = por %p71, %p72
    %p75 = scmp.ne.s32.totalorder %s60, %s74
    %p76 = scmp.eq.s32.totalorder %s29, 0
    %p77 = por %p75, %p76
    %s79 = sadd.s32 %s78, 1
    %p82 = scmp.eq.s32.totalorder %s23, 1
    %p83 = scmp.ne.s32.totalorder %s78, %s80
    %p84 = scmp.eq.s32.totalorder %s23, 0
    %p85 = por %p83, %p84
    %p86 = scmp.ne.s32.totalorder %s78, %s80
    %p87 = scmp.eq.s32.totalorder %s28, 1
    %p88 = por %p86, %p87
    %p89 = scmp.ne.s32.totalorder %s80, %s81
    %p90 = scmp.eq.s32.totalorder %s28, 0
    %p91 = por %p89, %p90
    %p92 = scmp.ne.s32.totalorder %s80, %s81
    %p93 = scmp.eq.s32.totalorder %s29, 1
    %p94 = por %p92, %p93
    %p96 = scmp.ne.s32.totalorder %s81, %s95
    %p97 = scmp.eq.s32.totalorder %s29, 0
    %p98 = por %p96, %p97
    %s100 = sadd.s32 %s99, 1
    %p103 = scmp.eq.s32.totalorder %s23, 1
    %p104 = scmp.ne.s32.totalorder %s99, %s101
    %p105 = scmp.eq.s32.totalorder %s23, 0
    %p106 = por %p104, %p105
    %p107 = scmp.ne.s32.totalorder %s99, %s101
    %p108 = scmp.eq.s32.totalorder %s28, 1
    %p109 = por %p107, %p108
    %p110 = scmp.ne.s32.totalorder %s101, %s102
    %p111 = scmp.eq.s32.totalorder %s28, 0
    %p112 = por %p110, %p111
    %p113 = scmp.ne.s32.totalorder %s101, %s102
    %p114 = scmp.eq.s32.totalorder %s29, 1
    %p115 = por %p113, %p114
    %p117 = scmp.ne.s32.totalorder %s102, %s116
    %p118 = scmp.eq.s32.totalorder %s29, 0
    %p119 = por %p117, %p118
    %s121 = sadd.s32 %s120, 1
    %p124 = scmp.eq.s32.totalorder %s23, 1
    %p125 = scmp.ne.s32.totalorder %s120, %s122
    %p126 = scmp.eq.s32.totalorder %s23, 0
    %p127 = por %p125, %p126
    %p128 = scmp.ne.s32.totalorder %s120, %s122
    %p129 = scmp.eq.s32.totalorder %s28, 1
    %p130 = por %p128, %p129
    %p131 = scmp.ne.s32.totalorder %s122, %s123
    %p132 = scmp.eq.s32.totalorder %s28, 0
    %p133 = por %p131, %p132
    %p134 = scmp.ne.s32.totalorder %s122, %s123
    %p135 = scmp.eq.s32.totalorder %s29, 1
    %p136 = por %p134, %p135
    %p138 = scmp.ne.s32.totalorder %s123, %s137
    %p139 = scmp.eq.s32.totalorder %s29, 0
    %p140 = por %p138, %p139
    %s142 = sadd.s32 %s141, 1
    %p145 = scmp.eq.s32.totalorder %s23, 1
    %p146 = scmp.ne.s32.totalorder %s141, %s143
    %p147 = scmp.eq.s32.totalorder %s23, 0
    %p148 = por %p146, %p147
    %p149 = scmp.ne.s32.totalorder %s141, %s143
    %p150 = scmp.eq.s32.totalorder %s28, 1
    %p151 = por %p149, %p150
    %p152 = scmp.ne.s32.totalorder %s143, %s144
    %p153 = scmp.eq.s32.totalorder %s28, 0
    %p154 = por %p152, %p153
    %p155 = scmp.ne.s32.totalorder %s143, %s144
    %p156 = scmp.eq.s32.totalorder %s29, 1
    %p157 = por %p155, %p156
    %p159 = scmp.ne.s32.totalorder %s144, %s158
    %p160 = scmp.eq.s32.totalorder %s29, 0
    %p161 = por %p159, %p160
    %s163 = sadd.s32 %s162, 1
    %p166 = scmp.eq.s32.totalorder %s23, 1
    %p167 = scmp.ne.s32.totalorder %s162, %s164
    %p168 = scmp.eq.s32.totalorder %s23, 0
    %p169 = por %p167, %p168
    %p170 = scmp.ne.s32.totalorder %s162, %s164
    %p171 = scmp.eq.s32.totalorder %s28, 1
    %p172 = por %p170, %p171
    %p173 = scmp.ne.s32.totalorder %s164, %s165
    %p174 = scmp.eq.s32.totalorder %s28, 0
    %p175 = por %p173, %p174
    %p176 = scmp.ne.s32.totalorder %s164, %s165
    %p177 = scmp.eq.s32.totalorder %s29, 1
    %p178 = por %p176, %p177
    %p180 = scmp.ne.s32.totalorder %s165, %s179
    %p181 = scmp.eq.s32.totalorder %s29, 0
    %p182 = por %p180, %p181
    %s184 = sadd.s32 %s183, 1
    %p187 = scmp.eq.s32.totalorder %s23, 1
    %p188 = scmp.ne.s32.totalorder %s183, %s185
    %p189 = scmp.eq.s32.totalorder %s23, 0
    %p190 = por %p188, %p189
    %p191 = scmp.ne.s32.totalorder %s183, %s185
    %p192 = scmp.eq.s32.totalorder %s28, 1
    %p193 = por %p191, %p192
    %p194 = scmp.ne.s32.totalorder %s185, %s186
    %p195 = scmp.eq.s32.totalorder %s28, 0
    %p196 = por %p194, %p195
    %p197 = scmp.ne.s32.totalorder %s185, %s186
    %p198 = scmp.eq.s32.totalorder %s29, 1
    %p199 = por %p197, %p198
    %p201 = scmp.ne.s32.totalorder %s186, %s200
    %p202 = scmp.eq.s32.totalorder %s29, 0
    %p203 = por %p201, %p202
    %s205 = sadd.s32 %s204, 1
    %p208 = scmp.eq.s32.totalorder %s23, 1
    %p209 = scmp.ne.s32.totalorder %s204, %s206
    %p210 = scmp.eq.s32.totalorder %s23, 0
    %p211 = por %p209, %p210
    %p212 = scmp.ne.s32.totalorder %s204, %s206
    %p213 = scmp.eq.s32.totalorder %s28, 1
    %p214 = por %p212, %p213
    %p215 = scmp.ne.s32.totalorder %s206, %s207
    %p216 = scmp.eq.s32.totalorder %s28, 0
    %p217 = por %p215, %p216
    %p218 = scmp.ne.s32.totalorder %s206, %s207
    %p219 = scmp.eq.s32.totalorder %s29, 1
    %p220 = por %p218, %p219
    %p222 = scmp.ne.s32.totalorder %s207, %s221
    %p223 = scmp.eq.s32.totalorder %s29, 0
    %p224 = por %p222, %p223
    %s226 = sadd.s32 %s225, 1
    %p229 = scmp.eq.s32.totalorder %s23, 1
    %p230 = scmp.ne.s32.totalorder %s225, %s227
    %p231 = scmp.eq.s32.totalorder %s23, 0
    %p232 = por %p230, %p231
    %p233 = scmp.ne.s32.totalorder %s225, %s227
    %p234 = scmp.eq.s32.totalorder %s28, 1
    %p235 = por %p233, %p234
    %p236 = scmp.ne.s32.totalorder %s227, %s228
    %p237 = scmp.eq.s32.totalorder %s28, 0
    %p238 = por %p236, %p237
    %p239 = scmp.ne.s32.totalorder %s227, %s228
    %p240 = scmp.eq.s32.totalorder %s29, 1
    %p241 = por %p239, %p240
    %p243 = scmp.ne.s32.totalorder %s228, %s242
    %p244 = scmp.eq.s32.totalorder %s29, 0
    %p245 = por %p243, %p244
    %s247 = sadd.s32 %s246, 1
    %p250 = scmp.eq.s32.totalorder %s23, 1
    %p251 = scmp.ne.s32.totalorder %s246, %s248
    %p252 = scmp.eq.s32.totalorder %s23, 0
    %p253 = por %p251, %p252
    %p254 = scmp.ne.s32.totalorder %s246, %s248
    %p255 = scmp.eq.s32.totalorder %s28, 1
    %p256 = por %p254, %p255
    %p257 = scmp.ne.s32.totalorder %s248, %s249
    %p258 = scmp.eq.s32.totalorder %s28, 0
    %p259 = por %p257, %p258
    %p260 = scmp.ne.s32.totalorder %s248, %s249
    %p261 = scmp.eq.s32.totalorder %s29, 1
    %p262 = por %p260, %p261
    %p264 = scmp.ne.s32.totalorder %s249, %s263
    %p265 = scmp.eq.s32.totalorder %s29, 0
    %p266 = por %p264, %p265
    %s268 = sadd.s32 %s267, 1
    %p271 = scmp.eq.s32.totalorder %s23, 1
    %p272 = scmp.ne.s32.totalorder %s267, %s269
    %p273 = scmp.eq.s32.totalorder %s23, 0
    %p274 = por %p272, %p273
    %p275 = scmp.ne.s32.totalorder %s267, %s269
    %p276 = scmp.eq.s32.totalorder %s28, 1
    %p277 = por %p275, %p276
    %p278 = scmp.ne.s32.totalorder %s269, %s270
    %p279 = scmp.eq.s32.totalorder %s28, 0
    %p280 = por %p278, %p279
    %p281 = scmp.ne.s32.totalorder %s269, %s270
    %p282 = scmp.eq.s32.totalorder %s29, 1
    %p283 = por %p281, %p282
    %p285 = scmp.ne.s32.totalorder %s270, %s284
    %p286 = scmp.eq.s32.totalorder %s29, 0
    %p287 = por %p285, %p286
    %s289 = sadd.s32 %s288, 1
    %p292 = scmp.eq.s32.totalorder %s23, 1
    %p293 = scmp.ne.s32.totalorder %s288, %s290
    %p294 = scmp.eq.s32.totalorder %s23, 0
    %p295 = por %p293, %p294
    %p296 = scmp.ne.s32.totalorder %s288, %s290
    %p297 = scmp.eq.s32.totalorder %s28, 1
    %p298 = por %p296, %p297
    %p299 = scmp.ne.s32.totalorder %s290, %s291
    %p300 = scmp.eq.s32.totalorder %s28, 0
    %p301 = por %p299, %p300
    %p302 = scmp.ne.s32.totalorder %s290, %s291
    %p303 = scmp.eq.s32.totalorder %s29, 1
    %p304 = por %p302, %p303
    %p306 = scmp.ne.s32.totalorder %s291, %s305
    %p307 = scmp.eq.s32.totalorder %s29, 0
    %p308 = por %p306, %p307
    %s310 = sadd.s32 %s309, 1
    %p313 = scmp.eq.s32.totalorder %s23, 1
    %p314 = scmp.ne.s32.totalorder %s309, %s311
    %p315 = scmp.eq.s32.totalorder %s23, 0
    %p316 = por %p314, %p315
    %p317 = scmp.ne.s32.totalorder %s309, %s311
    %p318 = scmp.eq.s32.totalorder %s28, 1
    %p319 = por %p317, %p318
    %p320 = scmp.ne.s32.totalorder %s311, %s312
    %p321 = scmp.eq.s32.totalorder %s28, 0
    %p322 = por %p320, %p321
    %p323 = scmp.ne.s32.totalorder %s311, %s312
    %p324 = scmp.eq.s32.totalorder %s29, 1
    %p325 = por %p323, %p324
    %p327 = scmp.ne.s32.totalorder %s312, %s326
    %p328 = scmp.eq.s32.totalorder %s29, 0
    %p329 = por %p327, %p328
    %s331 = sadd.s32 %s330, 1
    %p334 = scmp.eq.s32.totalorder %s23, 1
    %p335 = scmp.ne.s32.totalorder %s330, %s332
    %p336 = scmp.eq.s32.totalorder %s23, 0
    %p337 = por %p335, %p336
    %p338 = scmp.ne.s32.totalorder %s330, %s332
    %p339 = scmp.eq.s32.totalorder %s28, 1
    %p340 = por %p338, %p339
    %p341 = scmp.ne.s32.totalorder %s332, %s333
    %p342 = scmp.eq.s32.totalorder %s28, 0
    %p343 = por %p341, %p342
    %p344 = scmp.ne.s32.totalorder %s332, %s333
    %p345 = scmp.eq.s32.totalorder %s29, 1
    %p346 = por %p344, %p345
    %p348 = scmp.ne.s32.totalorder %s333, %s347
    %p349 = scmp.eq.s32.totalorder %s29, 0
    %p350 = por %p348, %p349
    %s351 = ssub.s32 %s23, %s30
    %p352 = scmp.eq.s32.totalorder %s351, 0
    %s354 = sadd.s32 %s353, 1
    %s355 = scalar_select %p352, %s353, %s354
    %p358 = pneg %p352
    %p359 = scmp.eq.s32.totalorder %s23, 1
    %p360 = por %p358, %p359
    %p361 = scmp.ne.s32.totalorder %s353, %s356
    %p362 = scmp.eq.s32.totalorder %s23, 0
    %p363 = por %p361, %p362
    %p364 = scmp.ne.s32.totalorder %s353, %s356
    %p365 = scmp.eq.s32.totalorder %s28, 1
    %p366 = por %p364, %p365
    %p367 = scmp.ne.s32.totalorder %s356, %s357
    %p368 = scmp.eq.s32.totalorder %s28, 0
    %p369 = por %p367, %p368
    %p370 = scmp.ne.s32.totalorder %s356, %s357
    %p371 = scmp.eq.s32.totalorder %s29, 1
    %p372 = por %p370, %p371
    %p374 = scmp.ne.s32.totalorder %s357, %s373
    %p375 = scmp.eq.s32.totalorder %s29, 0
    %p376 = por %p374, %p375
    %p377 = scmp.le.s32.totalorder 1, %s23
    %p378 = scmp.lt.s32.totalorder %s23, 3
    %p379 = pnand %p377, %p378
    %p380 = pneg %p379
    // Predicated region
    $region9: #{_encoder_half.5} parent=5 // pred_check
      _
    $region10: #{_encoder_half.5} parent=5 // pred_check_branch
      %382 = sbr.rel (%p379) target = $region12
    $region11: #{_encoder_half.5} parent=5 // pred_region
      %s383 = ssub.s32 %s23, 1
      // Predicated region
      $region13: #{_encoder_half.5} parent=11 // pred_check
        %p384 = pneg %p70
      $region14: #{_encoder_half.5} parent=11 // pred_check_branch
        %386 = sbr.rel (%p384) target = $region16
      $region15: #{_encoder_half.5} parent=11 // pred_region
        _
      $region16: #{_encoder_half.5} parent=11 // pred_fallthru
        _
      // Predicated region
      $region17: #{_encoder_half.5} parent=11 // pred_check
        %p387 = pneg %p91
      $region18: #{_encoder_half.5} parent=11 // pred_check_branch
        %389 = sbr.rel (%p387) target = $region20
      $region19: #{_encoder_half.5} parent=11 // pred_region
        _
      $region20: #{_encoder_half.5} parent=11 // pred_fallthru
        _
      // Predicated region
      $region21: #{_encoder_half.5} parent=11 // pred_check
        %p390 = pneg %p112
      $region22: #{_encoder_half.5} parent=11 // pred_check_branch
        %392 = sbr.rel (%p390) target = $region24
      $region23: #{_encoder_half.5} parent=11 // pred_region
        _
      $region24: #{_encoder_half.5} parent=11 // pred_fallthru
        _
      // Predicated region
      $region25: #{_encoder_half.5} parent=11 // pred_check
        %p393 = pneg %p133
      $region26: #{_encoder_half.5} parent=11 // pred_check_branch
        %395 = sbr.rel (%p393) target = $region28
      $region27: #{_encoder_half.5} parent=11 // pred_region
        _
      $region28: #{_encoder_half.5} parent=11 // pred_fallthru
        _
      // Predicated region
      $region29: #{_encoder_half.5} parent=11 // pred_check
        %p396 = pneg %p154
      $region30: #{_encoder_half.5} parent=11 // pred_check_branch
        %398 = sbr.rel (%p396) target = $region32
      $region31: #{_encoder_half.5} parent=11 // pred_region
        _
      $region32: #{_encoder_half.5} parent=11 // pred_fallthru
        _
      // Predicated region
      $region33: #{_encoder_half.5} parent=11 // pred_check
        %p399 = pneg %p175
      $region34: #{_encoder_half.5} parent=11 // pred_check_branch
        %401 = sbr.rel (%p399) target = $region36
      $region35: #{_encoder_half.5} parent=11 // pred_region
        _
      $region36: #{_encoder_half.5} parent=11 // pred_fallthru
        _
      // Predicated region
      $region37: #{_encoder_half.5} parent=11 // pred_check
        %p402 = pneg %p196
      $region38: #{_encoder_half.5} parent=11 // pred_check_branch
        %404 = sbr.rel (%p402) target = $region40
      $region39: #{_encoder_half.5} parent=11 // pred_region
        _
      $region40: #{_encoder_half.5} parent=11 // pred_fallthru
        _
      // Predicated region
      $region41: #{_encoder_half.5} parent=11 // pred_check
        %p405 = pneg %p217
      $region42: #{_encoder_half.5} parent=11 // pred_check_branch
        %407 = sbr.rel (%p405) target = $region44
      $region43: #{_encoder_half.5} parent=11 // pred_region
        _
      $region44: #{_encoder_half.5} parent=11 // pred_fallthru
        _
      // Predicated region
      $region45: #{_encoder_half.5} parent=11 // pred_check
        %p408 = pneg %p238
      $region46: #{_encoder_half.5} parent=11 // pred_check_branch
        %410 = sbr.rel (%p408) target = $region48
      $region47: #{_encoder_half.5} parent=11 // pred_region
        _
      $region48: #{_encoder_half.5} parent=11 // pred_fallthru
        _
      // Predicated region
      $region49: #{_encoder_half.5} parent=11 // pred_check
        %p411 = pneg %p259
      $region50: #{_encoder_half.5} parent=11 // pred_check_branch
        %413 = sbr.rel (%p411) target = $region52
      $region51: #{_encoder_half.5} parent=11 // pred_region
        _
      $region52: #{_encoder_half.5} parent=11 // pred_fallthru
        _
      // Predicated region
      $region53: #{_encoder_half.5} parent=11 // pred_check
        %p414 = pneg %p280
      $region54: #{_encoder_half.5} parent=11 // pred_check_branch
        %416 = sbr.rel (%p414) target = $region56
      $region55: #{_encoder_half.5} parent=11 // pred_region
        _
      $region56: #{_encoder_half.5} parent=11 // pred_fallthru
        _
      // Predicated region
      $region57: #{_encoder_half.5} parent=11 // pred_check
        %p417 = pneg %p301
      $region58: #{_encoder_half.5} parent=11 // pred_check_branch
        %419 = sbr.rel (%p417) target = $region60
      $region59: #{_encoder_half.5} parent=11 // pred_region
        _
      $region60: #{_encoder_half.5} parent=11 // pred_fallthru
        _
      // Predicated region
      $region61: #{_encoder_half.5} parent=11 // pred_check
        %p420 = pneg %p322
      $region62: #{_encoder_half.5} parent=11 // pred_check_branch
        %422 = sbr.rel (%p420) target = $region64
      $region63: #{_encoder_half.5} parent=11 // pred_region
        _
      $region64: #{_encoder_half.5} parent=11 // pred_fallthru
        _
      // Predicated region
      $region65: #{_encoder_half.5} parent=11 // pred_check
        %p423 = pneg %p343
      $region66: #{_encoder_half.5} parent=11 // pred_check_branch
        %425 = sbr.rel (%p423) target = $region68
      $region67: #{_encoder_half.5} parent=11 // pred_region
        _
      $region68: #{_encoder_half.5} parent=11 // pred_fallthru
        _
    $region12: #{_encoder_half.5} parent=5 // pred_fallthru
      _
    %p426 = scmp.lt.s32.totalorder %s23, 2
    // Predicated region
    $region69: #{_encoder_half.5} parent=5 // pred_check
      %p427 = pneg %p426
    $region70: #{_encoder_half.5} parent=5 // pred_check_branch
      %429 = sbr.rel (%p427) target = $region72
    $region71: #{_encoder_half.5} parent=5 // pred_region
      // Predicated region
      $region73: #{_encoder_half.5} parent=71 // pred_check
        %p430 = pneg %p43
      $region74: #{_encoder_half.5} parent=71 // pred_check_branch
        %432 = sbr.rel (%p430) target = $region76
      $region75: #{_encoder_half.5} parent=71 // pred_region
        %p433 = scmp.lt.s32.totalorder %s23, 1
        %s434 = scalar_select %p433, %s23, 1
        %s435 = smul.addr %s434, 8
        %s436 = scalar_lea.vmem %s0, %s435
      $region76: #{_encoder_half.5} parent=71 // pred_fallthru
        _
    $region72: #{_encoder_half.5} parent=5 // pred_fallthru
      _
    %p437 = scmp.le.s32.totalorder 1, %s23
    %p438 = scmp.lt.s32.totalorder %s23, 3
    %p439 = pnand %p437, %p438
    %p440 = pneg %p439
    // Predicated region
    $region77: #{_encoder_half.5} parent=5 // pred_check
      _
    $region78: #{_encoder_half.5} parent=5 // pred_check_branch
      %442 = sbr.rel (%p439) target = $region80
    $region79: #{_encoder_half.5} parent=5 // pred_region
      %s443 = ssub.s32 %s23, 1
      %p444 = scmp.lt.s32.totalorder %s28, 1
      %s445 = scalar_select %p444, %s28, 1
      %s446 = smul.addr %s445, 8
      %s447 = scalar_lea.vmem %s0, %s446
      %p448 = pneg %p49
      %p449 = pneg %p46
      %p450 = pneg %p70
      %p451 = pneg %p67
      %p452 = pneg %p91
      %p453 = pneg %p88
      %p454 = pneg %p112
      %p455 = pneg %p109
      %p456 = pneg %p133
      %p457 = pneg %p130
      %p458 = pneg %p154
      %p459 = pneg %p151
      %p460 = pneg %p175
      %p461 = pneg %p172
      %p462 = pneg %p196
      %p463 = pneg %p193
      %p464 = pneg %p217
      %p465 = pneg %p214
      %p466 = pneg %p238
      %p467 = pneg %p235
      %p468 = pneg %p259
      %p469 = pneg %p256
      %p470 = pneg %p280
      %p471 = pneg %p277
      %p472 = pneg %p301
      %p473 = pneg %p298
      %p474 = pneg %p322
      %p475 = pneg %p319
      %p476 = pneg %p343
      %p477 = pneg %p340
      %p478 = pneg %p369
      %p479 = pneg %p366
      %p480 = scmp.lt.s32.totalorder %s28, 1
      %s481 = scalar_select %p480, %s28, 1
      %s482 = smul.addr %s481, 8
      %s483 = scalar_lea.vmem %s15, %s482
      %p484 = scmp.lt.s32.totalorder %s28, 1
      %s485 = scalar_select %p484, %s28, 1
      %s486 = smul.addr %s485, 8
      %s487 = scalar_lea.vmem %s0, %s486
      %p488 = scmp.lt.s32.totalorder %s28, 1
      %s489 = scalar_select %p488, %s28, 1
      %s490 = smul.addr %s489, 8
      %s491 = scalar_lea.vmem %s15, %s490
      %v492 = vld [vmem:[%s487] sm:$0xff]
      %vm493 = vcmask 261120
      %494 = vst.msk [vmem:[#allocation2] sm:$0xff] %vm493, 0.0
      %vm495 = vcmask 254976
      %496 = vst.msk [vmem:[#allocation2 + $0x8] sm:$0x3] %vm495, 0.0
      %497 = vst.msk [vmem:[#allocation2 + $0x1] sm:$0xff] %vm493, %v492
      %v498 = vld [vmem:[#allocation2] sm:$0xff]
      %v499 = vld [vmem:[#allocation2 + $0x8] sm:$0x3]
      %v500 = vld [vmem:[%s1] sm:$0xff]
      %v501 = vld [vmem:[%s1 + $0x8] sm:$0xff]
      %v502 = vld [vmem:[%s1 + $0x10] sm:$0xff]
      %v503 = vld [vmem:[%s1 + $0x18] sm:$0xff]
      %s504 = scalar_lea.vmem %s1, 32
      %v505 = vld [vmem:[%s504] sm:$0xff]
      %v506 = vld [vmem:[%s504 + $0x8] sm:$0xff]
      %v507 = vld [vmem:[%s504 + $0x10] sm:$0xff]
      %v508 = vld [vmem:[%s504 + $0x18] sm:$0xff]
      %vm511 = vcmask 1046528
      %v512 = vrot.slane %v498, 1
      %v513 = vrot.slane %v499, 1
      %v514 = vsel %vm511, %v512, %v513
      %v515 = vsel %vm493, %v514, 0
      %517 = vmatprep.subr.mxu0 0.0
      %518 = vmatpush1.msra.mxu0 %v505
      %519 = vmatprep.subr.mxu0 0.0
      %520 = vmatpush1.msra.mxu0 %v506
      %521 = vmatprep.subr.mxu0 0.0
      %522 = vmatpush1.msra.mxu0 %v507
      %523 = vmatprep.subr.mxu0 0.0
      %524 = vmatpush1.msra.mxu0 %v508
      %525 = vmatprep.subr.mxu0 0.0
      %526 = vmatpush1.msra.mxu0 0.0
      %527 = vmatprep.subr.mxu0 0.0
      %528 = vmatpush1.msra.mxu0 0.0
      %529 = vmatprep.subr.mxu0 0.0
      %530 = vmatpush1.msra.mxu0 0.0
      %531 = vmatprep.subr.mxu0 0.0
      %532 = vmatpush1.msra.mxu0 0.0
      %533 = vmatprep.subr.mxu0 0.0
      %534 = vmatpush1.msra.mxu0 0.0
      %535 = vmatprep.subr.mxu0 0.0
      %536 = vmatpush1.msra.mxu0 0.0
      %537 = vmatprep.subr.mxu0 0.0
      %538 = vmatpush1.msra.mxu0 0.0
      %539 = vmatprep.subr.mxu0 0.0
      %540 = vmatpush1.msra.mxu0 0.0
      %541 = vmatprep.subr.mxu0 0.0
      %542 = vmatpush1.msra.mxu0 0.0
      %543 = vmatprep.subr.mxu0 0.0
      %544 = vmatpush1.msra.mxu0 0.0
      %545 = vmatprep.subr.mxu0 0.0
      %546 = vmatpush1.msra.mxu0 0.0
      %547 = vmatprep.subr.mxu0 0.0
      %548 = vmatpush1.msra.mxu0 0.0
      %549 = vmatprep.subr.mxu0 0.0
      %550 = vmatpush1.msra.mxu0 0.0
      %551 = vmatprep.subr.mxu0 0.0
      %552 = vmatpush1.msra.mxu0 0.0
      %553 = vmatprep.subr.mxu0 0.0
      %554 = vmatpush1.msra.mxu0 0.0
      %555 = vmatprep.subr.mxu0 0.0
      %556 = vmatpush1.msra.mxu0 0.0
      %557 = vmatprep.subr.mxu0 0.0
      %558 = vmatpush1.msra.mxu0 0.0
      %559 = vmatprep.subr.mxu0 0.0
      %560 = vmatpush1.msra.mxu0 0.0
      %561 = vmatprep.subr.mxu0 0.0
      %562 = vmatpush1.msra.mxu0 0.0
      %563 = vmatprep.subr.mxu0 0.0
      %564 = vmatpush1.msra.mxu0 0.0
      %565 = vmatprep.subr.mxu0 0.0
      %566 = vmatpush1.msra.mxu0 0.0
      %567 = vmatprep.subr.mxu0 0.0
      %568 = vmatpush1.msra.mxu0 0.0
      %569 = vmatprep.subr.mxu0 0.0
      %570 = vmatpush1.msra.mxu0 0.0
      %571 = vmatprep.subr.mxu0 0.0
      %572 = vmatpush1.msra.mxu0 0.0
      %573 = vmatprep.subr.mxu0 0.0
      %574 = vmatpush1.msra.mxu0 0.0
      %575 = vmatprep.subr.mxu0 0.0
      %576 = vmatpush1.msra.mxu0 0.0
      %577 = vmatprep.subr.mxu0 0.0
      %578 = vmatpush1.msra.mxu0 0.0
      %579 = vmatprep.subr.mxu0 0.0
      %580 = vmatpush1.msra.mxu0 0.0
      %581 = vmatprep.mubr.f32.mxu0 0.0
      %582 = vmatmul.mubr.f32.gmra.mrb[0].mxu0 %v515
      %v583 = vpop.f32.mrb[0].mxu0
      %v584 = vadd.f32 0.0, %v583
      %v585 = vpop.f32.mrb[0].mxu0
      %586 = vdwg.mxu0
      %v587 = vsel %vm493, %v498, 0
      %589 = vmatprep.subr.mxu0 0.0
      %590 = vmatpush1.msra.mxu0 %v500
      %591 = vmatprep.subr.mxu0 0.0
      %592 = vmatpush1.msra.mxu0 %v501
      %593 = vmatprep.subr.mxu0 0.0
      %594 = vmatpush1.msra.mxu0 %v502
      %595 = vmatprep.subr.mxu0 0.0
      %596 = vmatpush1.msra.mxu0 %v503
      %597 = vmatprep.subr.mxu0 0.0
      %598 = vmatpush1.msra.mxu0 0.0
      %599 = vmatprep.subr.mxu0 0.0
      %600 = vmatpush1.msra.mxu0 0.0
      %601 = vmatprep.subr.mxu0 0.0
      %602 = vmatpush1.msra.mxu0 0.0
      %603 = vmatprep.subr.mxu0 0.0
      %604 = vmatpush1.msra.mxu0 0.0
      %605 = vmatprep.subr.mxu0 0.0
      %606 = vmatpush1.msra.mxu0 0.0
      %607 = vmatprep.subr.mxu0 0.0
      %608 = vmatpush1.msra.mxu0 0.0
      %609 = vmatprep.subr.mxu0 0.0
      %610 = vmatpush1.msra.mxu0 0.0
      %611 = vmatprep.subr.mxu0 0.0
      %612 = vmatpush1.msra.mxu0 0.0
      %613 = vmatprep.subr.mxu0 0.0
      %614 = vmatpush1.msra.mxu0 0.0
      %615 = vmatprep.subr.mxu0 0.0
      %616 = vmatpush1.msra.mxu0 0.0
      %617 = vmatprep.subr.mxu0 0.0
      %618 = vmatpush1.msra.mxu0 0.0
      %619 = vmatprep.subr.mxu0 0.0
      %620 = vmatpush1.msra.mxu0 0.0
      %621 = vmatprep.subr.mxu0 0.0
      %622 = vmatpush1.msra.mxu0 0.0
      %623 = vmatprep.subr.mxu0 0.0
      %624 = vmatpush1.msra.mxu0 0.0
      %625 = vmatprep.subr.mxu0 0.0
      %626 = vmatpush1.msra.mxu0 0.0
      %627 = vmatprep.subr.mxu0 0.0
      %628 = vmatpush1.msra.mxu0 0.0
      %629 = vmatprep.subr.mxu0 0.0
      %630 = vmatpush1.msra.mxu0 0.0
      %631 = vmatprep.subr.mxu0 0.0
      %632 = vmatpush1.msra.mxu0 0.0
      %633 = vmatprep.subr.mxu0 0.0
      %634 = vmatpush1.msra.mxu0 0.0
      %635 = vmatprep.subr.mxu0 0.0
      %636 = vmatpush1.msra.mxu0 0.0
      %637 = vmatprep.subr.mxu0 0.0
      %638 = vmatpush1.msra.mxu0 0.0
      %639 = vmatprep.subr.mxu0 0.0
      %640 = vmatpush1.msra.mxu0 0.0
      %641 = vmatprep.subr.mxu0 0.0
      %642 = vmatpush1.msra.mxu0 0.0
      %643 = vmatprep.subr.mxu0 0.0
      %644 = vmatpush1.msra.mxu0 0.0
      %645 = vmatprep.subr.mxu0 0.0
      %646 = vmatpush1.msra.mxu0 0.0
      %647 = vmatprep.subr.mxu0 0.0
      %648 = vmatpush1.msra.mxu0 0.0
      %649 = vmatprep.subr.mxu0 0.0
      %650 = vmatpush1.msra.mxu0 0.0
      %651 = vmatprep.subr.mxu0 0.0
      %652 = vmatpush1.msra.mxu0 0.0
      %653 = vmatprep.mubr.f32.mxu0 0.0
      %654 = vmatmul.mubr.f32.gmra.mrb[0].mxu0 %v587
      %v655 = vpop.f32.mrb[0].mxu0
      %v656 = vadd.f32 %v584, %v655
      %v657 = vpop.f32.mrb[0].mxu0
      %658 = vdwg.mxu0
      %s659 = scalar_lea.vmem %s1, 64
      %v660 = vld [vmem:[%s659] sm:$0xff]
      %v661 = vld [vmem:[%s659 + $0x8] sm:$0xff]
      %v662 = vld [vmem:[%s659 + $0x10] sm:$0xff]
      %v663 = vld [vmem:[%s659 + $0x18] sm:$0xff]
      %vm664 = vcmask 1045504
      %v665 = vrot.slane %v498, 2
      %v666 = vrot.slane %v499, 2
      %v667 = vsel %vm664, %v665, %v666
      %v668 = vsel %vm493, %v667, 0
      %670 = vmatprep.subr.mxu0 0.0
      %671 = vmatpush1.msra.mxu0 %v660
      %672 = vmatprep.subr.mxu0 0.0
      %673 = vmatpush1.msra.mxu0 %v661
      %674 = vmatprep.subr.mxu0 0.0
      %675 = vmatpush1.msra.mxu0 %v662
      %676 = vmatprep.subr.mxu0 0.0
      %677 = vmatpush1.msra.mxu0 %v663
      %678 = vmatprep.subr.mxu0 0.0
      %679 = vmatpush1.msra.mxu0 0.0
      %680 = vmatprep.subr.mxu0 0.0
      %681 = vmatpush1.msra.mxu0 0.0
      %682 = vmatprep.subr.mxu0 0.0
      %683 = vmatpush1.msra.mxu0 0.0
      %684 = vmatprep.subr.mxu0 0.0
      %685 = vmatpush1.msra.mxu0 0.0
      %686 = vmatprep.subr.mxu0 0.0
      %687 = vmatpush1.msra.mxu0 0.0
      %688 = vmatprep.subr.mxu0 0.0
      %689 = vmatpush1.msra.mxu0 0.0
      %690 = vmatprep.subr.mxu0 0.0
      %691 = vmatpush1.msra.mxu0 0.0
      %692 = vmatprep.subr.mxu0 0.0
      %693 = vmatpush1.msra.mxu0 0.0
      %694 = vmatprep.subr.mxu0 0.0
      %695 = vmatpush1.msra.mxu0 0.0
      %696 = vmatprep.subr.mxu0 0.0
      %697 = vmatpush1.msra.mxu0 0.0
      %698 = vmatprep.subr.mxu0 0.0
      %699 = vmatpush1.msra.mxu0 0.0
      %700 = vmatprep.subr.mxu0 0.0
      %701 = vmatpush1.msra.mxu0 0.0
      %702 = vmatprep.subr.mxu0 0.0
      %703 = vmatpush1.msra.mxu0 0.0
      %704 = vmatprep.subr.mxu0 0.0
      %705 = vmatpush1.msra.mxu0 0.0
      %706 = vmatprep.subr.mxu0 0.0
      %707 = vmatpush1.msra.mxu0 0.0
      %708 = vmatprep.subr.mxu0 0.0
      %709 = vmatpush1.msra.mxu0 0.0
      %710 = vmatprep.subr.mxu0 0.0
      %711 = vmatpush1.msra.mxu0 0.0
      %712 = vmatprep.subr.mxu0 0.0
      %713 = vmatpush1.msra.mxu0 0.0
      %714 = vmatprep.subr.mxu0 0.0
      %715 = vmatpush1.msra.mxu0 0.0
      %716 = vmatprep.subr.mxu0 0.0
      %717 = vmatpush1.msra.mxu0 0.0
      %718 = vmatprep.subr.mxu0 0.0
      %719 = vmatpush1.msra.mxu0 0.0
      %720 = vmatprep.subr.mxu0 0.0
      %721 = vmatpush1.msra.mxu0 0.0
      %722 = vmatprep.subr.mxu0 0.0
      %723 = vmatpush1.msra.mxu0 0.0
      %724 = vmatprep.subr.mxu0 0.0
      %725 = vmatpush1.msra.mxu0 0.0
      %726 = vmatprep.subr.mxu0 0.0
      %727 = vmatpush1.msra.mxu0 0.0
      %728 = vmatprep.subr.mxu0 0.0
      %729 = vmatpush1.msra.mxu0 0.0
      %730 = vmatprep.subr.mxu0 0.0
      %731 = vmatpush1.msra.mxu0 0.0
      %732 = vmatprep.subr.mxu0 0.0
      %733 = vmatpush1.msra.mxu0 0.0
      %734 = vmatprep.mubr.f32.mxu0 0.0
      %735 = vmatmul.mubr.f32.gmra.mrb[0].mxu0 %v668
      %v736 = vpop.f32.mrb[0].mxu0
      %v737 = vadd.f32 0.0, %v736
      %v738 = vpop.f32.mrb[0].mxu0
      %739 = vdwg.mxu0
      %v740 = vadd.f32 %v656, %v737
      %v741 = vld [vmem:[%s2] sm:$0x1]
      %v743 = vlaneseq
      %v744 = vshrl.u32 %v743, 7
      %v745 = vsub.s32 0, %v744
      %v746 = vrot.slane %v741, %v745
      %v748 = vadd.f32 %v740, %v746
      %v749 = vmax.f32 %v748, 0.0
      %vm750 = vcmask 392192
      %751 = vst.msk [vmem:[#allocation3] sm:$0xff] %vm750, 0.0
      %vm752 = vcmask 386048
      %753 = vst.msk [vmem:[#allocation3 + $0x8] sm:$0x3] %vm752, 0.0
      %754 = vst.msk [vmem:[#allocation3 + $0x1] sm:$0xff] %vm750, %v749
      %v755 = vld [vmem:[#allocation3] sm:$0xff]
      %v756 = vld [vmem:[#allocation3 + $0x8] sm:$0x3]
      %v757 = vld [vmem:[%s3] sm:$0xff]
      %v758 = vld [vmem:[%s3 + $0x8] sm:$0xff]
      %v759 = vld [vmem:[%s3 + $0x10] sm:$0xff]
      %v760 = vld [vmem:[%s3 + $0x18] sm:$0xff]
      %v761 = vld [vmem:[%s3 + $0x20] sm:$0xff]
      %v762 = vld [vmem:[%s3 + $0x28] sm:$0xff]
      %s763 = scalar_lea.vmem %s3, 48
      %v764 = vld [vmem:[%s763] sm:$0xff]
      %v765 = vld [vmem:[%s763 + $0x8] sm:$0xff]
      %v766 = vld [vmem:[%s763 + $0x10] sm:$0xff]
      %v767 = vld [vmem:[%s763 + $0x18] sm:$0xff]
      %v768 = vld [vmem:[%s763 + $0x20] sm:$0xff]
      %v769 = vld [vmem:[%s763 + $0x28] sm:$0xff]
      %v772 = vrot.slane %v755, 1
      %v773 = vrot.slane %v756, 1
      %v774 = vsel %vm511, %v772, %v773
      %v775 = vsel %vm750, %v774, 0
      %777 = vmatprep.subr.mxu0 0.0
      %778 = vmatpush1.msra.mxu0 %v764
      %779 = vmatprep.subr.mxu0 0.0
      %780 = vmatpush1.msra.mxu0 %v765
      %781 = vmatprep.subr.mxu0 0.0
      %782 = vmatpush1.msra.mxu0 %v766
      %783 = vmatprep.subr.mxu0 0.0
      %784 = vmatpush1.msra.mxu0 %v767
      %785 = vmatprep.subr.mxu0 0.0
      %786 = vmatpush1.msra.mxu0 %v768
      %787 = vmatprep.subr.mxu0 0.0
      %788 = vmatpush1.msra.mxu0 %v769
      %789 = vmatprep.subr.mxu0 0.0
      %790 = vmatpush1.msra.mxu0 0.0
      %791 = vmatprep.subr.mxu0 0.0
      %792 = vmatpush1.msra.mxu0 0.0
      %793 = vmatprep.subr.mxu0 0.0
      %794 = vmatpush1.msra.mxu0 0.0
      %795 = vmatprep.subr.mxu0 0.0
      %796 = vmatpush1.msra.mxu0 0.0
      %797 = vmatprep.subr.mxu0 0.0
      %798 = vmatpush1.msra.mxu0 0.0
      %799 = vmatprep.subr.mxu0 0.0
      %800 = vmatpush1.msra.mxu0 0.0
      %801 = vmatprep.subr.mxu0 0.0
      %802 = vmatpush1.msra.mxu0 0.0
      %803 = vmatprep.subr.mxu0 0.0
      %804 = vmatpush1.msra.mxu0 0.0
      %805 = vmatprep.subr.mxu0 0.0
      %806 = vmatpush1.msra.mxu0 0.0
      %807 = vmatprep.subr.mxu0 0.0
      %808 = vmatpush1.msra.mxu0 0.0
      %809 = vmatprep.subr.mxu0 0.0
      %810 = vmatpush1.msra.mxu0 0.0
      %811 = vmatprep.subr.mxu0 0.0
      %812 = vmatpush1.msra.mxu0 0.0
      %813 = vmatprep.subr.mxu0 0.0
      %814 = vmatpush1.msra.mxu0 0.0
      %815 = vmatprep.subr.mxu0 0.0
      %816 = vmatpush1.msra.mxu0 0.0
      %817 = vmatprep.subr.mxu0 0.0
      %818 = vmatpush1.msra.mxu0 0.0
      %819 = vmatprep.subr.mxu0 0.0
      %820 = vmatpush1.msra.mxu0 0.0
      %821 = vmatprep.subr.mxu0 0.0
      %822 = vmatpush1.msra.mxu0 0.0
      %823 = vmatprep.subr.mxu0 0.0
      %824 = vmatpush1.msra.mxu0 0.0
      %825 = vmatprep.subr.mxu0 0.0
      %826 = vmatpush1.msra.mxu0 0.0
      %827 = vmatprep.subr.mxu0 0.0
      %828 = vmatpush1.msra.mxu0 0.0
      %829 = vmatprep.subr.mxu0 0.0
      %830 = vmatpush1.msra.mxu0 0.0
      %831 = vmatprep.subr.mxu0 0.0
      %832 = vmatpush1.msra.mxu0 0.0
      %833 = vmatprep.subr.mxu0 0.0
      %834 = vmatpush1.msra.mxu0 0.0
      %835 = vmatprep.subr.mxu0 0.0
      %836 = vmatpush1.msra.mxu0 0.0
      %837 = vmatprep.subr.mxu0 0.0
      %838 = vmatpush1.msra.mxu0 0.0
      %839 = vmatprep.subr.mxu0 0.0
      %840 = vmatpush1.msra.mxu0 0.0
      %841 = vmatprep.mubr.f32.mxu0 0.0
      %842 = vmatmul.mubr.f32.gmra.mrb[0].mxu0 %v775
      %v843 = vpop.f32.mrb[0].mxu0
      %v844 = vadd.f32 0.0, %v843
      %v845 = vpop.f32.mrb[0].mxu0
      %846 = vdwg.mxu0
      %v847 = vsel %vm750, %v755, 0
      %849 = vmatprep.subr.mxu0 0.0
      %850 = vmatpush1.msra.mxu0 %v757
      %851 = vmatprep.subr.mxu0 0.0
      %852 = vmatpush1.msra.mxu0 %v758
      %853 = vmatprep.subr.mxu0 0.0
      %854 = vmatpush1.msra.mxu0 %v759
      %855 = vmatprep.subr.mxu0 0.0
      %856 = vmatpush1.msra.mxu0 %v760
      %857 = vmatprep.subr.mxu0 0.0
      %858 = vmatpush1.msra.mxu0 %v761
      %859 = vmatprep.subr.mxu0 0.0
      %860 = vmatpush1.msra.mxu0 %v762
      %861 = vmatprep.subr.mxu0 0.0
      %862 = vmatpush1.msra.mxu0 0.0
      %863 = vmatprep.subr.mxu0 0.0
      %864 = vmatpush1.msra.mxu0 0.0
      %865 = vmatprep.subr.mxu0 0.0
      %866 = vmatpush1.msra.mxu0 0.0
      %867 = vmatprep.subr.mxu0 0.0
      %868 = vmatpush1.msra.mxu0 0.0
      %869 = vmatprep.subr.mxu0 0.0
      %870 = vmatpush1.msra.mxu0 0.0
      %871 = vmatprep.subr.mxu0 0.0
      %872 = vmatpush1.msra.mxu0 0.0
      %873 = vmatprep.subr.mxu0 0.0
      %874 = vmatpush1.msra.mxu0 0.0
      %875 = vmatprep.subr.mxu0 0.0
      %876 = vmatpush1.msra.mxu0 0.0
      %877 = vmatprep.subr.mxu0 0.0
      %878 = vmatpush1.msra.mxu0 0.0
      %879 = vmatprep.subr.mxu0 0.0
      %880 = vmatpush1.msra.mxu0 0.0
      %881 = vmatprep.subr.mxu0 0.0
      %882 = vmatpush1.msra.mxu0 0.0
      %883 = vmatprep.subr.mxu0 0.0
      %884 = vmatpush1.msra.mxu0 0.0
      %885 = vmatprep.subr.mxu0 0.0
      %886 = vmatpush1.msra.mxu0 0.0
      %887 = vmatprep.subr.mxu0 0.0
      %888 = vmatpush1.msra.mxu0 0.0
      %889 = vmatprep.subr.mxu0 0.0
      %890 = vmatpush1.msra.mxu0 0.0
      %891 = vmatprep.subr.mxu0 0.0
      %892 = vmatpush1.msra.mxu0 0.0
      %893 = vmatprep.subr.mxu0 0.0
      %894 = vmatpush1.msra.mxu0 0.0
      %895 = vmatprep.subr.mxu0 0.0
      %896 = vmatpush1.msra.mxu0 0.0
      %897 = vmatprep.subr.mxu0 0.0
      %898 = vmatpush1.msra.mxu0 0.0
      %899 = vmatprep.subr.mxu0 0.0
      %900 = vmatpush1.msra.mxu0 0.0
      %901 = vmatprep.subr.mxu0 0.0
      %902 = vmatpush1.msra.mxu0 0.0
      %903 = vmatprep.subr.mxu0 0.0
      %904 = vmatpush1.msra.mxu0 0.0
      %905 = vmatprep.subr.mxu0 0.0
      %906 = vmatpush1.msra.mxu0 0.0
      %907 = vmatprep.subr.mxu0 0.0
      %908 = vmatpush1.msra.mxu0 0.0
      %909 = vmatprep.subr.mxu0 0.0
      %910 = vmatpush1.msra.mxu0 0.0
      %911 = vmatprep.subr.mxu0 0.0
      %912 = vmatpush1.msra.mxu0 0.0
      %913 = vmatprep.mubr.f32.mxu0 0.0
      %914 = vmatmul.mubr.f32.gmra.mrb[0].mxu0 %v847
      %v915 = vpop.f32.mrb[0].mxu0
      %v916 = vadd.f32 %v844, %v915
      %v917 = vpop.f32.mrb[0].mxu0
      %918 = vdwg.mxu0
      %s919 = scalar_lea.vmem %s3, 96
      %v920 = vld [vmem:[%s919] sm:$0xff]
      %v921 = vld [vmem:[%s919 + $0x8] sm:$0xff]
      %v922 = vld [vmem:[%s919 + $0x10] sm:$0xff]
      %v923 = vld [vmem:[%s919 + $0x18] sm:$0xff]
      %v924 = vld [vmem:[%s919 + $0x20] sm:$0xff]
      %v925 = vld [vmem:[%s919 + $0x28] sm:$0xff]
      %v926 = vrot.slane %v755, 2
      %v927 = vrot.slane %v756, 2
      %v928 = vsel %vm664, %v926, %v927
      %v929 = vsel %vm750, %v928, 0
      %931 = vmatprep.subr.mxu0 0.0
      %932 = vmatpush1.msra.mxu0 %v920
      %933 = vmatprep.subr.mxu0 0.0
      %934 = vmatpush1.msra.mxu0 %v921
      %935 = vmatprep.subr.mxu0 0.0
      %936 = vmatpush1.msra.mxu0 %v922
      %937 = vmatprep.subr.mxu0 0.0
      %938 = vmatpush1.msra.mxu0 %v923
      %939 = vmatprep.subr.mxu0 0.0
      %940 = vmatpush1.msra.mxu0 %v924
      %941 = vmatprep.subr.mxu0 0.0
      %942 = vmatpush1.msra.mxu0 %v925
      %943 = vmatprep.subr.mxu0 0.0
      %944 = vmatpush1.msra.mxu0 0.0
      %945 = vmatprep.subr.mxu0 0.0
      %946 = vmatpush1.msra.mxu0 0.0
      %947 = vmatprep.subr.mxu0 0.0
      %948 = vmatpush1.msra.mxu0 0.0
      %949 = vmatprep.subr.mxu0 0.0
      %950 = vmatpush1.msra.mxu0 0.0
      %951 = vmatprep.subr.mxu0 0.0
      %952 = vmatpush1.msra.mxu0 0.0
      %953 = vmatprep.subr.mxu0 0.0
      %954 = vmatpush1.msra.mxu0 0.0
      %955 = vmatprep.subr.mxu0 0.0
      %956 = vmatpush1.msra.mxu0 0.0
      %957 = vmatprep.subr.mxu0 0.0
      %958 = vmatpush1.msra.mxu0 0.0
      %959 = vmatprep.subr.mxu0 0.0
      %960 = vmatpush1.msra.mxu0 0.0
      %961 = vmatprep.subr.mxu0 0.0
      %962 = vmatpush1.msra.mxu0 0.0
      %963 = vmatprep.subr.mxu0 0.0
      %964 = vmatpush1.msra.mxu0 0.0
      %965 = vmatprep.subr.mxu0 0.0
      %966 = vmatpush1.msra.mxu0 0.0
      %967 = vmatprep.subr.mxu0 0.0
      %968 = vmatpush1.msra.mxu0 0.0
      %969 = vmatprep.subr.mxu0 0.0
      %970 = vmatpush1.msra.mxu0 0.0
      %971 = vmatprep.subr.mxu0 0.0
      %972 = vmatpush1.msra.mxu0 0.0
      %973 = vmatprep.subr.mxu0 0.0
      %974 = vmatpush1.msra.mxu0 0.0
      %975 = vmatprep.subr.mxu0 0.0
      %976 = vmatpush1.msra.mxu0 0.0
      %977 = vmatprep.subr.mxu0 0.0
      %978 = vmatpush1.msra.mxu0 0.0
      %979 = vmatprep.subr.mxu0 0.0
      %980 = vmatpush1.msra.mxu0 0.0
      %981 = vmatprep.subr.mxu0 0.0
      %982 = vmatpush1.msra.mxu0 0.0
      %983 = vmatprep.subr.mxu0 0.0
      %984 = vmatpush1.msra.mxu0 0.0
      %985 = vmatprep.subr.mxu0 0.0
      %986 = vmatpush1.msra.mxu0 0.0
      %987 = vmatprep.subr.mxu0 0.0
      %988 = vmatpush1.msra.mxu0 0.0
      %989 = vmatprep.subr.mxu0 0.0
      %990 = vmatpush1.msra.mxu0 0.0
      %991 = vmatprep.subr.mxu0 0.0
      %992 = vmatpush1.msra.mxu0 0.0
      %993 = vmatprep.subr.mxu0 0.0
      %994 = vmatpush1.msra.mxu0 0.0
      %995 = vmatprep.mubr.f32.mxu0 0.0
      %996 = vmatmul.mubr.f32.gmra.mrb[0].mxu0 %v929
      %v997 = vpop.f32.mrb[0].mxu0
      %v998 = vadd.f32 0.0, %v997
      %v999 = vpop.f32.mrb[0].mxu0
      %1000 = vdwg.mxu0
      %v1001 = vadd.f32 %v916, %v998
      %v1002 = vld [vmem:[%s4] sm:$0x1]
      %v1004 = vlaneseq
      %v1005 = vshrl.u32 %v1004, 7
      %v1006 = vsub.s32 0, %v1005
      %v1007 = vrot.slane %v1002, %v1006
      %v1009 = vadd.f32 %v1001, %v1007
      %v1010 = vmax.f32 %v1009, 0.0
      %v1011 = vld [vmem:[%s5] sm:$0x1]
      %v1012 = vld [vmem:[%s6] sm:$0x1]
      %v1013 = vsel %vm493, %v1010, 0.0
      %1014 = vadd.xlane.f32.xlu0 %v1013
      %v1015 = vpop.xlane.xlu0 %1014
      %v1016 = vrcp.pop 32.0
      %v1017 = vmul.f32 %v1015, %v1016
      %v1018 = vsub.f32 %v1010, %v1017
      %v1019 = vmul.f32 %v1018, %v1018
      %v1020 = vsel %vm493, %v1019, 0.0
      %1021 = vadd.xlane.f32.xlu0 %v1020
      %v1022 = vpop.xlane.xlu0 %1021
      %v1023 = vmul.f32 %v1022, %v1016
      %v1024 = vadd.f32 %v1023, 1e-05
      %v1025 = vrsqrt.pop %v1024
      %v1026 = vmul.f32 %v1018, %v1025
      %v1028 = vlaneseq
      %v1029 = vshrl.u32 %v1028, 7
      %v1030 = vsub.s32 0, %v1029
      %v1031 = vrot.slane %v1011, %v1030
      %v1033 = vmul.f32 %v1026, %v1031
      %v1035 = vlaneseq
      %v1036 = vshrl.u32 %v1035, 7
      %v1037 = vsub.s32 0, %v1036
      %v1038 = vrot.slane %v1012, %v1037
      %v1040 = vadd.f32 %v1033, %v1038
      %1041 = vst.msk [vmem:[#allocation2] sm:$0xff] %vm493, 0.0
      %1042 = vst.msk [vmem:[#allocation2 + $0x8] sm:$0x3] %vm495, 0.0
      %1043 = vst.msk [vmem:[#allocation2 + $0x1] sm:$0xff] %vm493, %v1040
      %v1044 = vld [vmem:[#allocation2] sm:$0xff]
      %v1045 = vld [vmem:[#allocation2 + $0x8] sm:$0x3]
      %v1046 = vld [vmem:[%s7] sm:$0xff]
      %v1047 = vld [vmem:[%s7 + $0x8] sm:$0xff]
      %v1048 = vld [vmem:[%s7 + $0x10] sm:$0xff]
      %v1049 = vld [vmem:[%s7 + $0x18] sm:$0xff]
      %s1050 = scalar_lea.vmem %s7, 32
      %v1051 = vld [vmem:[%s1050] sm:$0xff]
      %v1052 = vld [vmem:[%s1050 + $0x8] sm:$0xff]
      %v1053 = vld [vmem:[%s1050 + $0x10] sm:$0xff]
      %v1054 = vld [vmem:[%s1050 + $0x18] sm:$0xff]
      %v1057 = vrot.slane %v1044, 1
      %v1058 = vrot.slane %v1045, 1
      %v1059 = vsel %vm511, %v1057, %v1058
      %v1060 = vsel %vm493, %v1059, 0
      %1062 = vmatprep.subr.mxu0 0.0
      %1063 = vmatpush1.msra.mxu0 %v1051
      %1064 = vmatprep.subr.mxu0 0.0
      %1065 = vmatpush1.msra.mxu0 %v1052
      %1066 = vmatprep.subr.mxu0 0.0
      %1067 = vmatpush1.msra.mxu0 %v1053
      %1068 = vmatprep.subr.mxu0 0.0
      %1069 = vmatpush1.msra.mxu0 %v1054
      %1070 = vmatprep.subr.mxu0 0.0
      %1071 = vmatpush1.msra.mxu0 0.0
      %1072 = vmatprep.subr.mxu0 0.0
      %1073 = vmatpush1.msra.mxu0 0.0
      %1074 = vmatprep.subr.mxu0 0.0
      %1075 = vmatpush1.msra.mxu0 0.0
      %1076 = vmatprep.subr.mxu0 0.0
      %1077 = vmatpush1.msra.mxu0 0.0
      %1078 = vmatprep.subr.mxu0 0.0
      %1079 = vmatpush1.msra.mxu0 0.0
      %1080 = vmatprep.subr.mxu0 0.0
      %1081 = vmatpush1.msra.mxu0 0.0
      %1082 = vmatprep.subr.mxu0 0.0
      %1083 = vmatpush1.msra.mxu0 0.0
      %1084 = vmatprep.subr.mxu0 0.0
      %1085 = vmatpush1.msra.mxu0 0.0
      %1086 = vmatprep.subr.mxu0 0.0
      %1087 = vmatpush1.msra.mxu0 0.0
      %1088 = vmatprep.subr.mxu0 0.0
      %1089 = vmatpush1.msra.mxu0 0.0
      %1090 = vmatprep.subr.mxu0 0.0
      %1091 = vmatpush1.msra.mxu0 0.0
      %1092 = vmatprep.subr.mxu0 0.0
      %1093 = vmatpush1.msra.mxu0 0.0
      %1094 = vmatprep.subr.mxu0 0.0
      %1095 = vmatpush1.msra.mxu0 0.0
      %1096 = vmatprep.subr.mxu0 0.0
      %1097 = vmatpush1.msra.mxu0 0.0
      %1098 = vmatprep.subr.mxu0 0.0
      %1099 = vmatpush1.msra.mxu0 0.0
      %1100 = vmatprep.subr.mxu0 0.0
      %1101 = vmatpush1.msra.mxu0 0.0
      %1102 = vmatprep.subr.mxu0 0.0
      %1103 = vmatpush1.msra.mxu0 0.0
      %1104 = vmatprep.subr.mxu0 0.0
      %1105 = vmatpush1.msra.mxu0 0.0
      %1106 = vmatprep.subr.mxu0 0.0
      %1107 = vmatpush1.msra.mxu0 0.0
      %1108 = vmatprep.subr.mxu0 0.0
      %1109 = vmatpush1.msra.mxu0 0.0
      %1110 = vmatprep.subr.mxu0 0.0
      %1111 = vmatpush1.msra.mxu0 0.0
      %1112 = vmatprep.subr.mxu0 0.0
      %1113 = vmatpush1.msra.mxu0 0.0
      %1114 = vmatprep.subr.mxu0 0.0
      %1115 = vmatpush1.msra.mxu0 0.0
      %1116 = vmatprep.subr.mxu0 0.0
      %1117 = vmatpush1.msra.mxu0 0.0
      %1118 = vmatprep.subr.mxu0 0.0
      %1119 = vmatpush1.msra.mxu0 0.0
      %1120 = vmatprep.subr.mxu0 0.0
      %1121 = vmatpush1.msra.mxu0 0.0
      %1122 = vmatprep.subr.mxu0 0.0
      %1123 = vmatpush1.msra.mxu0 0.0
      %1124 = vmatprep.subr.mxu0 0.0
      %1125 = vmatpush1.msra.mxu0 0.0
      %1126 = vmatprep.mubr.f32.mxu0 0.0
      %1127 = vmatmul.mubr.f32.gmra.mrb[0].mxu0 %v1060
      %v1128 = vpop.f32.mrb[0].mxu0
      %v1129 = vadd.f32 0.0, %v1128
      %v1130 = vpop.f32.mrb[0].mxu0
      %1131 = vdwg.mxu0
      %v1132 = vsel %vm493, %v1044, 0
      %1134 = vmatprep.subr.mxu0 0.0
      %1135 = vmatpush1.msra.mxu0 %v1046
      %1136 = vmatprep.subr.mxu0 0.0
      %1137 = vmatpush1.msra.mxu0 %v1047
      %1138 = vmatprep.subr.mxu0 0.0
      %1139 = vmatpush1.msra.mxu0 %v1048
      %1140 = vmatprep.subr.mxu0 0.0
      %1141 = vmatpush1.msra.mxu0 %v1049
      %1142 = vmatprep.subr.mxu0 0.0
      %1143 = vmatpush1.msra.mxu0 0.0
      %1144 = vmatprep.subr.mxu0 0.0
      %1145 = vmatpush1.msra.mxu0 0.0
      %1146 = vmatprep.subr.mxu0 0.0
      %1147 = vmatpush1.msra.mxu0 0.0
      %1148 = vmatprep.subr.mxu0 0.0
      %1149 = vmatpush1.msra.mxu0 0.0
      %1150 = vmatprep.subr.mxu0 0.0
      %1151 = vmatpush1.msra.mxu0 0.0
      %1152 = vmatprep.subr.mxu0 0.0
      %1153 = vmatpush1.msra.mxu0 0.0
      %1154 = vmatprep.subr.mxu0 0.0
      %1155 = vmatpush1.msra.mxu0 0.0
      %1156 = vmatprep.subr.mxu0 0.0
      %1157 = vmatpush1.msra.mxu0 0.0
      %1158 = vmatprep.subr.mxu0 0.0
      %1159 = vmatpush1.msra.mxu0 0.0
      %1160 = vmatprep.subr.mxu0 0.0
      %1161 = vmatpush1.msra.mxu0 0.0
      %1162 = vmatprep.subr.mxu0 0.0
      %1163 = vmatpush1.msra.mxu0 0.0
      %1164 = vmatprep.subr.mxu0 0.0
      %1165 = vmatpush1.msra.mxu0 0.0
      %1166 = vmatprep.subr.mxu0 0.0
      %1167 = vmatpush1.msra.mxu0 0.0
      %1168 = vmatprep.subr.mxu0 0.0
      %1169 = vmatpush1.msra.mxu0 0.0
      %1170 = vmatprep.subr.mxu0 0.0
      %1171 = vmatpush1.msra.mxu0 0.0
      %1172 = vmatprep.subr.mxu0 0.0
      %1173 = vmatpush1.msra.mxu0 0.0
      %1174 = vmatprep.subr.mxu0 0.0
      %1175 = vmatpush1.msra.mxu0 0.0
      %1176 = vmatprep.subr.mxu0 0.0
      %1177 = vmatpush1.msra.mxu0 0.0
      %1178 = vmatprep.subr.mxu0 0.0
      %1179 = vmatpush1.msra.mxu0 0.0
      %1180 = vmatprep.subr.mxu0 0.0
      %1181 = vmatpush1.msra.mxu0 0.0
      %1182 = vmatprep.subr.mxu0 0.0
      %1183 = vmatpush1.msra.mxu0 0.0
      %1184 = vmatprep.subr.mxu0 0.0
      %1185 = vmatpush1.msra.mxu0 0.0
      %1186 = vmatprep.subr.mxu0 0.0
      %1187 = vmatpush1.msra.mxu0 0.0
      %1188 = vmatprep.subr.mxu0 0.0
      %1189 = vmatpush1.msra.mxu0 0.0
      %1190 = vmatprep.subr.mxu0 0.0
      %1191 = vmatpush1.msra.mxu0 0.0
      %1192 = vmatprep.subr.mxu0 0.0
      %1193 = vmatpush1.msra.mxu0 0.0
      %1194 = vmatprep.subr.mxu0 0.0
      %1195 = vmatpush1.msra.mxu0 0.0
      %1196 = vmatprep.subr.mxu0 0.0
      %1197 = vmatpush1.msra.mxu0 0.0
      %1198 = vmatprep.mubr.f32.mxu0 0.0
      %1199 = vmatmul.mubr.f32.gmra.mrb[0].mxu0 %v1132
      %v1200 = vpop.f32.mrb[0].mxu0
      %v1201 = vadd.f32 %v1129, %v1200
      %v1202 = vpop.f32.mrb[0].mxu0
      %1203 = vdwg.mxu0
      %s1204 = scalar_lea.vmem %s7, 64
      %v1205 = vld [vmem:[%s1204] sm:$0xff]
      %v1206 = vld [vmem:[%s1204 + $0x8] sm:$0xff]
      %v1207 = vld [vmem:[%s1204 + $0x10] sm:$0xff]
      %v1208 = vld [vmem:[%s1204 + $0x18] sm:$0xff]
      %v1209 = vrot.slane %v1044, 2
      %v1210 = vrot.slane %v1045, 2
      %v1211 = vsel %vm664, %v1209, %v1210
      %v1212 = vsel %vm493, %v1211, 0
      %1214 = vmatprep.subr.mxu0 0.0
      %1215 = vmatpush1.msra.mxu0 %v1205
      %1216 = vmatprep.subr.mxu0 0.0
      %1217 = vmatpush1.msra.mxu0 %v1206
      %1218 = vmatprep.subr.mxu0 0.0
      %1219 = vmatpush1.msra.mxu0 %v1207
      %1220 = vmatprep.subr.mxu0 0.0
      %1221 = vmatpush1.msra.mxu0 %v1208
      %1222 = vmatprep.subr.mxu0 0.0
      %1223 = vmatpush1.msra.mxu0 0.0
      %1224 = vmatprep.subr.mxu0 0.0
      %1225 = vmatpush1.msra.mxu0 0.0
      %1226 = vmatprep.subr.mxu0 0.0
      %1227 = vmatpush1.msra.mxu0 0.0
      %1228 = vmatprep.subr.mxu0 0.0
      %1229 = vmatpush1.msra.mxu0 0.0
      %1230 = vmatprep.subr.mxu0 0.0
      %1231 = vmatpush1.msra.mxu0 0.0
      %1232 = vmatprep.subr.mxu0 0.0
      %1233 = vmatpush1.msra.mxu0 0.0
      %1234 = vmatprep.subr.mxu0 0.0
      %1235 = vmatpush1.msra.mxu0 0.0
      %1236 = vmatprep.subr.mxu0 0.0
      %1237 = vmatpush1.msra.mxu0 0.0
      %1238 = vmatprep.subr.mxu0 0.0
      %1239 = vmatpush1.msra.mxu0 0.0
      %1240 = vmatprep.subr.mxu0 0.0
      %1241 = vmatpush1.msra.mxu0 0.0
      %1242 = vmatprep.subr.mxu0 0.0
      %1243 = vmatpush1.msra.mxu0 0.0
      %1244 = vmatprep.subr.mxu0 0.0
      %1245 = vmatpush1.msra.mxu0 0.0
      %1246 = vmatprep.subr.mxu0 0.0
      %1247 = vmatpush1.msra.mxu0 0.0
      %1248 = vmatprep.subr.mxu0 0.0
      %1249 = vmatpush1.msra.mxu0 0.0
      %1250 = vmatprep.subr.mxu0 0.0
      %1251 = vmatpush1.msra.mxu0 0.0
      %1252 = vmatprep.subr.mxu0 0.0
      %1253 = vmatpush1.msra.mxu0 0.0
      %1254 = vmatprep.subr.mxu0 0.0
      %1255 = vmatpush1.msra.mxu0 0.0
      %1256 = vmatprep.subr.mxu0 0.0
      %1257 = vmatpush1.msra.mxu0 0.0
      %1258 = vmatprep.subr.mxu0 0.0
      %1259 = vmatpush1.msra.mxu0 0.0
      %1260 = vmatprep.subr.mxu0 0.0
      %1261 = vmatpush1.msra.mxu0 0.0
      %1262 = vmatprep.subr.mxu0 0.0
      %1263 = vmatpush1.msra.mxu0 0.0
      %1264 = vmatprep.subr.mxu0 0.0
      %1265 = vmatpush1.msra.mxu0 0.0
      %1266 = vmatprep.subr.mxu0 0.0
      %1267 = vmatpush1.msra.mxu0 0.0
      %1268 = vmatprep.subr.mxu0 0.0
      %1269 = vmatpush1.msra.mxu0 0.0
      %1270 = vmatprep.subr.mxu0 0.0
      %1271 = vmatpush1.msra.mxu0 0.0
      %1272 = vmatprep.subr.mxu0 0.0
      %1273 = vmatpush1.msra.mxu0 0.0
      %1274 = vmatprep.subr.mxu0 0.0
      %1275 = vmatpush1.msra.mxu0 0.0
      %1276 = vmatprep.subr.mxu0 0.0
      %1277 = vmatpush1.msra.mxu0 0.0
      %1278 = vmatprep.mubr.f32.mxu0 0.0
      %1279 = vmatmul.mubr.f32.gmra.mrb[0].mxu0 %v1212
      %v1280 = vpop.f32.mrb[0].mxu0
      %v1281 = vadd.f32 0.0, %v1280
      %v1282 = vpop.f32.mrb[0].mxu0
      %1283 = vdwg.mxu0
      %v1284 = vadd.f32 %v1201, %v1281
      %v1285 = vld [vmem:[%s8] sm:$0x1]
      %v1287 = vlaneseq
      %v1288 = vshrl.u32 %v1287, 7
      %v1289 = vsub.s32 0, %v1288
      %v1290 = vrot.slane %v1285, %v1289
      %v1292 = vadd.f32 %v1284, %v1290
      %v1293 = vmax.f32 %v1292, 0.0
      %1294 = vst.msk [vmem:[#allocation3] sm:$0xff] %vm750, 0.0
      %1295 = vst.msk [vmem:[#allocation3 + $0x8] sm:$0x3] %vm752, 0.0
      %1296 = vst.msk [vmem:[#allocation3 + $0x1] sm:$0xff] %vm750, %v1293
      %v1297 = vld [vmem:[#allocation3] sm:$0xff]
      %v1298 = vld [vmem:[#allocation3 + $0x8] sm:$0x3]
      %v1299 = vld [vmem:[%s9] sm:$0xff]
      %v1300 = vld [vmem:[%s9 + $0x8] sm:$0xff]
      %v1301 = vld [vmem:[%s9 + $0x10] sm:$0xff]
      %v1302 = vld [vmem:[%s9 + $0x18] sm:$0xff]
      %v1303 = vld [vmem:[%s9 + $0x20] sm:$0xff]
      %v1304 = vld [vmem:[%s9 + $0x28] sm:$0xff]
      %s1305 = scalar_lea.vmem %s9, 48
      %v1306 = vld [vmem:[%s1305] sm:$0xff]
      %v1307 = vld [vmem:[%s1305 + $0x8] sm:$0xff]
      %v1308 = vld [vmem:[%s1305 + $0x10] sm:$0xff]
      %v1309 = vld [vmem:[%s1305 + $0x18] sm:$0xff]
      %v1310 = vld [vmem:[%s1305 + $0x20] sm:$0xff]
      %v1311 = vld [vmem:[%s1305 + $0x28] sm:$0xff]
      %v1314 = vrot.slane %v1297, 1
      %v1315 = vrot.slane %v1298, 1
      %v1316 = vsel %vm511, %v1314, %v1315
      %v1317 = vsel %vm750, %v1316, 0
      %1319 = vmatprep.subr.mxu0 0.0
      %1320 = vmatpush1.msra.mxu0 %v1306
      %1321 = vmatprep.subr.mxu0 0.0
      %1322 = vmatpush1.msra.mxu0 %v1307
      %1323 = vmatprep.subr.mxu0 0.0
      %1324 = vmatpush1.msra.mxu0 %v1308
      %1325 = vmatprep.subr.mxu0 0.0
      %1326 = vmatpush1.msra.mxu0 %v1309
      %1327 = vmatprep.subr.mxu0 0.0
      %1328 = vmatpush1.msra.mxu0 %v1310
      %1329 = vmatprep.subr.mxu0 0.0
      %1330 = vmatpush1.msra.mxu0 %v1311
      %1331 = vmatprep.subr.mxu0 0.0
      %1332 = vmatpush1.msra.mxu0 0.0
      %1333 = vmatprep.subr.mxu0 0.0
      %1334 = vmatpush1.msra.mxu0 0.0
      %1335 = vmatprep.subr.mxu0 0.0
      %1336 = vmatpush1.msra.mxu0 0.0
      %1337 = vmatprep.subr.mxu0 0.0
      %1338 = vmatpush1.msra.mxu0 0.0
      %1339 = vmatprep.subr.mxu0 0.0
      %1340 = vmatpush1.msra.mxu0 0.0
      %1341 = vmatprep.subr.mxu0 0.0
      %1342 = vmatpush1.msra.mxu0 0.0
      %1343 = vmatprep.subr.mxu0 0.0
      %1344 = vmatpush1.msra.mxu0 0.0
      %1345 = vmatprep.subr.mxu0 0.0
      %1346 = vmatpush1.msra.mxu0 0.0
      %1347 = vmatprep.subr.mxu0 0.0
      %1348 = vmatpush1.msra.mxu0 0.0
      %1349 = vmatprep.subr.mxu0 0.0
      %1350 = vmatpush1.msra.mxu0 0.0
      %1351 = vmatprep.subr.mxu0 0.0
      %1352 = vmatpush1.msra.mxu0 0.0
      %1353 = vmatprep.subr.mxu0 0.0
      %1354 = vmatpush1.msra.mxu0 0.0
      %1355 = vmatprep.subr.mxu0 0.0
      %1356 = vmatpush1.msra.mxu0 0.0
      %1357 = vmatprep.subr.mxu0 0.0
      %1358 = vmatpush1.msra.mxu0 0.0
      %1359 = vmatprep.subr.mxu0 0.0
      %1360 = vmatpush1.msra.mxu0 0.0
      %1361 = vmatprep.subr.mxu0 0.0
      %1362 = vmatpush1.msra.mxu0 0.0
      %1363 = vmatprep.subr.mxu0 0.0
      %1364 = vmatpush1.msra.mxu0 0.0
      %1365 = vmatprep.subr.mxu0 0.0
      %1366 = vmatpush1.msra.mxu0 0.0
      %1367 = vmatprep.subr.mxu0 0.0
      %1368 = vmatpush1.msra.mxu0 0.0
      %1369 = vmatprep.subr.mxu0 0.0
      %1370 = vmatpush1.msra.mxu0 0.0
      %1371 = vmatprep.subr.mxu0 0.0
      %1372 = vmatpush1.msra.mxu0 0.0
      %1373 = vmatprep.subr.mxu0 0.0
      %1374 = vmatpush1.msra.mxu0 0.0
      %1375 = vmatprep.subr.mxu0 0.0
      %1376 = vmatpush1.msra.mxu0 0.0
      %1377 = vmatprep.subr.mxu0 0.0
      %1378 = vmatpush1.msra.mxu0 0.0
      %1379 = vmatprep.subr.mxu0 0.0
      %1380 = vmatpush1.msra.mxu0 0.0
      %1381 = vmatprep.subr.mxu0 0.0
      %1382 = vmatpush1.msra.mxu0 0.0
      %1383 = vmatprep.mubr.f32.mxu0 0.0
      %1384 = vmatmul.mubr.f32.gmra.mrb[0].mxu0 %v1317
      %v1385 = vpop.f32.mrb[0].mxu0
      %v1386 = vadd.f32 0.0, %v1385
      %v1387 = vpop.f32.mrb[0].mxu0
      %1388 = vdwg.mxu0
      %v1389 = vsel %vm750, %v1297, 0
      %1391 = vmatprep.subr.mxu0 0.0
      %1392 = vmatpush1.msra.mxu0 %v1299
      %1393 = vmatprep.subr.mxu0 0.0
      %1394 = vmatpush1.msra.mxu0 %v1300
      %1395 = vmatprep.subr.mxu0 0.0
      %1396 = vmatpush1.msra.mxu0 %v1301
      %1397 = vmatprep.subr.mxu0 0.0
      %1398 = vmatpush1.msra.mxu0 %v1302
      %1399 = vmatprep.subr.mxu0 0.0
      %1400 = vmatpush1.msra.mxu0 %v1303
      %1401 = vmatprep.subr.mxu0 0.0
      %1402 = vmatpush1.msra.mxu0 %v1304
      %1403 = vmatprep.subr.mxu0 0.0
      %1404 = vmatpush1.msra.mxu0 0.0
      %1405 = vmatprep.subr.mxu0 0.0
      %1406 = vmatpush1.msra.mxu0 0.0
      %1407 = vmatprep.subr.mxu0 0.0
      %1408 = vmatpush1.msra.mxu0 0.0
      %1409 = vmatprep.subr.mxu0 0.0
      %1410 = vmatpush1.msra.mxu0 0.0
      %1411 = vmatprep.subr.mxu0 0.0
      %1412 = vmatpush1.msra.mxu0 0.0
      %1413 = vmatprep.subr.mxu0 0.0
      %1414 = vmatpush1.msra.mxu0 0.0
      %1415 = vmatprep.subr.mxu0 0.0
      %1416 = vmatpush1.msra.mxu0 0.0
      %1417 = vmatprep.subr.mxu0 0.0
      %1418 = vmatpush1.msra.mxu0 0.0
      %1419 = vmatprep.subr.mxu0 0.0
      %1420 = vmatpush1.msra.mxu0 0.0
      %1421 = vmatprep.subr.mxu0 0.0
      %1422 = vmatpush1.msra.mxu0 0.0
      %1423 = vmatprep.subr.mxu0 0.0
      %1424 = vmatpush1.msra.mxu0 0.0
      %1425 = vmatprep.subr.mxu0 0.0
      %1426 = vmatpush1.msra.mxu0 0.0
      %1427 = vmatprep.subr.mxu0 0.0
      %1428 = vmatpush1.msra.mxu0 0.0
      %1429 = vmatprep.subr.mxu0 0.0
      %1430 = vmatpush1.msra.mxu0 0.0
      %1431 = vmatprep.subr.mxu0 0.0
      %1432 = vmatpush1.msra.mxu0 0.0
      %1433 = vmatprep.subr.mxu0 0.0
      %1434 = vmatpush1.msra.mxu0 0.0
      %1435 = vmatprep.subr.mxu0 0.0
      %1436 = vmatpush1.msra.mxu0 0.0
      %1437 = vmatprep.subr.mxu0 0.0
      %1438 = vmatpush1.msra.mxu0 0.0
      %1439 = vmatprep.subr.mxu0 0.0
      %1440 = vmatpush1.msra.mxu0 0.0
      %1441 = vmatprep.subr.mxu0 0.0
      %1442 = vmatpush1.msra.mxu0 0.0
      %1443 = vmatprep.subr.mxu0 0.0
      %1444 = vmatpush1.msra.mxu0 0.0
      %1445 = vmatprep.subr.mxu0 0.0
      %1446 = vmatpush1.msra.mxu0 0.0
      %1447 = vmatprep.subr.mxu0 0.0
      %1448 = vmatpush1.msra.mxu0 0.0
      %1449 = vmatprep.subr.mxu0 0.0
      %1450 = vmatpush1.msra.mxu0 0.0
      %1451 = vmatprep.subr.mxu0 0.0
      %1452 = vmatpush1.msra.mxu0 0.0
      %1453 = vmatprep.subr.mxu0 0.0
      %1454 = vmatpush1.msra.mxu0 0.0
      %1455 = vmatprep.mubr.f32.mxu0 0.0
      %1456 = vmatmul.mubr.f32.gmra.mrb[0].mxu0 %v1389
      %v1457 = vpop.f32.mrb[0].mxu0
      %v1458 = vadd.f32 %v1386, %v1457
      %v1459 = vpop.f32.mrb[0].mxu0
      %1460 = vdwg.mxu0
      %s1461 = scalar_lea.vmem %s9, 96
      %v1462 = vld [vmem:[%s1461] sm:$0xff]
      %v1463 = vld [vmem:[%s1461 + $0x8] sm:$0xff]
      %v1464 = vld [vmem:[%s1461 + $0x10] sm:$0xff]
      %v1465 = vld [vmem:[%s1461 + $0x18] sm:$0xff]
      %v1466 = vld [vmem:[%s1461 + $0x20] sm:$0xff]
      %v1467 = vld [vmem:[%s1461 + $0x28] sm:$0xff]
      %v1468 = vrot.slane %v1297, 2
      %v1469 = vrot.slane %v1298, 2
      %v1470 = vsel %vm664, %v1468, %v1469
      %v1471 = vsel %vm750, %v1470, 0
      %1473 = vmatprep.subr.mxu0 0.0
      %1474 = vmatpush1.msra.mxu0 %v1462
      %1475 = vmatprep.subr.mxu0 0.0
      %1476 = vmatpush1.msra.mxu0 %v1463
      %1477 = vmatprep.subr.mxu0 0.0
      %1478 = vmatpush1.msra.mxu0 %v1464
      %1479 = vmatprep.subr.mxu0 0.0
      %1480 = vmatpush1.msra.mxu0 %v1465
      %1481 = vmatprep.subr.mxu0 0.0
      %1482 = vmatpush1.msra.mxu0 %v1466
      %1483 = vmatprep.subr.mxu0 0.0
      %1484 = vmatpush1.msra.mxu0 %v1467
      %1485 = vmatprep.subr.mxu0 0.0
      %1486 = vmatpush1.msra.mxu0 0.0
      %1487 = vmatprep.subr.mxu0 0.0
      %1488 = vmatpush1.msra.mxu0 0.0
      %1489 = vmatprep.subr.mxu0 0.0
      %1490 = vmatpush1.msra.mxu0 0.0
      %1491 = vmatprep.subr.mxu0 0.0
      %1492 = vmatpush1.msra.mxu0 0.0
      %1493 = vmatprep.subr.mxu0 0.0
      %1494 = vmatpush1.msra.mxu0 0.0
      %1495 = vmatprep.subr.mxu0 0.0
      %1496 = vmatpush1.msra.mxu0 0.0
      %1497 = vmatprep.subr.mxu0 0.0
      %1498 = vmatpush1.msra.mxu0 0.0
      %1499 = vmatprep.subr.mxu0 0.0
      %1500 = vmatpush1.msra.mxu0 0.0
      %1501 = vmatprep.subr.mxu0 0.0
      %1502 = vmatpush1.msra.mxu0 0.0
      %1503 = vmatprep.subr.mxu0 0.0
      %1504 = vmatpush1.msra.mxu0 0.0
      %1505 = vmatprep.subr.mxu0 0.0
      %1506 = vmatpush1.msra.mxu0 0.0
      %1507 = vmatprep.subr.mxu0 0.0
      %1508 = vmatpush1.msra.mxu0 0.0
      %1509 = vmatprep.subr.mxu0 0.0
      %1510 = vmatpush1.msra.mxu0 0.0
      %1511 = vmatprep.subr.mxu0 0.0
      %1512 = vmatpush1.msra.mxu0 0.0
      %1513 = vmatprep.subr.mxu0 0.0
      %1514 = vmatpush1.msra.mxu0 0.0
      %1515 = vmatprep.subr.mxu0 0.0
      %1516 = vmatpush1.msra.mxu0 0.0
      %1517 = vmatprep.subr.mxu0 0.0
      %1518 = vmatpush1.msra.mxu0 0.0
      %1519 = vmatprep.subr.mxu0 0.0
      %1520 = vmatpush1.msra.mxu0 0.0
      %1521 = vmatprep.subr.mxu0 0.0
      %1522 = vmatpush1.msra.mxu0 0.0
      %1523 = vmatprep.subr.mxu0 0.0
      %1524 = vmatpush1.msra.mxu0 0.0
      %1525 = vmatprep.subr.mxu0 0.0
      %1526 = vmatpush1.msra.mxu0 0.0
      %1527 = vmatprep.subr.mxu0 0.0
      %1528 = vmatpush1.msra.mxu0 0.0
      %1529 = vmatprep.subr.mxu0 0.0
      %1530 = vmatpush1.msra.mxu0 0.0
      %1531 = vmatprep.subr.mxu0 0.0
      %1532 = vmatpush1.msra.mxu0 0.0
      %1533 = vmatprep.subr.mxu0 0.0
      %1534 = vmatpush1.msra.mxu0 0.0
      %1535 = vmatprep.subr.mxu0 0.0
      %1536 = vmatpush1.msra.mxu0 0.0
      %1537 = vmatprep.mubr.f32.mxu0 0.0
      %1538 = vmatmul.mubr.f32.gmra.mrb[0].mxu0 %v1471
      %v1539 = vpop.f32.mrb[0].mxu0
      %v1540 = vadd.f32 0.0, %v1539
      %v1541 = vpop.f32.mrb[0].mxu0
      %1542 = vdwg.mxu0
      %v1543 = vadd.f32 %v1458, %v1540
      %v1544 = vld [vmem:[%s10] sm:$0x1]
      %v1546 = vlaneseq
      %v1547 = vshrl.u32 %v1546, 7
      %v1548 = vsub.s32 0, %v1547
      %v1549 = vrot.slane %v1544, %v1548
      %v1551 = vadd.f32 %v1543, %v1549
      %v1552 = vmax.f32 %v1551, 0.0
      %v1553 = vld [vmem:[%s11] sm:$0x1]
      %v1554 = vld [vmem:[%s12] sm:$0x1]
      %v1555 = vsel %vm493, %v1552, 0.0
      %1556 = vadd.xlane.f32.xlu0 %v1555
      %v1557 = vpop.xlane.xlu0 %1556
      %v1558 = vmul.f32 %v1557, %v1016
      %v1559 = vsub.f32 %v1552, %v1558
      %v1560 = vmul.f32 %v1559, %v1559
      %v1561 = vsel %vm493, %v1560, 0.0
      %1562 = vadd.xlane.f32.xlu0 %v1561
      %v1563 = vpop.xlane.xlu0 %1562
      %v1564 = vmul.f32 %v1563, %v1016
      %v1565 = vadd.f32 %v1564, 1e-05
      %v1566 = vrsqrt.pop %v1565
      %v1567 = vmul.f32 %v1559, %v1566
      %v1569 = vlaneseq
      %v1570 = vshrl.u32 %v1569, 7
      %v1571 = vsub.s32 0, %v1570
      %v1572 = vrot.slane %v1553, %v1571
      %v1574 = vmul.f32 %v1567, %v1572
      %v1576 = vlaneseq
      %v1577 = vshrl.u32 %v1576, 7
      %v1578 = vsub.s32 0, %v1577
      %v1579 = vrot.slane %v1554, %v1578
      %v1581 = vadd.f32 %v1574, %v1579
      %v1582 = vld [vmem:[%s13] sm:$0x1]
      %v1584 = vlaneseq
      %v1585 = vshrl.u32 %v1584, 7
      %v1586 = vsub.s32 0, %v1585
      %v1587 = vrot.slane %v1582, %v1586
      %v1589 = vmul.f32 %v1581, %v1587
      %v1590 = vsel %vm493, %v1589, 0.0
      %1591 = vadd.xlane.f32.xlu0 %v1590
      %v1592 = vpop.xlane.xlu0 %1591
      %v1593 = vld [vmem:[#allocation4] sm:$0x1]
      %v1595 = vlaneseq
      %v1596 = vshrl.u32 %v1595, 7
      %v1597 = vsub.s32 0, %v1596
      %v1598 = vrot.slane %v1593, %v1597
      %v1600 = vadd.f32 %v1592, %v1598
      %vm1601 = vcmask 7168
      %1602 = vst.msk [vmem:[%s491] sm:$0xff] %vm1601, %v1600
      %p1603 = scmp.lt.s32.totalorder %s28, 1
      %s1604 = scalar_select %p1603, %s28, 1
      %s1605 = smul.addr %s1604, 8
      %s1606 = scalar_lea.vmem %s15, %s1605
      // Predicated region
      $region81: #{_encoder_half.5} parent=79 // pred_check
        %p1607 = pneg %p366
      $region82: #{_encoder_half.5} parent=79 // pred_check_branch
        %1609 = sbr.rel (%p1607) target = $region84
      $region83: #{_encoder_half.5} parent=79 // pred_region
        _
      $region84: #{_encoder_half.5} parent=79 // pred_fallthru
        _
    $region80: #{_encoder_half.5} parent=5 // pred_fallthru
      _
    %p1610 = scmp.le.s32.totalorder 2, %s23
    // Predicated region
    $region85: #{_encoder_half.5} parent=5 // pred_check
      %p1611 = pneg %p1610
    $region86: #{_encoder_half.5} parent=5 // pred_check_branch
      %1613 = sbr.rel (%p1611) target = $region88
    $region87: #{_encoder_half.5} parent=5 // pred_region
      %s1614 = ssub.s32 %s23, 2
      // Predicated region
      $region89: #{_encoder_half.5} parent=87 // pred_check
        %p1615 = pneg %p372
      $region90: #{_encoder_half.5} parent=87 // pred_check_branch
        %1617 = sbr.rel (%p1615) target = $region92
      $region91: #{_encoder_half.5} parent=87 // pred_region
        %p1618 = scmp.lt.s32.totalorder %s29, 1
        %s1619 = scalar_select %p1618, %s29, 1
        %s1620 = smul.addr %s1619, 8
        %s1621 = scalar_lea.vmem %s15, %s1620
      $region92: #{_encoder_half.5} parent=87 // pred_fallthru
        _
    $region88: #{_encoder_half.5} parent=5 // pred_fallthru
      _
  $region6: #{_encoder_half.5} parent=0 // loop_footer
    %s27 = sadd.s32 1, %s23
  $region7: #{_encoder_half.5} parent=0 // loop_footer_branch
    %22 = sbr.rel target = $region3
  $region8: #{_encoder_half.5} parent=0 // loop_exit
    _

// kernel: _encoder_half.3
$region0: #{_encoder_half.3}
  #allocation0 [shape = 'u32[]', space=smem, size = 0x4, offset = 0x4, fixed_abs, tag = 'smem constant byte address 0x4 - core index']
  #allocation1 [shape = 'u32[144,128]{1,0:T(1,128)}', space=vmem, size = 0x12000, scoped, tag = 'internal scratch']
  #allocation2 [shape = 'f32[10,32]{1,0:T(8,128)}', space=vmem, size = 0x2000, scoped, tag = 'scratch operand']
  #allocation3 [shape = 'f32[10,48]{1,0:T(8,128)}', space=vmem, size = 0x2000, scoped, tag = 'scratch operand']
  %s0 = inlined_call_operand.vmem [shape: f32[2,8,32], index: 0, kind: input, shape index: {}]
  %s1 = inlined_call_operand.vmem [shape: f32[4,3,32,8], index: 1, kind: input, shape index: {}]
  %s2 = inlined_call_operand.vmem [shape: f32[4,8,32], index: 2, kind: input, shape index: {}]
  %s3 = inlined_call_operand.vmem [shape: f32[1,32], index: 3, kind: input, shape index: {}]
  %s4 = inlined_call_operand.vmem [shape: f32[1,32], index: 4, kind: input, shape index: {}]
  %s5 = inlined_call_operand.vmem [shape: f32[3,32,48], index: 5, kind: input, shape index: {}]
  %s6 = inlined_call_operand.vmem [shape: f32[1,48], index: 6, kind: input, shape index: {}]
  %s7 = inlined_call_operand.vmem [shape: f32[3,48,32], index: 7, kind: input, shape index: {}]
  %s8 = inlined_call_operand.vmem [shape: f32[1,32], index: 8, kind: input, shape index: {}]
  %s9 = inlined_call_operand.vmem [shape: f32[1,32], index: 9, kind: input, shape index: {}]
  %s10 = inlined_call_operand.vmem [shape: f32[1,32], index: 10, kind: input, shape index: {}]
  %s11 = inlined_call_operand.vmem [shape: f32[2,8,32], index: 11, kind: output, shape index: {}]
  %s12 = sld [smem:[#allocation0]]
  $region77: #{_encoder_half.3} parent=0
    _
  %s14 = ssub.s32 1, %s12
  %s15 = scalar_select 0, %s14, %s12
  loop: start=0, step=1, limit=4
  $region2: #{_encoder_half.3} parent=0 // loop_pre_header
    _
  $region3: #{_encoder_half.3} parent=0 // loop_header
    %s17 = sphi 0, %s21
    %p18 = scmp.ge.s32.totalorder %s17, 4
    %s27 = sphi 0, %s29
    %s30 = sphi 0, %s27
    %s31 = sphi 0, %s30
    %s47 = sphi 0, %s31
    %s51 = sphi 0, %s51
    %s53 = sphi 0, %s51
    %s54 = sphi 0, %s53
    %s68 = sphi 0, %s54
    %s72 = sphi 0, %s72
    %s74 = sphi 0, %s72
    %s75 = sphi 0, %s74
    %s89 = sphi 0, %s75
    %s93 = sphi 0, %s93
    %s95 = sphi 0, %s93
    %s96 = sphi 0, %s95
    %s110 = sphi 0, %s96
    %s114 = sphi 0, %s114
    %s116 = sphi 0, %s114
    %s117 = sphi 0, %s116
    %s131 = sphi 0, %s117
    %s135 = sphi 0, %s135
    %s137 = sphi 0, %s135
    %s138 = sphi 0, %s137
    %s152 = sphi 0, %s138
    %s156 = sphi 0, %s156
    %s158 = sphi 0, %s156
    %s159 = sphi 0, %s158
    %s173 = sphi 0, %s159
    %s177 = sphi 0, %s177
    %s179 = sphi 0, %s177
    %s180 = sphi 0, %s179
    %s194 = sphi 0, %s180
    %s198 = sphi 0, %s198
    %s200 = sphi 0, %s198
    %s201 = sphi 0, %s200
    %s215 = sphi 0, %s201
    %s219 = sphi 0, %s219
    %s221 = sphi 0, %s219
    %s222 = sphi 0, %s221
    %s236 = sphi 0, %s222
    %s240 = sphi 0, %s240
    %s242 = sphi 0, %s240
    %s243 = sphi 0, %s242
    %s257 = sphi 0, %s243
    %s263 = sphi 0, %s265
    %s266 = sphi 0, %s263
    %s267 = sphi 0, %s266
    %s283 = sphi 0, %s267
  $region4: #{_encoder_half.3} parent=0 // loop_header_branch
    %20 = sbr.rel (%p18) target = $region8
  $region5: #{_encoder_half.3} parent=0 // loop_body
    %s22 = ssub.s32 %s17, 1
    %s23 = ssub.s32 %s17, 2
    %s24 = sadd.s32 %s17, 1
    %s25 = ssub.s32 %s17, %s24
    %p26 = scmp.eq.s32.totalorder %s25, 0
    %s28 = sadd.s32 %s27, 1
    %s29 = scalar_select %p26, %s27, %s28
    %p32 = pneg %p26
    %p33 = scmp.eq.s32.totalorder %s17, 1
    %p34 = por %p32, %p33
    %p35 = scmp.ne.s32.totalorder %s27, %s30
    %p36 = scmp.eq.s32.totalorder %s17, 0
    %p37 = por %p35, %p36
    %p38 = scmp.ne.s32.totalorder %s27, %s30
    %p39 = scmp.eq.s32.totalorder %s22, 1
    %p40 = por %p38, %p39
    %p41 = scmp.ne.s32.totalorder %s30, %s31
    %p42 = scmp.eq.s32.totalorder %s22, 0
    %p43 = por %p41, %p42
    %p44 = scmp.ne.s32.totalorder %s30, %s31
    %p45 = scmp.eq.s32.totalorder %s23, 1
    %p46 = por %p44, %p45
    %p48 = scmp.ne.s32.totalorder %s31, %s47
    %p49 = scmp.eq.s32.totalorder %s23, 0
    %p50 = por %p48, %p49
    %s52 = sadd.s32 %s51, 1
    %p55 = scmp.eq.s32.totalorder %s17, 1
    %p56 = scmp.ne.s32.totalorder %s51, %s53
    %p57 = scmp.eq.s32.totalorder %s17, 0
    %p58 = por %p56, %p57
    %p59 = scmp.ne.s32.totalorder %s51, %s53
    %p60 = scmp.eq.s32.totalorder %s22, 1
    %p61 = por %p59, %p60
    %p62 = scmp.ne.s32.totalorder %s53, %s54
    %p63 = scmp.eq.s32.totalorder %s22, 0
    %p64 = por %p62, %p63
    %p65 = scmp.ne.s32.totalorder %s53, %s54
    %p66 = scmp.eq.s32.totalorder %s23, 1
    %p67 = por %p65, %p66
    %p69 = scmp.ne.s32.totalorder %s54, %s68
    %p70 = scmp.eq.s32.totalorder %s23, 0
    %p71 = por %p69, %p70
    %s73 = sadd.s32 %s72, 1
    %p76 = scmp.eq.s32.totalorder %s17, 1
    %p77 = scmp.ne.s32.totalorder %s72, %s74
    %p78 = scmp.eq.s32.totalorder %s17, 0
    %p79 = por %p77, %p78
    %p80 = scmp.ne.s32.totalorder %s72, %s74
    %p81 = scmp.eq.s32.totalorder %s22, 1
    %p82 = por %p80, %p81
    %p83 = scmp.ne.s32.totalorder %s74, %s75
    %p84 = scmp.eq.s32.totalorder %s22, 0
    %p85 = por %p83, %p84
    %p86 = scmp.ne.s32.totalorder %s74, %s75
    %p87 = scmp.eq.s32.totalorder %s23, 1
    %p88 = por %p86, %p87
    %p90 = scmp.ne.s32.totalorder %s75, %s89
    %p91 = scmp.eq.s32.totalorder %s23, 0
    %p92 = por %p90, %p91
    %s94 = sadd.s32 %s93, 1
    %p97 = scmp.eq.s32.totalorder %s17, 1
    %p98 = scmp.ne.s32.totalorder %s93, %s95
    %p99 = scmp.eq.s32.totalorder %s17, 0
    %p100 = por %p98, %p99
    %p101 = scmp.ne.s32.totalorder %s93, %s95
    %p102 = scmp.eq.s32.totalorder %s22, 1
    %p103 = por %p101, %p102
    %p104 = scmp.ne.s32.totalorder %s95, %s96
    %p105 = scmp.eq.s32.totalorder %s22, 0
    %p106 = por %p104, %p105
    %p107 = scmp.ne.s32.totalorder %s95, %s96
    %p108 = scmp.eq.s32.totalorder %s23, 1
    %p109 = por %p107, %p108
    %p111 = scmp.ne.s32.totalorder %s96, %s110
    %p112 = scmp.eq.s32.totalorder %s23, 0
    %p113 = por %p111, %p112
    %s115 = sadd.s32 %s114, 1
    %p118 = scmp.eq.s32.totalorder %s17, 1
    %p119 = scmp.ne.s32.totalorder %s114, %s116
    %p120 = scmp.eq.s32.totalorder %s17, 0
    %p121 = por %p119, %p120
    %p122 = scmp.ne.s32.totalorder %s114, %s116
    %p123 = scmp.eq.s32.totalorder %s22, 1
    %p124 = por %p122, %p123
    %p125 = scmp.ne.s32.totalorder %s116, %s117
    %p126 = scmp.eq.s32.totalorder %s22, 0
    %p127 = por %p125, %p126
    %p128 = scmp.ne.s32.totalorder %s116, %s117
    %p129 = scmp.eq.s32.totalorder %s23, 1
    %p130 = por %p128, %p129
    %p132 = scmp.ne.s32.totalorder %s117, %s131
    %p133 = scmp.eq.s32.totalorder %s23, 0
    %p134 = por %p132, %p133
    %s136 = sadd.s32 %s135, 1
    %p139 = scmp.eq.s32.totalorder %s17, 1
    %p140 = scmp.ne.s32.totalorder %s135, %s137
    %p141 = scmp.eq.s32.totalorder %s17, 0
    %p142 = por %p140, %p141
    %p143 = scmp.ne.s32.totalorder %s135, %s137
    %p144 = scmp.eq.s32.totalorder %s22, 1
    %p145 = por %p143, %p144
    %p146 = scmp.ne.s32.totalorder %s137, %s138
    %p147 = scmp.eq.s32.totalorder %s22, 0
    %p148 = por %p146, %p147
    %p149 = scmp.ne.s32.totalorder %s137, %s138
    %p150 = scmp.eq.s32.totalorder %s23, 1
    %p151 = por %p149, %p150
    %p153 = scmp.ne.s32.totalorder %s138, %s152
    %p154 = scmp.eq.s32.totalorder %s23, 0
    %p155 = por %p153, %p154
    %s157 = sadd.s32 %s156, 1
    %p160 = scmp.eq.s32.totalorder %s17, 1
    %p161 = scmp.ne.s32.totalorder %s156, %s158
    %p162 = scmp.eq.s32.totalorder %s17, 0
    %p163 = por %p161, %p162
    %p164 = scmp.ne.s32.totalorder %s156, %s158
    %p165 = scmp.eq.s32.totalorder %s22, 1
    %p166 = por %p164, %p165
    %p167 = scmp.ne.s32.totalorder %s158, %s159
    %p168 = scmp.eq.s32.totalorder %s22, 0
    %p169 = por %p167, %p168
    %p170 = scmp.ne.s32.totalorder %s158, %s159
    %p171 = scmp.eq.s32.totalorder %s23, 1
    %p172 = por %p170, %p171
    %p174 = scmp.ne.s32.totalorder %s159, %s173
    %p175 = scmp.eq.s32.totalorder %s23, 0
    %p176 = por %p174, %p175
    %s178 = sadd.s32 %s177, 1
    %p181 = scmp.eq.s32.totalorder %s17, 1
    %p182 = scmp.ne.s32.totalorder %s177, %s179
    %p183 = scmp.eq.s32.totalorder %s17, 0
    %p184 = por %p182, %p183
    %p185 = scmp.ne.s32.totalorder %s177, %s179
    %p186 = scmp.eq.s32.totalorder %s22, 1
    %p187 = por %p185, %p186
    %p188 = scmp.ne.s32.totalorder %s179, %s180
    %p189 = scmp.eq.s32.totalorder %s22, 0
    %p190 = por %p188, %p189
    %p191 = scmp.ne.s32.totalorder %s179, %s180
    %p192 = scmp.eq.s32.totalorder %s23, 1
    %p193 = por %p191, %p192
    %p195 = scmp.ne.s32.totalorder %s180, %s194
    %p196 = scmp.eq.s32.totalorder %s23, 0
    %p197 = por %p195, %p196
    %s199 = sadd.s32 %s198, 1
    %p202 = scmp.eq.s32.totalorder %s17, 1
    %p203 = scmp.ne.s32.totalorder %s198, %s200
    %p204 = scmp.eq.s32.totalorder %s17, 0
    %p205 = por %p203, %p204
    %p206 = scmp.ne.s32.totalorder %s198, %s200
    %p207 = scmp.eq.s32.totalorder %s22, 1
    %p208 = por %p206, %p207
    %p209 = scmp.ne.s32.totalorder %s200, %s201
    %p210 = scmp.eq.s32.totalorder %s22, 0
    %p211 = por %p209, %p210
    %p212 = scmp.ne.s32.totalorder %s200, %s201
    %p213 = scmp.eq.s32.totalorder %s23, 1
    %p214 = por %p212, %p213
    %p216 = scmp.ne.s32.totalorder %s201, %s215
    %p217 = scmp.eq.s32.totalorder %s23, 0
    %p218 = por %p216, %p217
    %s220 = sadd.s32 %s219, 1
    %p223 = scmp.eq.s32.totalorder %s17, 1
    %p224 = scmp.ne.s32.totalorder %s219, %s221
    %p225 = scmp.eq.s32.totalorder %s17, 0
    %p226 = por %p224, %p225
    %p227 = scmp.ne.s32.totalorder %s219, %s221
    %p228 = scmp.eq.s32.totalorder %s22, 1
    %p229 = por %p227, %p228
    %p230 = scmp.ne.s32.totalorder %s221, %s222
    %p231 = scmp.eq.s32.totalorder %s22, 0
    %p232 = por %p230, %p231
    %p233 = scmp.ne.s32.totalorder %s221, %s222
    %p234 = scmp.eq.s32.totalorder %s23, 1
    %p235 = por %p233, %p234
    %p237 = scmp.ne.s32.totalorder %s222, %s236
    %p238 = scmp.eq.s32.totalorder %s23, 0
    %p239 = por %p237, %p238
    %s241 = sadd.s32 %s240, 1
    %p244 = scmp.eq.s32.totalorder %s17, 1
    %p245 = scmp.ne.s32.totalorder %s240, %s242
    %p246 = scmp.eq.s32.totalorder %s17, 0
    %p247 = por %p245, %p246
    %p248 = scmp.ne.s32.totalorder %s240, %s242
    %p249 = scmp.eq.s32.totalorder %s22, 1
    %p250 = por %p248, %p249
    %p251 = scmp.ne.s32.totalorder %s242, %s243
    %p252 = scmp.eq.s32.totalorder %s22, 0
    %p253 = por %p251, %p252
    %p254 = scmp.ne.s32.totalorder %s242, %s243
    %p255 = scmp.eq.s32.totalorder %s23, 1
    %p256 = por %p254, %p255
    %p258 = scmp.ne.s32.totalorder %s243, %s257
    %p259 = scmp.eq.s32.totalorder %s23, 0
    %p260 = por %p258, %p259
    %s261 = ssub.s32 %s17, %s24
    %p262 = scmp.eq.s32.totalorder %s261, 0
    %s264 = sadd.s32 %s263, 1
    %s265 = scalar_select %p262, %s263, %s264
    %p268 = pneg %p262
    %p269 = scmp.eq.s32.totalorder %s17, 1
    %p270 = por %p268, %p269
    %p271 = scmp.ne.s32.totalorder %s263, %s266
    %p272 = scmp.eq.s32.totalorder %s17, 0
    %p273 = por %p271, %p272
    %p274 = scmp.ne.s32.totalorder %s263, %s266
    %p275 = scmp.eq.s32.totalorder %s22, 1
    %p276 = por %p274, %p275
    %p277 = scmp.ne.s32.totalorder %s266, %s267
    %p278 = scmp.eq.s32.totalorder %s22, 0
    %p279 = por %p277, %p278
    %p280 = scmp.ne.s32.totalorder %s266, %s267
    %p281 = scmp.eq.s32.totalorder %s23, 1
    %p282 = por %p280, %p281
    %p284 = scmp.ne.s32.totalorder %s267, %s283
    %p285 = scmp.eq.s32.totalorder %s23, 0
    %p286 = por %p284, %p285
    %p287 = scmp.le.s32.totalorder 1, %s17
    %p288 = scmp.lt.s32.totalorder %s17, 3
    %p289 = pnand %p287, %p288
    %p290 = pneg %p289
    // Predicated region
    $region9: #{_encoder_half.3} parent=5 // pred_check
      _
    $region10: #{_encoder_half.3} parent=5 // pred_check_branch
      %292 = sbr.rel (%p289) target = $region12
    $region11: #{_encoder_half.3} parent=5 // pred_region
      %s293 = ssub.s32 %s17, 1
      // Predicated region
      $region13: #{_encoder_half.3} parent=11 // pred_check
        %p294 = pneg %p64
      $region14: #{_encoder_half.3} parent=11 // pred_check_branch
        %296 = sbr.rel (%p294) target = $region16
      $region15: #{_encoder_half.3} parent=11 // pred_region
        _
      $region16: #{_encoder_half.3} parent=11 // pred_fallthru
        _
      // Predicated region
      $region17: #{_encoder_half.3} parent=11 // pred_check
        %p297 = pneg %p85
      $region18: #{_encoder_half.3} parent=11 // pred_check_branch
        %299 = sbr.rel (%p297) target = $region20
      $region19: #{_encoder_half.3} parent=11 // pred_region
        _
      $region20: #{_encoder_half.3} parent=11 // pred_fallthru
        _
      // Predicated region
      $region21: #{_encoder_half.3} parent=11 // pred_check
        %p300 = pneg %p106
      $region22: #{_encoder_half.3} parent=11 // pred_check_branch
        %302 = sbr.rel (%p300) target = $region24
      $region23: #{_encoder_half.3} parent=11 // pred_region
        _
      $region24: #{_encoder_half.3} parent=11 // pred_fallthru
        _
      // Predicated region
      $region25: #{_encoder_half.3} parent=11 // pred_check
        %p303 = pneg %p127
      $region26: #{_encoder_half.3} parent=11 // pred_check_branch
        %305 = sbr.rel (%p303) target = $region28
      $region27: #{_encoder_half.3} parent=11 // pred_region
        _
      $region28: #{_encoder_half.3} parent=11 // pred_fallthru
        _
      // Predicated region
      $region29: #{_encoder_half.3} parent=11 // pred_check
        %p306 = pneg %p148
      $region30: #{_encoder_half.3} parent=11 // pred_check_branch
        %308 = sbr.rel (%p306) target = $region32
      $region31: #{_encoder_half.3} parent=11 // pred_region
        _
      $region32: #{_encoder_half.3} parent=11 // pred_fallthru
        _
      // Predicated region
      $region33: #{_encoder_half.3} parent=11 // pred_check
        %p309 = pneg %p169
      $region34: #{_encoder_half.3} parent=11 // pred_check_branch
        %311 = sbr.rel (%p309) target = $region36
      $region35: #{_encoder_half.3} parent=11 // pred_region
        _
      $region36: #{_encoder_half.3} parent=11 // pred_fallthru
        _
      // Predicated region
      $region37: #{_encoder_half.3} parent=11 // pred_check
        %p312 = pneg %p190
      $region38: #{_encoder_half.3} parent=11 // pred_check_branch
        %314 = sbr.rel (%p312) target = $region40
      $region39: #{_encoder_half.3} parent=11 // pred_region
        _
      $region40: #{_encoder_half.3} parent=11 // pred_fallthru
        _
      // Predicated region
      $region41: #{_encoder_half.3} parent=11 // pred_check
        %p315 = pneg %p211
      $region42: #{_encoder_half.3} parent=11 // pred_check_branch
        %317 = sbr.rel (%p315) target = $region44
      $region43: #{_encoder_half.3} parent=11 // pred_region
        _
      $region44: #{_encoder_half.3} parent=11 // pred_fallthru
        _
      // Predicated region
      $region45: #{_encoder_half.3} parent=11 // pred_check
        %p318 = pneg %p232
      $region46: #{_encoder_half.3} parent=11 // pred_check_branch
        %320 = sbr.rel (%p318) target = $region48
      $region47: #{_encoder_half.3} parent=11 // pred_region
        _
      $region48: #{_encoder_half.3} parent=11 // pred_fallthru
        _
      // Predicated region
      $region49: #{_encoder_half.3} parent=11 // pred_check
        %p321 = pneg %p253
      $region50: #{_encoder_half.3} parent=11 // pred_check_branch
        %323 = sbr.rel (%p321) target = $region52
      $region51: #{_encoder_half.3} parent=11 // pred_region
        _
      $region52: #{_encoder_half.3} parent=11 // pred_fallthru
        _
    $region12: #{_encoder_half.3} parent=5 // pred_fallthru
      _
    %p324 = scmp.lt.s32.totalorder %s17, 2
    // Predicated region
    $region53: #{_encoder_half.3} parent=5 // pred_check
      %p325 = pneg %p324
    $region54: #{_encoder_half.3} parent=5 // pred_check_branch
      %327 = sbr.rel (%p325) target = $region56
    $region55: #{_encoder_half.3} parent=5 // pred_region
      // Predicated region
      $region57: #{_encoder_half.3} parent=55 // pred_check
        %p328 = pneg %p37
      $region58: #{_encoder_half.3} parent=55 // pred_check_branch
        %330 = sbr.rel (%p328) target = $region60
      $region59: #{_encoder_half.3} parent=55 // pred_region
        %p331 = scmp.lt.s32.totalorder %s17, 1
        %s332 = scalar_select %p331, %s17, 1
        %s333 = smul.addr %s332, 8
        %s334 = scalar_lea.vmem %s0, %s333
      $region60: #{_encoder_half.3} parent=55 // pred_fallthru
        _
    $region56: #{_encoder_half.3} parent=5 // pred_fallthru
      _
    %p335 = scmp.le.s32.totalorder 1, %s17
    %p336 = scmp.lt.s32.totalorder %s17, 3
    %p337 = pnand %p335, %p336
    %p338 = pneg %p337
    // Predicated region
    $region61: #{_encoder_half.3} parent=5 // pred_check
      _
    $region62: #{_encoder_half.3} parent=5 // pred_check_branch
      %340 = sbr.rel (%p337) target = $region64
    $region63: #{_encoder_half.3} parent=5 // pred_region
      %s341 = ssub.s32 %s17, 1
      %p342 = scmp.lt.s32.totalorder %s22, 1
      %s343 = scalar_select %p342, %s22, 1
      %s344 = smul.addr %s343, 8
      %s345 = scalar_lea.vmem %s0, %s344
      %p346 = pneg %p43
      %p347 = pneg %p40
      %p348 = pneg %p64
      %p349 = pneg %p61
      %p350 = pneg %p85
      %p351 = pneg %p82
      %p352 = pneg %p106
      %p353 = pneg %p103
      %p354 = pneg %p127
      %p355 = pneg %p124
      %p356 = pneg %p148
      %p357 = pneg %p145
      %p358 = pneg %p169
      %p359 = pneg %p166
      %p360 = pneg %p190
      %p361 = pneg %p187
      %p362 = pneg %p211
      %p363 = pneg %p208
      %p364 = pneg %p232
      %p365 = pneg %p229
      %p366 = pneg %p253
      %p367 = pneg %p250
      %p368 = pneg %p279
      %p369 = pneg %p276
      %p370 = scmp.lt.s32.totalorder %s22, 1
      %s371 = scalar_select %p370, %s22, 1
      %s372 = smul.addr %s371, 8
      %s373 = scalar_lea.vmem %s11, %s372
      %p374 = scmp.lt.s32.totalorder %s22, 1
      %s375 = scalar_select %p374, %s22, 1
      %s376 = smul.addr %s375, 8
      %s377 = scalar_lea.vmem %s0, %s376
      %p378 = scmp.lt.s32.totalorder %s22, 1
      %s379 = scalar_select %p378, %s22, 1
      %s380 = smul.addr %s379, 8
      %s381 = scalar_lea.vmem %s11, %s380
      %v383 = vld [vmem:[%s377] sm:$0xff]
      %v384 = vld [vmem:[%s1] sm:$0xff]
      %v385 = vld [vmem:[%s1 + $0x8] sm:$0xff]
      %v386 = vld [vmem:[%s1 + $0x10] sm:$0xff]
      %v387 = vld [vmem:[%s1 + $0x18] sm:$0xff]
      %v388 = vpack.c.bf16 %v383, %v383
      %v389 = vpack.c.bf16 %v385, %v384
      %v390 = vpack.c.bf16 %v387, %v386
      %vm391 = vcmask 261120
      %v393 = vsel %vm391, %v388, 0
      %395 = vmatprep.subr.bf16.mxu0 0
      %396 = vmatpush1.bf16.msra.mxu0 %v389
      %397 = vmatprep.subr.bf16.mxu0 0
      %398 = vmatpush1.bf16.msra.mxu0 %v390
      %399 = vmatprep.subr.bf16.mxu0 0
      %400 = vmatpush1.bf16.msra.mxu0 0
      %401 = vmatprep.subr.bf16.mxu0 0
      %402 = vmatpush1.bf16.msra.mxu0 0
      %403 = vmatprep.subr.bf16.mxu0 0
      %404 = vmatpush1.bf16.msra.mxu0 0
      %405 = vmatprep.subr.bf16.mxu0 0
      %406 = vmatpush1.bf16.msra.mxu0 0
      %407 = vmatprep.subr.bf16.mxu0 0
      %408 = vmatpush1.bf16.msra.mxu0 0
      %409 = vmatprep.subr.bf16.mxu0 0
      %410 = vmatpush1.bf16.msra.mxu0 0
      %411 = vmatprep.subr.bf16.mxu0 0
      %412 = vmatpush1.bf16.msra.mxu0 0
      %413 = vmatprep.subr.bf16.mxu0 0
      %414 = vmatpush1.bf16.msra.mxu0 0
      %415 = vmatprep.subr.bf16.mxu0 0
      %416 = vmatpush1.bf16.msra.mxu0 0
      %417 = vmatprep.subr.bf16.mxu0 0
      %418 = vmatpush1.bf16.msra.mxu0 0
      %419 = vmatprep.subr.bf16.mxu0 0
      %420 = vmatpush1.bf16.msra.mxu0 0
      %421 = vmatprep.subr.bf16.mxu0 0
      %422 = vmatpush1.bf16.msra.mxu0 0
      %423 = vmatprep.subr.bf16.mxu0 0
      %424 = vmatpush1.bf16.msra.mxu0 0
      %425 = vmatprep.subr.bf16.mxu0 0
      %426 = vmatpush1.bf16.msra.mxu0 0
      %427 = vmatprep.mubr.bf16.mxu0 0
      %428 = vmatmul.mubr.bf16.gmra.mrb[0].mxu0 %v393
      %v429 = vpop.f32.mrb[0].mxu0
      %v430 = vadd.f32 0.0, %v429
      %v431 = vpop.f32.mrb[0].mxu0
      %v432 = vpop.f32.mrb[0].mxu0
      %v433 = vpop.f32.mrb[0].mxu0
      %434 = vdwg.mxu0
      %s435 = scalar_lea.vmem %s1, 32
      %v436 = vld [vmem:[%s435] sm:$0xff]
      %v437 = vld [vmem:[%s435 + $0x8] sm:$0xff]
      %v438 = vld [vmem:[%s435 + $0x10] sm:$0xff]
      %v439 = vld [vmem:[%s435 + $0x18] sm:$0xff]
      %v440 = vpack.c.bf16 %v437, %v436
      %v441 = vpack.c.bf16 %v439, %v438
      %442 = vmatprep.subr.bf16.mxu0 0
      %443 = vmatpush1.bf16.msra.mxu0 %v440
      %444 = vmatprep.subr.bf16.mxu0 0
      %445 = vmatpush1.bf16.msra.mxu0 %v441
      %446 = vmatprep.subr.bf16.mxu0 0
      %447 = vmatpush1.bf16.msra.mxu0 0
      %448 = vmatprep.subr.bf16.mxu0 0
      %449 = vmatpush1.bf16.msra.mxu0 0
      %450 = vmatprep.subr.bf16.mxu0 0
      %451 = vmatpush1.bf16.msra.mxu0 0
      %452 = vmatprep.subr.bf16.mxu0 0
      %453 = vmatpush1.bf16.msra.mxu0 0
      %454 = vmatprep.subr.bf16.mxu0 0
      %455 = vmatpush1.bf16.msra.mxu0 0
      %456 = vmatprep.subr.bf16.mxu0 0
      %457 = vmatpush1.bf16.msra.mxu0 0
      %458 = vmatprep.subr.bf16.mxu0 0
      %459 = vmatpush1.bf16.msra.mxu0 0
      %460 = vmatprep.subr.bf16.mxu0 0
      %461 = vmatpush1.bf16.msra.mxu0 0
      %462 = vmatprep.subr.bf16.mxu0 0
      %463 = vmatpush1.bf16.msra.mxu0 0
      %464 = vmatprep.subr.bf16.mxu0 0
      %465 = vmatpush1.bf16.msra.mxu0 0
      %466 = vmatprep.subr.bf16.mxu0 0
      %467 = vmatpush1.bf16.msra.mxu0 0
      %468 = vmatprep.subr.bf16.mxu0 0
      %469 = vmatpush1.bf16.msra.mxu0 0
      %470 = vmatprep.subr.bf16.mxu0 0
      %471 = vmatpush1.bf16.msra.mxu0 0
      %472 = vmatprep.subr.bf16.mxu0 0
      %473 = vmatpush1.bf16.msra.mxu0 0
      %474 = vmatprep.mubr.bf16.mxu0 0
      %475 = vmatmul.mubr.bf16.gmra.mrb[0].mxu0 %v393
      %v476 = vpop.f32.mrb[0].mxu0
      %v477 = vadd.f32 0.0, %v476
      %v478 = vpop.f32.mrb[0].mxu0
      %v479 = vpop.f32.mrb[0].mxu0
      %v480 = vpop.f32.mrb[0].mxu0
      %481 = vdwg.mxu0
      %s482 = scalar_lea.vmem %s1, 64
      %v483 = vld [vmem:[%s482] sm:$0xff]
      %v484 = vld [vmem:[%s482 + $0x8] sm:$0xff]
      %v485 = vld [vmem:[%s482 + $0x10] sm:$0xff]
      %v486 = vld [vmem:[%s482 + $0x18] sm:$0xff]
      %v487 = vpack.c.bf16 %v484, %v483
      %v488 = vpack.c.bf16 %v486, %v485
      %489 = vmatprep.subr.bf16.mxu0 0
      %490 = vmatpush1.bf16.msra.mxu0 %v487
      %491 = vmatprep.subr.bf16.mxu0 0
      %492 = vmatpush1.bf16.msra.mxu0 %v488
      %493 = vmatprep.subr.bf16.mxu0 0
      %494 = vmatpush1.bf16.msra.mxu0 0
      %495 = vmatprep.subr.bf16.mxu0 0
      %496 = vmatpush1.bf16.msra.mxu0 0
      %497 = vmatprep.subr.bf16.mxu0 0
      %498 = vmatpush1.bf16.msra.mxu0 0
      %499 = vmatprep.subr.bf16.mxu0 0
      %500 = vmatpush1.bf16.msra.mxu0 0
      %501 = vmatprep.subr.bf16.mxu0 0
      %502 = vmatpush1.bf16.msra.mxu0 0
      %503 = vmatprep.subr.bf16.mxu0 0
      %504 = vmatpush1.bf16.msra.mxu0 0
      %505 = vmatprep.subr.bf16.mxu0 0
      %506 = vmatpush1.bf16.msra.mxu0 0
      %507 = vmatprep.subr.bf16.mxu0 0
      %508 = vmatpush1.bf16.msra.mxu0 0
      %509 = vmatprep.subr.bf16.mxu0 0
      %510 = vmatpush1.bf16.msra.mxu0 0
      %511 = vmatprep.subr.bf16.mxu0 0
      %512 = vmatpush1.bf16.msra.mxu0 0
      %513 = vmatprep.subr.bf16.mxu0 0
      %514 = vmatpush1.bf16.msra.mxu0 0
      %515 = vmatprep.subr.bf16.mxu0 0
      %516 = vmatpush1.bf16.msra.mxu0 0
      %517 = vmatprep.subr.bf16.mxu0 0
      %518 = vmatpush1.bf16.msra.mxu0 0
      %519 = vmatprep.subr.bf16.mxu0 0
      %520 = vmatpush1.bf16.msra.mxu0 0
      %521 = vmatprep.mubr.bf16.mxu0 0
      %522 = vmatmul.mubr.bf16.gmra.mrb[0].mxu0 %v393
      %v523 = vpop.f32.mrb[0].mxu0
      %v524 = vadd.f32 0.0, %v523
      %v525 = vpop.f32.mrb[0].mxu0
      %v526 = vpop.f32.mrb[0].mxu0
      %v527 = vpop.f32.mrb[0].mxu0
      %528 = vdwg.mxu0
      %v529 = vpack.c.bf16 %v430, %v430
      %v530 = vpack.c.bf16 %v477, %v477
      %vm531 = vcmask 64512
      %v533 = vsel %vm531, %v529, 0
      %v536 = vsel %vm531, %v530, 0
      %538 = vmatprep.subr.bf16.mxu0 0
      %539 = vmatpush1.bf16.xpose.msra.mxu0 %v536
      %540 = vmatprep.subr.bf16.mxu0 0
      %541 = vmatpush1.bf16.xpose.msra.mxu0 0
      %542 = vmatprep.subr.bf16.mxu0 0
      %543 = vmatpush1.bf16.xpose.msra.mxu0 0
      %544 = vmatprep.subr.bf16.mxu0 0
      %545 = vmatpush1.bf16.xpose.msra.mxu0 0
      %546 = vmatprep.subr.bf16.mxu0 0
      %547 = vmatpush1.bf16.xpose.msra.mxu0 0
      %548 = vmatprep.subr.bf16.mxu0 0
      %549 = vmatpush1.bf16.xpose.msra.mxu0 0
      %550 = vmatprep.subr.bf16.mxu0 0
      %551 = vmatpush1.bf16.xpose.msra.mxu0 0
      %552 = vmatprep.subr.bf16.mxu0 0
      %553 = vmatpush1.bf16.xpose.msra.mxu0 0
      %554 = vmatprep.subr.bf16.mxu0 0
      %555 = vmatpush1.bf16.xpose.msra.mxu0 0
      %556 = vmatprep.subr.bf16.mxu0 0
      %557 = vmatpush1.bf16.xpose.msra.mxu0 0
      %558 = vmatprep.subr.bf16.mxu0 0
      %559 = vmatpush1.bf16.xpose.msra.mxu0 0
      %560 = vmatprep.subr.bf16.mxu0 0
      %561 = vmatpush1.bf16.xpose.msra.mxu0 0
      %562 = vmatprep.subr.bf16.mxu0 0
      %563 = vmatpush1.bf16.xpose.msra.mxu0 0
      %564 = vmatprep.subr.bf16.mxu0 0
      %565 = vmatpush1.bf16.xpose.msra.mxu0 0
      %566 = vmatprep.subr.bf16.mxu0 0
      %567 = vmatpush1.bf16.xpose.msra.mxu0 0
      %568 = vmatprep.subr.bf16.mxu0 0
      %569 = vmatpush1.bf16.xpose.msra.mxu0 0
      %570 = vmatprep.mubr.bf16.mxu0 0
      %571 = vmatmul.mubr.bf16.gmra.mrb[0].mxu0 %v533
      %v572 = vpop.f32.mrb[0].mxu0
      %v573 = vadd.f32 0.0, %v572
      %v574 = vpop.f32.mrb[0].mxu0
      %v575 = vpop.f32.mrb[0].mxu0
      %v576 = vpop.f32.mrb[0].mxu0
      %577 = vdwg.mxu0
      %v578 = vmul.f32 %v573, 0.35355338
      %v579 = vsel %vm531, %v578, -inf
      %580 = vmax.xlane.f32.xlu0 %v579
      %v581 = vpop.xlane.xlu0 %580
      %v582 = vsub.f32 %v578, %v581
      %v583 = vmul.f32 %v582, 1.442695
      %v584 = vpow.pop %v583
      %v585 = vsel %vm531, %v584, 0.0
      %586 = vadd.xlane.f32.xlu0 %v585
      %v587 = vpop.xlane.xlu0 %586
      %v588 = vrcp.pop %v587
      %v589 = vpack.c.bf16 %v584, %v584
      %v590 = vpack.c.bf16 %v524, %v524
      %v592 = vsel %vm531, %v589, 0
      %vm594 = vcmask 1043456
      %v596 = vsel %vm594, %v590, 0
      %598 = vmatprep.subr.bf16.mxu0 0
      %599 = vmatpush1.bf16.msra.mxu0 %v596
      %600 = vmatprep.subr.bf16.mxu0 0
      %601 = vmatpush1.bf16.msra.mxu0 0
      %602 = vmatprep.subr.bf16.mxu0 0
      %603 = vmatpush1.bf16.msra.mxu0 0
      %604 = vmatprep.subr.bf16.mxu0 0
      %605 = vmatpush1.bf16.msra.mxu0 0
      %606 = vmatprep.subr.bf16.mxu0 0
      %607 = vmatpush1.bf16.msra.mxu0 0
      %608 = vmatprep.subr.bf16.mxu0 0
      %609 = vmatpush1.bf16.msra.mxu0 0
      %610 = vmatprep.subr.bf16.mxu0 0
      %611 = vmatpush1.bf16.msra.mxu0 0
      %612 = vmatprep.subr.bf16.mxu0 0
      %613 = vmatpush1.bf16.msra.mxu0 0
      %614 = vmatprep.subr.bf16.mxu0 0
      %615 = vmatpush1.bf16.msra.mxu0 0
      %616 = vmatprep.subr.bf16.mxu0 0
      %617 = vmatpush1.bf16.msra.mxu0 0
      %618 = vmatprep.subr.bf16.mxu0 0
      %619 = vmatpush1.bf16.msra.mxu0 0
      %620 = vmatprep.subr.bf16.mxu0 0
      %621 = vmatpush1.bf16.msra.mxu0 0
      %622 = vmatprep.subr.bf16.mxu0 0
      %623 = vmatpush1.bf16.msra.mxu0 0
      %624 = vmatprep.subr.bf16.mxu0 0
      %625 = vmatpush1.bf16.msra.mxu0 0
      %626 = vmatprep.subr.bf16.mxu0 0
      %627 = vmatpush1.bf16.msra.mxu0 0
      %628 = vmatprep.subr.bf16.mxu0 0
      %629 = vmatpush1.bf16.msra.mxu0 0
      %630 = vmatprep.mubr.bf16.mxu0 0
      %631 = vmatmul.mubr.bf16.gmra.mrb[0].mxu0 %v592
      %v632 = vpop.f32.mrb[0].mxu0
      %v633 = vadd.f32 0.0, %v632
      %v634 = vpop.f32.mrb[0].mxu0
      %v635 = vpop.f32.mrb[0].mxu0
      %v636 = vpop.f32.mrb[0].mxu0
      %637 = vdwg.mxu0
      %v638 = vmul.f32 %v633, %v588
      %v639 = vld [vmem:[%s2] sm:$0xff]
      %v640 = vpack.c.bf16 %v638, %v638
      %v641 = vpack.c.bf16 %v639, %v639
      %s642 = scalar_lea.vmem %s1, 96
      %v643 = vld [vmem:[%s642] sm:$0xff]
      %v644 = vld [vmem:[%s642 + $0x8] sm:$0xff]
      %v645 = vld [vmem:[%s642 + $0x10] sm:$0xff]
      %v646 = vld [vmem:[%s642 + $0x18] sm:$0xff]
      %v647 = vpack.c.bf16 %v644, %v643
      %v648 = vpack.c.bf16 %v646, %v645
      %649 = vmatprep.subr.bf16.mxu0 0
      %650 = vmatpush1.bf16.msra.mxu0 %v647
      %651 = vmatprep.subr.bf16.mxu0 0
      %652 = vmatpush1.bf16.msra.mxu0 %v648
      %653 = vmatprep.subr.bf16.mxu0 0
      %654 = vmatpush1.bf16.msra.mxu0 0
      %655 = vmatprep.subr.bf16.mxu0 0
      %656 = vmatpush1.bf16.msra.mxu0 0
      %657 = vmatprep.subr.bf16.mxu0 0
      %658 = vmatpush1.bf16.msra.mxu0 0
      %659 = vmatprep.subr.bf16.mxu0 0
      %660 = vmatpush1.bf16.msra.mxu0 0
      %661 = vmatprep.subr.bf16.mxu0 0
      %662 = vmatpush1.bf16.msra.mxu0 0
      %663 = vmatprep.subr.bf16.mxu0 0
      %664 = vmatpush1.bf16.msra.mxu0 0
      %665 = vmatprep.subr.bf16.mxu0 0
      %666 = vmatpush1.bf16.msra.mxu0 0
      %667 = vmatprep.subr.bf16.mxu0 0
      %668 = vmatpush1.bf16.msra.mxu0 0
      %669 = vmatprep.subr.bf16.mxu0 0
      %670 = vmatpush1.bf16.msra.mxu0 0
      %671 = vmatprep.subr.bf16.mxu0 0
      %672 = vmatpush1.bf16.msra.mxu0 0
      %673 = vmatprep.subr.bf16.mxu0 0
      %674 = vmatpush1.bf16.msra.mxu0 0
      %675 = vmatprep.subr.bf16.mxu0 0
      %676 = vmatpush1.bf16.msra.mxu0 0
      %677 = vmatprep.subr.bf16.mxu0 0
      %678 = vmatpush1.bf16.msra.mxu0 0
      %679 = vmatprep.subr.bf16.mxu0 0
      %680 = vmatpush1.bf16.msra.mxu0 0
      %681 = vmatprep.mubr.bf16.mxu0 0
      %682 = vmatmul.mubr.bf16.gmra.mrb[0].mxu0 %v393
      %v683 = vpop.f32.mrb[0].mxu0
      %v684 = vadd.f32 0.0, %v683
      %v685 = vpop.f32.mrb[0].mxu0
      %v686 = vpop.f32.mrb[0].mxu0
      %v687 = vpop.f32.mrb[0].mxu0
      %688 = vdwg.mxu0
      %s689 = scalar_lea.vmem %s1, 128
      %v690 = vld [vmem:[%s689] sm:$0xff]
      %v691 = vld [vmem:[%s689 + $0x8] sm:$0xff]
      %v692 = vld [vmem:[%s689 + $0x10] sm:$0xff]
      %v693 = vld [vmem:[%s689 + $0x18] sm:$0xff]
      %v694 = vpack.c.bf16 %v691, %v690
      %v695 = vpack.c.bf16 %v693, %v692
      %696 = vmatprep.subr.bf16.mxu0 0
      %697 = vmatpush1.bf16.msra.mxu0 %v694
      %698 = vmatprep.subr.bf16.mxu0 0
      %699 = vmatpush1.bf16.msra.mxu0 %v695
      %700 = vmatprep.subr.bf16.mxu0 0
      %701 = vmatpush1.bf16.msra.mxu0 0
      %702 = vmatprep.subr.bf16.mxu0 0
      %703 = vmatpush1.bf16.msra.mxu0 0
      %704 = vmatprep.subr.bf16.mxu0 0
      %705 = vmatpush1.bf16.msra.mxu0 0
      %706 = vmatprep.subr.bf16.mxu0 0
      %707 = vmatpush1.bf16.msra.mxu0 0
      %708 = vmatprep.subr.bf16.mxu0 0
      %709 = vmatpush1.bf16.msra.mxu0 0
      %710 = vmatprep.subr.bf16.mxu0 0
      %711 = vmatpush1.bf16.msra.mxu0 0
      %712 = vmatprep.subr.bf16.mxu0 0
      %713 = vmatpush1.bf16.msra.mxu0 0
      %714 = vmatprep.subr.bf16.mxu0 0
      %715 = vmatpush1.bf16.msra.mxu0 0
      %716 = vmatprep.subr.bf16.mxu0 0
      %717 = vmatpush1.bf16.msra.mxu0 0
      %718 = vmatprep.subr.bf16.mxu0 0
      %719 = vmatpush1.bf16.msra.mxu0 0
      %720 = vmatprep.subr.bf16.mxu0 0
      %721 = vmatpush1.bf16.msra.mxu0 0
      %722 = vmatprep.subr.bf16.mxu0 0
      %723 = vmatpush1.bf16.msra.mxu0 0
      %724 = vmatprep.subr.bf16.mxu0 0
      %725 = vmatpush1.bf16.msra.mxu0 0
      %726 = vmatprep.subr.bf16.mxu0 0
      %727 = vmatpush1.bf16.msra.mxu0 0
      %728 = vmatprep.mubr.bf16.mxu0 0
      %729 = vmatmul.mubr.bf16.gmra.mrb[0].mxu0 %v393
      %v730 = vpop.f32.mrb[0].mxu0
      %v731 = vadd.f32 0.0, %v730
      %v732 = vpop.f32.mrb[0].mxu0
      %v733 = vpop.f32.mrb[0].mxu0
      %v734 = vpop.f32.mrb[0].mxu0
      %735 = vdwg.mxu0
      %s736 = scalar_lea.vmem %s1, 160
      %v737 = vld [vmem:[%s736] sm:$0xff]
      %v738 = vld [vmem:[%s736 + $0x8] sm:$0xff]
      %v739 = vld [vmem:[%s736 + $0x10] sm:$0xff]
      %v740 = vld [vmem:[%s736 + $0x18] sm:$0xff]
      %v741 = vpack.c.bf16 %v738, %v737
      %v742 = vpack.c.bf16 %v740, %v739
      %743 = vmatprep.subr.bf16.mxu0 0
      %744 = vmatpush1.bf16.msra.mxu0 %v741
      %745 = vmatprep.subr.bf16.mxu0 0
      %746 = vmatpush1.bf16.msra.mxu0 %v742
      %747 = vmatprep.subr.bf16.mxu0 0
      %748 = vmatpush1.bf16.msra.mxu0 0
      %749 = vmatprep.subr.bf16.mxu0 0
      %750 = vmatpush1.bf16.msra.mxu0 0
      %751 = vmatprep.subr.bf16.mxu0 0
      %752 = vmatpush1.bf16.msra.mxu0 0
      %753 = vmatprep.subr.bf16.mxu0 0
      %754 = vmatpush1.bf16.msra.mxu0 0
      %755 = vmatprep.subr.bf16.mxu0 0
      %756 = vmatpush1.bf16.msra.mxu0 0
      %757 = vmatprep.subr.bf16.mxu0 0
      %758 = vmatpush1.bf16.msra.mxu0 0
      %759 = vmatprep.subr.bf16.mxu0 0
      %760 = vmatpush1.bf16.msra.mxu0 0
      %761 = vmatprep.subr.bf16.mxu0 0
      %762 = vmatpush1.bf16.msra.mxu0 0
      %763 = vmatprep.subr.bf16.mxu0 0
      %764 = vmatpush1.bf16.msra.mxu0 0
      %765 = vmatprep.subr.bf16.mxu0 0
      %766 = vmatpush1.bf16.msra.mxu0 0
      %767 = vmatprep.subr.bf16.mxu0 0
      %768 = vmatpush1.bf16.msra.mxu0 0
      %769 = vmatprep.subr.bf16.mxu0 0
      %770 = vmatpush1.bf16.msra.mxu0 0
      %771 = vmatprep.subr.bf16.mxu0 0
      %772 = vmatpush1.bf16.msra.mxu0 0
      %773 = vmatprep.subr.bf16.mxu0 0
      %774 = vmatpush1.bf16.msra.mxu0 0
      %775 = vmatprep.mubr.bf16.mxu0 0
      %776 = vmatmul.mubr.bf16.gmra.mrb[0].mxu0 %v393
      %v777 = vpop.f32.mrb[0].mxu0
      %v778 = vadd.f32 0.0, %v777
      %v779 = vpop.f32.mrb[0].mxu0
      %v780 = vpop.f32.mrb[0].mxu0
      %v781 = vpop.f32.mrb[0].mxu0
      %782 = vdwg.mxu0
      %v783 = vpack.c.bf16 %v684, %v684
      %v784 = vpack.c.bf16 %v731, %v731
      %v786 = vsel %vm531, %v783, 0
      %v789 = vsel %vm531, %v784, 0
      %791 = vmatprep.subr.bf16.mxu0 0
      %792 = vmatpush1.bf16.xpose.msra.mxu0 %v789
      %793 = vmatprep.subr.bf16.mxu0 0
      %794 = vmatpush1.bf16.xpose.msra.mxu0 0
      %795 = vmatprep.subr.bf16.mxu0 0
      %796 = vmatpush1.bf16.xpose.msra.mxu0 0
      %797 = vmatprep.subr.bf16.mxu0 0
      %798 = vmatpush1.bf16.xpose.msra.mxu0 0
      %799 = vmatprep.subr.bf16.mxu0 0
      %800 = vmatpush1.bf16.xpose.msra.mxu0 0
      %801 = vmatprep.subr.bf16.mxu0 0
      %802 = vmatpush1.bf16.xpose.msra.mxu0 0
      %803 = vmatprep.subr.bf16.mxu0 0
      %804 = vmatpush1.bf16.xpose.msra.mxu0 0
      %805 = vmatprep.subr.bf16.mxu0 0
      %806 = vmatpush1.bf16.xpose.msra.mxu0 0
      %807 = vmatprep.subr.bf16.mxu0 0
      %808 = vmatpush1.bf16.xpose.msra.mxu0 0
      %809 = vmatprep.subr.bf16.mxu0 0
      %810 = vmatpush1.bf16.xpose.msra.mxu0 0
      %811 = vmatprep.subr.bf16.mxu0 0
      %812 = vmatpush1.bf16.xpose.msra.mxu0 0
      %813 = vmatprep.subr.bf16.mxu0 0
      %814 = vmatpush1.bf16.xpose.msra.mxu0 0
      %815 = vmatprep.subr.bf16.mxu0 0
      %816 = vmatpush1.bf16.xpose.msra.mxu0 0
      %817 = vmatprep.subr.bf16.mxu0 0
      %818 = vmatpush1.bf16.xpose.msra.mxu0 0
      %819 = vmatprep.subr.bf16.mxu0 0
      %820 = vmatpush1.bf16.xpose.msra.mxu0 0
      %821 = vmatprep.subr.bf16.mxu0 0
      %822 = vmatpush1.bf16.xpose.msra.mxu0 0
      %823 = vmatprep.mubr.bf16.mxu0 0
      %824 = vmatmul.mubr.bf16.gmra.mrb[0].mxu0 %v786
      %v825 = vpop.f32.mrb[0].mxu0
      %v826 = vadd.f32 0.0, %v825
      %v827 = vpop.f32.mrb[0].mxu0
      %v828 = vpop.f32.mrb[0].mxu0
      %v829 = vpop.f32.mrb[0].mxu0
      %830 = vdwg.mxu0
      %v831 = vmul.f32 %v826, 0.35355338
      %v832 = vsel %vm531, %v831, -inf
      %833 = vmax.xlane.f32.xlu0 %v832
      %v834 = vpop.xlane.xlu0 %833
      %v835 = vsub.f32 %v831, %v834
      %v836 = vmul.f32 %v835, 1.442695
      %v837 = vpow.pop %v836
      %v838 = vsel %vm531, %v837, 0.0
      %839 = vadd.xlane.f32.xlu0 %v838
      %v840 = vpop.xlane.xlu0 %839
      %v841 = vrcp.pop %v840
      %v842 = vpack.c.bf16 %v837, %v837
      %v843 = vpack.c.bf16 %v778, %v778
      %v845 = vsel %vm531, %v842, 0
      %v848 = vsel %vm594, %v843, 0
      %850 = vmatprep.subr.bf16.mxu0 0
      %851 = vmatpush1.bf16.msra.mxu0 %v848
      %852 = vmatprep.subr.bf16.mxu0 0
      %853 = vmatpush1.bf16.msra.mxu0 0
      %854 = vmatprep.subr.bf16.mxu0 0
      %855 = vmatpush1.bf16.msra.mxu0 0
      %856 = vmatprep.subr.bf16.mxu0 0
      %857 = vmatpush1.bf16.msra.mxu0 0
      %858 = vmatprep.subr.bf16.mxu0 0
      %859 = vmatpush1.bf16.msra.mxu0 0
      %860 = vmatprep.subr.bf16.mxu0 0
      %861 = vmatpush1.bf16.msra.mxu0 0
      %862 = vmatprep.subr.bf16.mxu0 0
      %863 = vmatpush1.bf16.msra.mxu0 0
      %864 = vmatprep.subr.bf16.mxu0 0
      %865 = vmatpush1.bf16.msra.mxu0 0
      %866 = vmatprep.subr.bf16.mxu0 0
      %867 = vmatpush1.bf16.msra.mxu0 0
      %868 = vmatprep.subr.bf16.mxu0 0
      %869 = vmatpush1.bf16.msra.mxu0 0
      %870 = vmatprep.subr.bf16.mxu0 0
      %871 = vmatpush1.bf16.msra.mxu0 0
      %872 = vmatprep.subr.bf16.mxu0 0
      %873 = vmatpush1.bf16.msra.mxu0 0
      %874 = vmatprep.subr.bf16.mxu0 0
      %875 = vmatpush1.bf16.msra.mxu0 0
      %876 = vmatprep.subr.bf16.mxu0 0
      %877 = vmatpush1.bf16.msra.mxu0 0
      %878 = vmatprep.subr.bf16.mxu0 0
      %879 = vmatpush1.bf16.msra.mxu0 0
      %880 = vmatprep.subr.bf16.mxu0 0
      %881 = vmatpush1.bf16.msra.mxu0 0
      %882 = vmatprep.mubr.bf16.mxu0 0
      %883 = vmatmul.mubr.bf16.gmra.mrb[0].mxu0 %v845
      %v884 = vpop.f32.mrb[0].mxu0
      %v885 = vadd.f32 0.0, %v884
      %v886 = vpop.f32.mrb[0].mxu0
      %v887 = vpop.f32.mrb[0].mxu0
      %v888 = vpop.f32.mrb[0].mxu0
      %889 = vdwg.mxu0
      %v890 = vmul.f32 %v885, %v841
      %s891 = scalar_lea.vmem %s2, 8
      %v892 = vld [vmem:[%s891] sm:$0xff]
      %v893 = vpack.c.bf16 %v890, %v890
      %v894 = vpack.c.bf16 %v892, %v892
      %v896 = vsel %vm531, %v893, 0
      %v899 = vsel %vm594, %v894, 0
      %901 = vmatprep.subr.bf16.mxu0 0
      %902 = vmatpush1.bf16.msra.mxu0 %v899
      %903 = vmatprep.subr.bf16.mxu0 0
      %904 = vmatpush1.bf16.msra.mxu0 0
      %905 = vmatprep.subr.bf16.mxu0 0
      %906 = vmatpush1.bf16.msra.mxu0 0
      %907 = vmatprep.subr.bf16.mxu0 0
      %908 = vmatpush1.bf16.msra.mxu0 0
      %909 = vmatprep.subr.bf16.mxu0 0
      %910 = vmatpush1.bf16.msra.mxu0 0
      %911 = vmatprep.subr.bf16.mxu0 0
      %912 = vmatpush1.bf16.msra.mxu0 0
      %913 = vmatprep.subr.bf16.mxu0 0
      %914 = vmatpush1.bf16.msra.mxu0 0
      %915 = vmatprep.subr.bf16.mxu0 0
      %916 = vmatpush1.bf16.msra.mxu0 0
      %917 = vmatprep.subr.bf16.mxu0 0
      %918 = vmatpush1.bf16.msra.mxu0 0
      %919 = vmatprep.subr.bf16.mxu0 0
      %920 = vmatpush1.bf16.msra.mxu0 0
      %921 = vmatprep.subr.bf16.mxu0 0
      %922 = vmatpush1.bf16.msra.mxu0 0
      %923 = vmatprep.subr.bf16.mxu0 0
      %924 = vmatpush1.bf16.msra.mxu0 0
      %925 = vmatprep.subr.bf16.mxu0 0
      %926 = vmatpush1.bf16.msra.mxu0 0
      %927 = vmatprep.subr.bf16.mxu0 0
      %928 = vmatpush1.bf16.msra.mxu0 0
      %929 = vmatprep.subr.bf16.mxu0 0
      %930 = vmatpush1.bf16.msra.mxu0 0
      %931 = vmatprep.subr.bf16.mxu0 0
      %932 = vmatpush1.bf16.msra.mxu0 0
      %933 = vmatprep.mubr.bf16.mxu0 0
      %934 = vmatmul.mubr.bf16.gmra.mrb[0].mxu0 %v896
      %v935 = vpop.f32.mrb[0].mxu0
      %v936 = vadd.f32 0.0, %v935
      %v937 = vpop.f32.mrb[0].mxu0
      %v938 = vpop.f32.mrb[0].mxu0
      %v939 = vpop.f32.mrb[0].mxu0
      %940 = vdwg.mxu0
      %v942 = vsel %vm531, %v640, 0
      %v945 = vsel %vm594, %v641, 0
      %947 = vmatprep.subr.bf16.mxu0 0
      %948 = vmatpush1.bf16.msra.mxu0 %v945
      %949 = vmatprep.subr.bf16.mxu0 0
      %950 = vmatpush1.bf16.msra.mxu0 0
      %951 = vmatprep.subr.bf16.mxu0 0
      %952 = vmatpush1.bf16.msra.mxu0 0
      %953 = vmatprep.subr.bf16.mxu0 0
      %954 = vmatpush1.bf16.msra.mxu0 0
      %955 = vmatprep.subr.bf16.mxu0 0
      %956 = vmatpush1.bf16.msra.mxu0 0
      %957 = vmatprep.subr.bf16.mxu0 0
      %958 = vmatpush1.bf16.msra.mxu0 0
      %959 = vmatprep.subr.bf16.mxu0 0
      %960 = vmatpush1.bf16.msra.mxu0 0
      %961 = vmatprep.subr.bf16.mxu0 0
      %962 = vmatpush1.bf16.msra.mxu0 0
      %963 = vmatprep.subr.bf16.mxu0 0
      %964 = vmatpush1.bf16.msra.mxu0 0
      %965 = vmatprep.subr.bf16.mxu0 0
      %966 = vmatpush1.bf16.msra.mxu0 0
      %967 = vmatprep.subr.bf16.mxu0 0
      %968 = vmatpush1.bf16.msra.mxu0 0
      %969 = vmatprep.subr.bf16.mxu0 0
      %970 = vmatpush1.bf16.msra.mxu0 0
      %971 = vmatprep.subr.bf16.mxu0 0
      %972 = vmatpush1.bf16.msra.mxu0 0
      %973 = vmatprep.subr.bf16.mxu0 0
      %974 = vmatpush1.bf16.msra.mxu0 0
      %975 = vmatprep.subr.bf16.mxu0 0
      %976 = vmatpush1.bf16.msra.mxu0 0
      %977 = vmatprep.subr.bf16.mxu0 0
      %978 = vmatpush1.bf16.msra.mxu0 0
      %979 = vmatprep.mubr.bf16.mxu0 0
      %980 = vmatmul.mubr.bf16.gmra.mrb[0].mxu0 %v942
      %v981 = vpop.f32.mrb[0].mxu0
      %v982 = vadd.f32 %v936, %v981
      %v983 = vpop.f32.mrb[0].mxu0
      %v984 = vpop.f32.mrb[0].mxu0
      %v985 = vpop.f32.mrb[0].mxu0
      %986 = vdwg.mxu0
      %s987 = scalar_lea.vmem %s1, 192
      %v988 = vld [vmem:[%s987] sm:$0xff]
      %v989 = vld [vmem:[%s987 + $0x8] sm:$0xff]
      %v990 = vld [vmem:[%s987 + $0x10] sm:$0xff]
      %v991 = vld [vmem:[%s987 + $0x18] sm:$0xff]
      %v992 = vpack.c.bf16 %v989, %v988
      %v993 = vpack.c.bf16 %v991, %v990
      %994 = vmatprep.subr.bf16.mxu0 0
      %995 = vmatpush1.bf16.msra.mxu0 %v992
      %996 = vmatprep.subr.bf16.mxu0 0
      %997 = vmatpush1.bf16.msra.mxu0 %v993
      %998 = vmatprep.subr.bf16.mxu0 0
      %999 = vmatpush1.bf16.msra.mxu0 0
      %1000 = vmatprep.subr.bf16.mxu0 0
      %1001 = vmatpush1.bf16.msra.mxu0 0
      %1002 = vmatprep.subr.bf16.mxu0 0
      %1003 = vmatpush1.bf16.msra.mxu0 0
      %1004 = vmatprep.subr.bf16.mxu0 0
      %1005 = vmatpush1.bf16.msra.mxu0 0
      %1006 = vmatprep.subr.bf16.mxu0 0
      %1007 = vmatpush1.bf16.msra.mxu0 0
      %1008 = vmatprep.subr.bf16.mxu0 0
      %1009 = vmatpush1.bf16.msra.mxu0 0
      %1010 = vmatprep.subr.bf16.mxu0 0
      %1011 = vmatpush1.bf16.msra.mxu0 0
      %1012 = vmatprep.subr.bf16.mxu0 0
      %1013 = vmatpush1.bf16.msra.mxu0 0
      %1014 = vmatprep.subr.bf16.mxu0 0
      %1015 = vmatpush1.bf16.msra.mxu0 0
      %1016 = vmatprep.subr.bf16.mxu0 0
      %1017 = vmatpush1.bf16.msra.mxu0 0
      %1018 = vmatprep.subr.bf16.mxu0 0
      %1019 = vmatpush1.bf16.msra.mxu0 0
      %1020 = vmatprep.subr.bf16.mxu0 0
      %1021 = vmatpush1.bf16.msra.mxu0 0
      %1022 = vmatprep.subr.bf16.mxu0 0
      %1023 = vmatpush1.bf16.msra.mxu0 0
      %1024 = vmatprep.subr.bf16.mxu0 0
      %1025 = vmatpush1.bf16.msra.mxu0 0
      %1026 = vmatprep.mubr.bf16.mxu0 0
      %1027 = vmatmul.mubr.bf16.gmra.mrb[0].mxu0 %v393
      %v1028 = vpop.f32.mrb[0].mxu0
      %v1029 = vadd.f32 0.0, %v1028
      %v1030 = vpop.f32.mrb[0].mxu0
      %v1031 = vpop.f32.mrb[0].mxu0
      %v1032 = vpop.f32.mrb[0].mxu0
      %1033 = vdwg.mxu0
      %s1034 = scalar_lea.vmem %s1, 224
      %v1035 = vld [vmem:[%s1034] sm:$0xff]
      %v1036 = vld [vmem:[%s1034 + $0x8] sm:$0xff]
      %v1037 = vld [vmem:[%s1034 + $0x10] sm:$0xff]
      %v1038 = vld [vmem:[%s1034 + $0x18] sm:$0xff]
      %v1039 = vpack.c.bf16 %v1036, %v1035
      %v1040 = vpack.c.bf16 %v1038, %v1037
      %1041 = vmatprep.subr.bf16.mxu0 0
      %1042 = vmatpush1.bf16.msra.mxu0 %v1039
      %1043 = vmatprep.subr.bf16.mxu0 0
      %1044 = vmatpush1.bf16.msra.mxu0 %v1040
      %1045 = vmatprep.subr.bf16.mxu0 0
      %1046 = vmatpush1.bf16.msra.mxu0 0
      %1047 = vmatprep.subr.bf16.mxu0 0
      %1048 = vmatpush1.bf16.msra.mxu0 0
      %1049 = vmatprep.subr.bf16.mxu0 0
      %1050 = vmatpush1.bf16.msra.mxu0 0
      %1051 = vmatprep.subr.bf16.mxu0 0
      %1052 = vmatpush1.bf16.msra.mxu0 0
      %1053 = vmatprep.subr.bf16.mxu0 0
      %1054 = vmatpush1.bf16.msra.mxu0 0
      %1055 = vmatprep.subr.bf16.mxu0 0
      %1056 = vmatpush1.bf16.msra.mxu0 0
      %1057 = vmatprep.subr.bf16.mxu0 0
      %1058 = vmatpush1.bf16.msra.mxu0 0
      %1059 = vmatprep.subr.bf16.mxu0 0
      %1060 = vmatpush1.bf16.msra.mxu0 0
      %1061 = vmatprep.subr.bf16.mxu0 0
      %1062 = vmatpush1.bf16.msra.mxu0 0
      %1063 = vmatprep.subr.bf16.mxu0 0
      %1064 = vmatpush1.bf16.msra.mxu0 0
      %1065 = vmatprep.subr.bf16.mxu0 0
      %1066 = vmatpush1.bf16.msra.mxu0 0
      %1067 = vmatprep.subr.bf16.mxu0 0
      %1068 = vmatpush1.bf16.msra.mxu0 0
      %1069 = vmatprep.subr.bf16.mxu0 0
      %1070 = vmatpush1.bf16.msra.mxu0 0
      %1071 = vmatprep.subr.bf16.mxu0 0
      %1072 = vmatpush1.bf16.msra.mxu0 0
      %1073 = vmatprep.mubr.bf16.mxu0 0
      %1074 = vmatmul.mubr.bf16.gmra.mrb[0].mxu0 %v393
      %v1075 = vpop.f32.mrb[0].mxu0
      %v1076 = vadd.f32 0.0, %v1075
      %v1077 = vpop.f32.mrb[0].mxu0
      %v1078 = vpop.f32.mrb[0].mxu0
      %v1079 = vpop.f32.mrb[0].mxu0
      %1080 = vdwg.mxu0
      %s1081 = scalar_lea.vmem %s1, 256
      %v1082 = vld [vmem:[%s1081] sm:$0xff]
      %v1083 = vld [vmem:[%s1081 + $0x8] sm:$0xff]
      %v1084 = vld [vmem:[%s1081 + $0x10] sm:$0xff]
      %v1085 = vld [vmem:[%s1081 + $0x18] sm:$0xff]
      %v1086 = vpack.c.bf16 %v1083, %v1082
      %v1087 = vpack.c.bf16 %v1085, %v1084
      %1088 = vmatprep.subr.bf16.mxu0 0
      %1089 = vmatpush1.bf16.msra.mxu0 %v1086
      %1090 = vmatprep.subr.bf16.mxu0 0
      %1091 = vmatpush1.bf16.msra.mxu0 %v1087
      %1092 = vmatprep.subr.bf16.mxu0 0
      %1093 = vmatpush1.bf16.msra.mxu0 0
      %1094 = vmatprep.subr.bf16.mxu0 0
      %1095 = vmatpush1.bf16.msra.mxu0 0
      %1096 = vmatprep.subr.bf16.mxu0 0
      %1097 = vmatpush1.bf16.msra.mxu0 0
      %1098 = vmatprep.subr.bf16.mxu0 0
      %1099 = vmatpush1.bf16.msra.mxu0 0
      %1100 = vmatprep.subr.bf16.mxu0 0
      %1101 = vmatpush1.bf16.msra.mxu0 0
      %1102 = vmatprep.subr.bf16.mxu0 0
      %1103 = vmatpush1.bf16.msra.mxu0 0
      %1104 = vmatprep.subr.bf16.mxu0 0
      %1105 = vmatpush1.bf16.msra.mxu0 0
      %1106 = vmatprep.subr.bf16.mxu0 0
      %1107 = vmatpush1.bf16.msra.mxu0 0
      %1108 = vmatprep.subr.bf16.mxu0 0
      %1109 = vmatpush1.bf16.msra.mxu0 0
      %1110 = vmatprep.subr.bf16.mxu0 0
      %1111 = vmatpush1.bf16.msra.mxu0 0
      %1112 = vmatprep.subr.bf16.mxu0 0
      %1113 = vmatpush1.bf16.msra.mxu0 0
      %1114 = vmatprep.subr.bf16.mxu0 0
      %1115 = vmatpush1.bf16.msra.mxu0 0
      %1116 = vmatprep.subr.bf16.mxu0 0
      %1117 = vmatpush1.bf16.msra.mxu0 0
      %1118 = vmatprep.subr.bf16.mxu0 0
      %1119 = vmatpush1.bf16.msra.mxu0 0
      %1120 = vmatprep.mubr.bf16.mxu0 0
      %1121 = vmatmul.mubr.bf16.gmra.mrb[0].mxu0 %v393
      %v1122 = vpop.f32.mrb[0].mxu0
      %v1123 = vadd.f32 0.0, %v1122
      %v1124 = vpop.f32.mrb[0].mxu0
      %v1125 = vpop.f32.mrb[0].mxu0
      %v1126 = vpop.f32.mrb[0].mxu0
      %1127 = vdwg.mxu0
      %v1128 = vpack.c.bf16 %v1029, %v1029
      %v1129 = vpack.c.bf16 %v1076, %v1076
      %v1131 = vsel %vm531, %v1128, 0
      %v1134 = vsel %vm531, %v1129, 0
      %1136 = vmatprep.subr.bf16.mxu0 0
      %1137 = vmatpush1.bf16.xpose.msra.mxu0 %v1134
      %1138 = vmatprep.subr.bf16.mxu0 0
      %1139 = vmatpush1.bf16.xpose.msra.mxu0 0
      %1140 = vmatprep.subr.bf16.mxu0 0
      %1141 = vmatpush1.bf16.xpose.msra.mxu0 0
      %1142 = vmatprep.subr.bf16.mxu0 0
      %1143 = vmatpush1.bf16.xpose.msra.mxu0 0
      %1144 = vmatprep.subr.bf16.mxu0 0
      %1145 = vmatpush1.bf16.xpose.msra.mxu0 0
      %1146 = vmatprep.subr.bf16.mxu0 0
      %1147 = vmatpush1.bf16.xpose.msra.mxu0 0
      %1148 = vmatprep.subr.bf16.mxu0 0
      %1149 = vmatpush1.bf16.xpose.msra.mxu0 0
      %1150 = vmatprep.subr.bf16.mxu0 0
      %1151 = vmatpush1.bf16.xpose.msra.mxu0 0
      %1152 = vmatprep.subr.bf16.mxu0 0
      %1153 = vmatpush1.bf16.xpose.msra.mxu0 0
      %1154 = vmatprep.subr.bf16.mxu0 0
      %1155 = vmatpush1.bf16.xpose.msra.mxu0 0
      %1156 = vmatprep.subr.bf16.mxu0 0
      %1157 = vmatpush1.bf16.xpose.msra.mxu0 0
      %1158 = vmatprep.subr.bf16.mxu0 0
      %1159 = vmatpush1.bf16.xpose.msra.mxu0 0
      %1160 = vmatprep.subr.bf16.mxu0 0
      %1161 = vmatpush1.bf16.xpose.msra.mxu0 0
      %1162 = vmatprep.subr.bf16.mxu0 0
      %1163 = vmatpush1.bf16.xpose.msra.mxu0 0
      %1164 = vmatprep.subr.bf16.mxu0 0
      %1165 = vmatpush1.bf16.xpose.msra.mxu0 0
      %1166 = vmatprep.subr.bf16.mxu0 0
      %1167 = vmatpush1.bf16.xpose.msra.mxu0 0
      %1168 = vmatprep.mubr.bf16.mxu0 0
      %1169 = vmatmul.mubr.bf16.gmra.mrb[0].mxu0 %v1131
      %v1170 = vpop.f32.mrb[0].mxu0
      %v1171 = vadd.f32 0.0, %v1170
      %v1172 = vpop.f32.mrb[0].mxu0
      %v1173 = vpop.f32.mrb[0].mxu0
      %v1174 = vpop.f32.mrb[0].mxu0
      %1175 = vdwg.mxu0
      %v1176 = vmul.f32 %v1171, 0.35355338
      %v1177 = vsel %vm531, %v1176, -inf
      %1178 = vmax.xlane.f32.xlu0 %v1177
      %v1179 = vpop.xlane.xlu0 %1178
      %v1180 = vsub.f32 %v1176, %v1179
      %v1181 = vmul.f32 %v1180, 1.442695
      %v1182 = vpow.pop %v1181
      %v1183 = vsel %vm531, %v1182, 0.0
      %1184 = vadd.xlane.f32.xlu0 %v1183
      %v1185 = vpop.xlane.xlu0 %1184
      %v1186 = vrcp.pop %v1185
      %v1187 = vpack.c.bf16 %v1182, %v1182
      %v1188 = vpack.c.bf16 %v1123, %v1123
      %v1190 = vsel %vm531, %v1187, 0
      %v1193 = vsel %vm594, %v1188, 0
      %1195 = vmatprep.subr.bf16.mxu0 0
      %1196 = vmatpush1.bf16.msra.mxu0 %v1193
      %1197 = vmatprep.subr.bf16.mxu0 0
      %1198 = vmatpush1.bf16.msra.mxu0 0
      %1199 = vmatprep.subr.bf16.mxu0 0
      %1200 = vmatpush1.bf16.msra.mxu0 0
      %1201 = vmatprep.subr.bf16.mxu0 0
      %1202 = vmatpush1.bf16.msra.mxu0 0
      %1203 = vmatprep.subr.bf16.mxu0 0
      %1204 = vmatpush1.bf16.msra.mxu0 0
      %1205 = vmatprep.subr.bf16.mxu0 0
      %1206 = vmatpush1.bf16.msra.mxu0 0
      %1207 = vmatprep.subr.bf16.mxu0 0
      %1208 = vmatpush1.bf16.msra.mxu0 0
      %1209 = vmatprep.subr.bf16.mxu0 0
      %1210 = vmatpush1.bf16.msra.mxu0 0
      %1211 = vmatprep.subr.bf16.mxu0 0
      %1212 = vmatpush1.bf16.msra.mxu0 0
      %1213 = vmatprep.subr.bf16.mxu0 0
      %1214 = vmatpush1.bf16.msra.mxu0 0
      %1215 = vmatprep.subr.bf16.mxu0 0
      %1216 = vmatpush1.bf16.msra.mxu0 0
      %1217 = vmatprep.subr.bf16.mxu0 0
      %1218 = vmatpush1.bf16.msra.mxu0 0
      %1219 = vmatprep.subr.bf16.mxu0 0
      %1220 = vmatpush1.bf16.msra.mxu0 0
      %1221 = vmatprep.subr.bf16.mxu0 0
      %1222 = vmatpush1.bf16.msra.mxu0 0
      %1223 = vmatprep.subr.bf16.mxu0 0
      %1224 = vmatpush1.bf16.msra.mxu0 0
      %1225 = vmatprep.subr.bf16.mxu0 0
      %1226 = vmatpush1.bf16.msra.mxu0 0
      %1227 = vmatprep.mubr.bf16.mxu0 0
      %1228 = vmatmul.mubr.bf16.gmra.mrb[0].mxu0 %v1190
      %v1229 = vpop.f32.mrb[0].mxu0
      %v1230 = vadd.f32 0.0, %v1229
      %v1231 = vpop.f32.mrb[0].mxu0
      %v1232 = vpop.f32.mrb[0].mxu0
      %v1233 = vpop.f32.mrb[0].mxu0
      %1234 = vdwg.mxu0
      %v1235 = vmul.f32 %v1230, %v1186
      %s1236 = scalar_lea.vmem %s2, 16
      %v1237 = vld [vmem:[%s1236] sm:$0xff]
      %v1238 = vpack.c.bf16 %v1235, %v1235
      %v1239 = vpack.c.bf16 %v1237, %v1237
      %v1241 = vsel %vm531, %v1238, 0
      %v1244 = vsel %vm594, %v1239, 0
      %1246 = vmatprep.subr.bf16.mxu0 0
      %1247 = vmatpush1.bf16.msra.mxu0 %v1244
      %1248 = vmatprep.subr.bf16.mxu0 0
      %1249 = vmatpush1.bf16.msra.mxu0 0
      %1250 = vmatprep.subr.bf16.mxu0 0
      %1251 = vmatpush1.bf16.msra.mxu0 0
      %1252 = vmatprep.subr.bf16.mxu0 0
      %1253 = vmatpush1.bf16.msra.mxu0 0
      %1254 = vmatprep.subr.bf16.mxu0 0
      %1255 = vmatpush1.bf16.msra.mxu0 0
      %1256 = vmatprep.subr.bf16.mxu0 0
      %1257 = vmatpush1.bf16.msra.mxu0 0
      %1258 = vmatprep.subr.bf16.mxu0 0
      %1259 = vmatpush1.bf16.msra.mxu0 0
      %1260 = vmatprep.subr.bf16.mxu0 0
      %1261 = vmatpush1.bf16.msra.mxu0 0
      %1262 = vmatprep.subr.bf16.mxu0 0
      %1263 = vmatpush1.bf16.msra.mxu0 0
      %1264 = vmatprep.subr.bf16.mxu0 0
      %1265 = vmatpush1.bf16.msra.mxu0 0
      %1266 = vmatprep.subr.bf16.mxu0 0
      %1267 = vmatpush1.bf16.msra.mxu0 0
      %1268 = vmatprep.subr.bf16.mxu0 0
      %1269 = vmatpush1.bf16.msra.mxu0 0
      %1270 = vmatprep.subr.bf16.mxu0 0
      %1271 = vmatpush1.bf16.msra.mxu0 0
      %1272 = vmatprep.subr.bf16.mxu0 0
      %1273 = vmatpush1.bf16.msra.mxu0 0
      %1274 = vmatprep.subr.bf16.mxu0 0
      %1275 = vmatpush1.bf16.msra.mxu0 0
      %1276 = vmatprep.subr.bf16.mxu0 0
      %1277 = vmatpush1.bf16.msra.mxu0 0
      %1278 = vmatprep.mubr.bf16.mxu0 0
      %1279 = vmatmul.mubr.bf16.gmra.mrb[0].mxu0 %v1241
      %v1280 = vpop.f32.mrb[0].mxu0
      %v1281 = vadd.f32 0.0, %v1280
      %v1282 = vpop.f32.mrb[0].mxu0
      %v1283 = vpop.f32.mrb[0].mxu0
      %v1284 = vpop.f32.mrb[0].mxu0
      %1285 = vdwg.mxu0
      %v1286 = vadd.f32 %v982, %v1281
      %s1287 = scalar_lea.vmem %s1, 288
      %v1288 = vld [vmem:[%s1287] sm:$0xff]
      %v1289 = vld [vmem:[%s1287 + $0x8] sm:$0xff]
      %v1290 = vld [vmem:[%s1287 + $0x10] sm:$0xff]
      %v1291 = vld [vmem:[%s1287 + $0x18] sm:$0xff]
      %v1292 = vpack.c.bf16 %v1289, %v1288
      %v1293 = vpack.c.bf16 %v1291, %v1290
      %1294 = vmatprep.subr.bf16.mxu0 0
      %1295 = vmatpush1.bf16.msra.mxu0 %v1292
      %1296 = vmatprep.subr.bf16.mxu0 0
      %1297 = vmatpush1.bf16.msra.mxu0 %v1293
      %1298 = vmatprep.subr.bf16.mxu0 0
      %1299 = vmatpush1.bf16.msra.mxu0 0
      %1300 = vmatprep.subr.bf16.mxu0 0
      %1301 = vmatpush1.bf16.msra.mxu0 0
      %1302 = vmatprep.subr.bf16.mxu0 0
      %1303 = vmatpush1.bf16.msra.mxu0 0
      %1304 = vmatprep.subr.bf16.mxu0 0
      %1305 = vmatpush1.bf16.msra.mxu0 0
      %1306 = vmatprep.subr.bf16.mxu0 0
      %1307 = vmatpush1.bf16.msra.mxu0 0
      %1308 = vmatprep.subr.bf16.mxu0 0
      %1309 = vmatpush1.bf16.msra.mxu0 0
      %1310 = vmatprep.subr.bf16.mxu0 0
      %1311 = vmatpush1.bf16.msra.mxu0 0
      %1312 = vmatprep.subr.bf16.mxu0 0
      %1313 = vmatpush1.bf16.msra.mxu0 0
      %1314 = vmatprep.subr.bf16.mxu0 0
      %1315 = vmatpush1.bf16.msra.mxu0 0
      %1316 = vmatprep.subr.bf16.mxu0 0
      %1317 = vmatpush1.bf16.msra.mxu0 0
      %1318 = vmatprep.subr.bf16.mxu0 0
      %1319 = vmatpush1.bf16.msra.mxu0 0
      %1320 = vmatprep.subr.bf16.mxu0 0
      %1321 = vmatpush1.bf16.msra.mxu0 0
      %1322 = vmatprep.subr.bf16.mxu0 0
      %1323 = vmatpush1.bf16.msra.mxu0 0
      %1324 = vmatprep.subr.bf16.mxu0 0
      %1325 = vmatpush1.bf16.msra.mxu0 0
      %1326 = vmatprep.mubr.bf16.mxu0 0
      %1327 = vmatmul.mubr.bf16.gmra.mrb[0].mxu0 %v393
      %v1328 = vpop.f32.mrb[0].mxu0
      %v1329 = vadd.f32 0.0, %v1328
      %v1330 = vpop.f32.mrb[0].mxu0
      %v1331 = vpop.f32.mrb[0].mxu0
      %v1332 = vpop.f32.mrb[0].mxu0
      %1333 = vdwg.mxu0
      %s1334 = scalar_lea.vmem %s1, 320
      %v1335 = vld [vmem:[%s1334] sm:$0xff]
      %v1336 = vld [vmem:[%s1334 + $0x8] sm:$0xff]
      %v1337 = vld [vmem:[%s1334 + $0x10] sm:$0xff]
      %v1338 = vld [vmem:[%s1334 + $0x18] sm:$0xff]
      %v1339 = vpack.c.bf16 %v1336, %v1335
      %v1340 = vpack.c.bf16 %v1338, %v1337
      %1341 = vmatprep.subr.bf16.mxu0 0
      %1342 = vmatpush1.bf16.msra.mxu0 %v1339
      %1343 = vmatprep.subr.bf16.mxu0 0
      %1344 = vmatpush1.bf16.msra.mxu0 %v1340
      %1345 = vmatprep.subr.bf16.mxu0 0
      %1346 = vmatpush1.bf16.msra.mxu0 0
      %1347 = vmatprep.subr.bf16.mxu0 0
      %1348 = vmatpush1.bf16.msra.mxu0 0
      %1349 = vmatprep.subr.bf16.mxu0 0
      %1350 = vmatpush1.bf16.msra.mxu0 0
      %1351 = vmatprep.subr.bf16.mxu0 0
      %1352 = vmatpush1.bf16.msra.mxu0 0
      %1353 = vmatprep.subr.bf16.mxu0 0
      %1354 = vmatpush1.bf16.msra.mxu0 0
      %1355 = vmatprep.subr.bf16.mxu0 0
      %1356 = vmatpush1.bf16.msra.mxu0 0
      %1357 = vmatprep.subr.bf16.mxu0 0
      %1358 = vmatpush1.bf16.msra.mxu0 0
      %1359 = vmatprep.subr.bf16.mxu0 0
      %1360 = vmatpush1.bf16.msra.mxu0 0
      %1361 = vmatprep.subr.bf16.mxu0 0
      %1362 = vmatpush1.bf16.msra.mxu0 0
      %1363 = vmatprep.subr.bf16.mxu0 0
      %1364 = vmatpush1.bf16.msra.mxu0 0
      %1365 = vmatprep.subr.bf16.mxu0 0
      %1366 = vmatpush1.bf16.msra.mxu0 0
      %1367 = vmatprep.subr.bf16.mxu0 0
      %1368 = vmatpush1.bf16.msra.mxu0 0
      %1369 = vmatprep.subr.bf16.mxu0 0
      %1370 = vmatpush1.bf16.msra.mxu0 0
      %1371 = vmatprep.subr.bf16.mxu0 0
      %1372 = vmatpush1.bf16.msra.mxu0 0
      %1373 = vmatprep.mubr.bf16.mxu0 0
      %1374 = vmatmul.mubr.bf16.gmra.mrb[0].mxu0 %v393
      %v1375 = vpop.f32.mrb[0].mxu0
      %v1376 = vadd.f32 0.0, %v1375
      %v1377 = vpop.f32.mrb[0].mxu0
      %v1378 = vpop.f32.mrb[0].mxu0
      %v1379 = vpop.f32.mrb[0].mxu0
      %1380 = vdwg.mxu0
      %s1381 = scalar_lea.vmem %s1, 352
      %v1382 = vld [vmem:[%s1381] sm:$0xff]
      %v1383 = vld [vmem:[%s1381 + $0x8] sm:$0xff]
      %v1384 = vld [vmem:[%s1381 + $0x10] sm:$0xff]
      %v1385 = vld [vmem:[%s1381 + $0x18] sm:$0xff]
      %v1386 = vpack.c.bf16 %v1383, %v1382
      %v1387 = vpack.c.bf16 %v1385, %v1384
      %1388 = vmatprep.subr.bf16.mxu0 0
      %1389 = vmatpush1.bf16.msra.mxu0 %v1386
      %1390 = vmatprep.subr.bf16.mxu0 0
      %1391 = vmatpush1.bf16.msra.mxu0 %v1387
      %1392 = vmatprep.subr.bf16.mxu0 0
      %1393 = vmatpush1.bf16.msra.mxu0 0
      %1394 = vmatprep.subr.bf16.mxu0 0
      %1395 = vmatpush1.bf16.msra.mxu0 0
      %1396 = vmatprep.subr.bf16.mxu0 0
      %1397 = vmatpush1.bf16.msra.mxu0 0
      %1398 = vmatprep.subr.bf16.mxu0 0
      %1399 = vmatpush1.bf16.msra.mxu0 0
      %1400 = vmatprep.subr.bf16.mxu0 0
      %1401 = vmatpush1.bf16.msra.mxu0 0
      %1402 = vmatprep.subr.bf16.mxu0 0
      %1403 = vmatpush1.bf16.msra.mxu0 0
      %1404 = vmatprep.subr.bf16.mxu0 0
      %1405 = vmatpush1.bf16.msra.mxu0 0
      %1406 = vmatprep.subr.bf16.mxu0 0
      %1407 = vmatpush1.bf16.msra.mxu0 0
      %1408 = vmatprep.subr.bf16.mxu0 0
      %1409 = vmatpush1.bf16.msra.mxu0 0
      %1410 = vmatprep.subr.bf16.mxu0 0
      %1411 = vmatpush1.bf16.msra.mxu0 0
      %1412 = vmatprep.subr.bf16.mxu0 0
      %1413 = vmatpush1.bf16.msra.mxu0 0
      %1414 = vmatprep.subr.bf16.mxu0 0
      %1415 = vmatpush1.bf16.msra.mxu0 0
      %1416 = vmatprep.subr.bf16.mxu0 0
      %1417 = vmatpush1.bf16.msra.mxu0 0
      %1418 = vmatprep.subr.bf16.mxu0 0
      %1419 = vmatpush1.bf16.msra.mxu0 0
      %1420 = vmatprep.mubr.bf16.mxu0 0
      %1421 = vmatmul.mubr.bf16.gmra.mrb[0].mxu0 %v393
      %v1422 = vpop.f32.mrb[0].mxu0
      %v1423 = vadd.f32 0.0, %v1422
      %v1424 = vpop.f32.mrb[0].mxu0
      %v1425 = vpop.f32.mrb[0].mxu0
      %v1426 = vpop.f32.mrb[0].mxu0
      %1427 = vdwg.mxu0
      %v1428 = vpack.c.bf16 %v1329, %v1329
      %v1429 = vpack.c.bf16 %v1376, %v1376
      %v1431 = vsel %vm531, %v1428, 0
      %v1434 = vsel %vm531, %v1429, 0
      %1436 = vmatprep.subr.bf16.mxu0 0
      %1437 = vmatpush1.bf16.xpose.msra.mxu0 %v1434
      %1438 = vmatprep.subr.bf16.mxu0 0
      %1439 = vmatpush1.bf16.xpose.msra.mxu0 0
      %1440 = vmatprep.subr.bf16.mxu0 0
      %1441 = vmatpush1.bf16.xpose.msra.mxu0 0
      %1442 = vmatprep.subr.bf16.mxu0 0
      %1443 = vmatpush1.bf16.xpose.msra.mxu0 0
      %1444 = vmatprep.subr.bf16.mxu0 0
      %1445 = vmatpush1.bf16.xpose.msra.mxu0 0
      %1446 = vmatprep.subr.bf16.mxu0 0
      %1447 = vmatpush1.bf16.xpose.msra.mxu0 0
      %1448 = vmatprep.subr.bf16.mxu0 0
      %1449 = vmatpush1.bf16.xpose.msra.mxu0 0
      %1450 = vmatprep.subr.bf16.mxu0 0
      %1451 = vmatpush1.bf16.xpose.msra.mxu0 0
      %1452 = vmatprep.subr.bf16.mxu0 0
      %1453 = vmatpush1.bf16.xpose.msra.mxu0 0
      %1454 = vmatprep.subr.bf16.mxu0 0
      %1455 = vmatpush1.bf16.xpose.msra.mxu0 0
      %1456 = vmatprep.subr.bf16.mxu0 0
      %1457 = vmatpush1.bf16.xpose.msra.mxu0 0
      %1458 = vmatprep.subr.bf16.mxu0 0
      %1459 = vmatpush1.bf16.xpose.msra.mxu0 0
      %1460 = vmatprep.subr.bf16.mxu0 0
      %1461 = vmatpush1.bf16.xpose.msra.mxu0 0
      %1462 = vmatprep.subr.bf16.mxu0 0
      %1463 = vmatpush1.bf16.xpose.msra.mxu0 0
      %1464 = vmatprep.subr.bf16.mxu0 0
      %1465 = vmatpush1.bf16.xpose.msra.mxu0 0
      %1466 = vmatprep.subr.bf16.mxu0 0
      %1467 = vmatpush1.bf16.xpose.msra.mxu0 0
      %1468 = vmatprep.mubr.bf16.mxu0 0
      %1469 = vmatmul.mubr.bf16.gmra.mrb[0].mxu0 %v1431
      %v1470 = vpop.f32.mrb[0].mxu0
      %v1471 = vadd.f32 0.0, %v1470
      %v1472 = vpop.f32.mrb[0].mxu0
      %v1473 = vpop.f32.mrb[0].mxu0
      %v1474 = vpop.f32.mrb[0].mxu0
      %1475 = vdwg.mxu0
      %v1476 = vmul.f32 %v1471, 0.35355338
      %v1477 = vsel %vm531, %v1476, -inf
      %1478 = vmax.xlane.f32.xlu0 %v1477
      %v1479 = vpop.xlane.xlu0 %1478
      %v1480 = vsub.f32 %v1476, %v1479
      %v1481 = vmul.f32 %v1480, 1.442695
      %v1482 = vpow.pop %v1481
      %v1483 = vsel %vm531, %v1482, 0.0
      %1484 = vadd.xlane.f32.xlu0 %v1483
      %v1485 = vpop.xlane.xlu0 %1484
      %v1486 = vrcp.pop %v1485
      %v1487 = vpack.c.bf16 %v1482, %v1482
      %v1488 = vpack.c.bf16 %v1423, %v1423
      %v1490 = vsel %vm531, %v1487, 0
      %v1493 = vsel %vm594, %v1488, 0
      %1495 = vmatprep.subr.bf16.mxu0 0
      %1496 = vmatpush1.bf16.msra.mxu0 %v1493
      %1497 = vmatprep.subr.bf16.mxu0 0
      %1498 = vmatpush1.bf16.msra.mxu0 0
      %1499 = vmatprep.subr.bf16.mxu0 0
      %1500 = vmatpush1.bf16.msra.mxu0 0
      %1501 = vmatprep.subr.bf16.mxu0 0
      %1502 = vmatpush1.bf16.msra.mxu0 0
      %1503 = vmatprep.subr.bf16.mxu0 0
      %1504 = vmatpush1.bf16.msra.mxu0 0
      %1505 = vmatprep.subr.bf16.mxu0 0
      %1506 = vmatpush1.bf16.msra.mxu0 0
      %1507 = vmatprep.subr.bf16.mxu0 0
      %1508 = vmatpush1.bf16.msra.mxu0 0
      %1509 = vmatprep.subr.bf16.mxu0 0
      %1510 = vmatpush1.bf16.msra.mxu0 0
      %1511 = vmatprep.subr.bf16.mxu0 0
      %1512 = vmatpush1.bf16.msra.mxu0 0
      %1513 = vmatprep.subr.bf16.mxu0 0
      %1514 = vmatpush1.bf16.msra.mxu0 0
      %1515 = vmatprep.subr.bf16.mxu0 0
      %1516 = vmatpush1.bf16.msra.mxu0 0
      %1517 = vmatprep.subr.bf16.mxu0 0
      %1518 = vmatpush1.bf16.msra.mxu0 0
      %1519 = vmatprep.subr.bf16.mxu0 0
      %1520 = vmatpush1.bf16.msra.mxu0 0
      %1521 = vmatprep.subr.bf16.mxu0 0
      %1522 = vmatpush1.bf16.msra.mxu0 0
      %1523 = vmatprep.subr.bf16.mxu0 0
      %1524 = vmatpush1.bf16.msra.mxu0 0
      %1525 = vmatprep.subr.bf16.mxu0 0
      %1526 = vmatpush1.bf16.msra.mxu0 0
      %1527 = vmatprep.mubr.bf16.mxu0 0
      %1528 = vmatmul.mubr.bf16.gmra.mrb[0].mxu0 %v1490
      %v1529 = vpop.f32.mrb[0].mxu0
      %v1530 = vadd.f32 0.0, %v1529
      %v1531 = vpop.f32.mrb[0].mxu0
      %v1532 = vpop.f32.mrb[0].mxu0
      %v1533 = vpop.f32.mrb[0].mxu0
      %1534 = vdwg.mxu0
      %v1535 = vmul.f32 %v1530, %v1486
      %s1536 = scalar_lea.vmem %s2, 24
      %v1537 = vld [vmem:[%s1536] sm:$0xff]
      %v1538 = vpack.c.bf16 %v1535, %v1535
      %v1539 = vpack.c.bf16 %v1537, %v1537
      %v1541 = vsel %vm531, %v1538, 0
      %v1544 = vsel %vm594, %v1539, 0
      %1546 = vmatprep.subr.bf16.mxu0 0
      %1547 = vmatpush1.bf16.msra.mxu0 %v1544
      %1548 = vmatprep.subr.bf16.mxu0 0
      %1549 = vmatpush1.bf16.msra.mxu0 0
      %1550 = vmatprep.subr.bf16.mxu0 0
      %1551 = vmatpush1.bf16.msra.mxu0 0
      %1552 = vmatprep.subr.bf16.mxu0 0
      %1553 = vmatpush1.bf16.msra.mxu0 0
      %1554 = vmatprep.subr.bf16.mxu0 0
      %1555 = vmatpush1.bf16.msra.mxu0 0
      %1556 = vmatprep.subr.bf16.mxu0 0
      %1557 = vmatpush1.bf16.msra.mxu0 0
      %1558 = vmatprep.subr.bf16.mxu0 0
      %1559 = vmatpush1.bf16.msra.mxu0 0
      %1560 = vmatprep.subr.bf16.mxu0 0
      %1561 = vmatpush1.bf16.msra.mxu0 0
      %1562 = vmatprep.subr.bf16.mxu0 0
      %1563 = vmatpush1.bf16.msra.mxu0 0
      %1564 = vmatprep.subr.bf16.mxu0 0
      %1565 = vmatpush1.bf16.msra.mxu0 0
      %1566 = vmatprep.subr.bf16.mxu0 0
      %1567 = vmatpush1.bf16.msra.mxu0 0
      %1568 = vmatprep.subr.bf16.mxu0 0
      %1569 = vmatpush1.bf16.msra.mxu0 0
      %1570 = vmatprep.subr.bf16.mxu0 0
      %1571 = vmatpush1.bf16.msra.mxu0 0
      %1572 = vmatprep.subr.bf16.mxu0 0
      %1573 = vmatpush1.bf16.msra.mxu0 0
      %1574 = vmatprep.subr.bf16.mxu0 0
      %1575 = vmatpush1.bf16.msra.mxu0 0
      %1576 = vmatprep.subr.bf16.mxu0 0
      %1577 = vmatpush1.bf16.msra.mxu0 0
      %1578 = vmatprep.mubr.bf16.mxu0 0
      %1579 = vmatmul.mubr.bf16.gmra.mrb[0].mxu0 %v1541
      %v1580 = vpop.f32.mrb[0].mxu0
      %v1581 = vadd.f32 0.0, %v1580
      %v1582 = vpop.f32.mrb[0].mxu0
      %v1583 = vpop.f32.mrb[0].mxu0
      %v1584 = vpop.f32.mrb[0].mxu0
      %1585 = vdwg.mxu0
      %v1586 = vadd.f32 %v1286, %v1581
      %v1587 = vmax.f32 %v1586, 0.0
      %v1588 = vld [vmem:[%s3] sm:$0x1]
      %v1589 = vld [vmem:[%s4] sm:$0x1]
      %v1590 = vsel %vm391, %v1587, 0.0
      %1591 = vadd.xlane.f32.xlu0 %v1590
      %v1592 = vpop.xlane.xlu0 %1591
      %v1593 = vrcp.pop 32.0
      %v1594 = vmul.f32 %v1592, %v1593
      %v1595 = vsub.f32 %v1587, %v1594
      %v1596 = vmul.f32 %v1595, %v1595
      %v1597 = vsel %vm391, %v1596, 0.0
      %1598 = vadd.xlane.f32.xlu0 %v1597
      %v1599 = vpop.xlane.xlu0 %1598
      %v1600 = vmul.f32 %v1599, %v1593
      %v1601 = vadd.f32 %v1600, 1e-05
      %v1602 = vrsqrt.pop %v1601
      %v1603 = vmul.f32 %v1595, %v1602
      %v1605 = vlaneseq
      %v1606 = vshrl.u32 %v1605, 7
      %v1607 = vsub.s32 0, %v1606
      %v1608 = vrot.slane %v1588, %v1607
      %v1610 = vmul.f32 %v1603, %v1608
      %v1612 = vlaneseq
      %v1613 = vshrl.u32 %v1612, 7
      %v1614 = vsub.s32 0, %v1613
      %v1615 = vrot.slane %v1589, %v1614
      %v1617 = vadd.f32 %v1610, %v1615
      %v1618 = vadd.f32 %v383, %v1617
      %1619 = vst.msk [vmem:[#allocation2] sm:$0xff] %vm391, 0.0
      %vm1620 = vcmask 254976
      %1621 = vst.msk [vmem:[#allocation2 + $0x8] sm:$0x3] %vm1620, 0.0
      %1622 = vst.msk [vmem:[#allocation2 + $0x1] sm:$0xff] %vm391, %v1618
      %v1623 = vld [vmem:[#allocation2] sm:$0xff]
      %v1624 = vld [vmem:[#allocation2 + $0x8] sm:$0x3]
      %v1625 = vld [vmem:[%s5] sm:$0xff]
      %v1626 = vld [vmem:[%s5 + $0x8] sm:$0xff]
      %v1627 = vld [vmem:[%s5 + $0x10] sm:$0xff]
      %v1628 = vld [vmem:[%s5 + $0x18] sm:$0xff]
      %v1629 = vpack.c.bf16 %v1623, %v1623
      %v1630 = vpack.c.bf16 %v1626, %v1625
      %v1631 = vpack.c.bf16 %v1628, %v1627
      %s1632 = scalar_lea.vmem %s5, 32
      %v1633 = vld [vmem:[%s1632] sm:$0xff]
      %v1634 = vld [vmem:[%s1632 + $0x8] sm:$0xff]
      %v1635 = vld [vmem:[%s1632 + $0x10] sm:$0xff]
      %v1636 = vld [vmem:[%s1632 + $0x18] sm:$0xff]
      %v1637 = vpack.c.bf16 %v1624, %v1623
      %v1638 = vpack.c.bf16 %v1634, %v1633
      %v1639 = vpack.c.bf16 %v1636, %v1635
      %v1641 = vshrl.u32 %v1637, 16
      %v1643 = vshll.u32 %v1637, 16
      %v1645 = vrot.slane %v1643, 1
      %v1646 = vor.u32 %v1641, %v1645
      %v1648 = vsel %vm391, %v1646, 0
      %1650 = vmatprep.subr.bf16.mxu0 0
      %1651 = vmatpush1.bf16.msra.mxu0 %v1638
      %1652 = vmatprep.subr.bf16.mxu0 0
      %1653 = vmatpush1.bf16.msra.mxu0 %v1639
      %1654 = vmatprep.subr.bf16.mxu0 0
      %1655 = vmatpush1.bf16.msra.mxu0 0
      %1656 = vmatprep.subr.bf16.mxu0 0
      %1657 = vmatpush1.bf16.msra.mxu0 0
      %1658 = vmatprep.subr.bf16.mxu0 0
      %1659 = vmatpush1.bf16.msra.mxu0 0
      %1660 = vmatprep.subr.bf16.mxu0 0
      %1661 = vmatpush1.bf16.msra.mxu0 0
      %1662 = vmatprep.subr.bf16.mxu0 0
      %1663 = vmatpush1.bf16.msra.mxu0 0
      %1664 = vmatprep.subr.bf16.mxu0 0
      %1665 = vmatpush1.bf16.msra.mxu0 0
      %1666 = vmatprep.subr.bf16.mxu0 0
      %1667 = vmatpush1.bf16.msra.mxu0 0
      %1668 = vmatprep.subr.bf16.mxu0 0
      %1669 = vmatpush1.bf16.msra.mxu0 0
      %1670 = vmatprep.subr.bf16.mxu0 0
      %1671 = vmatpush1.bf16.msra.mxu0 0
      %1672 = vmatprep.subr.bf16.mxu0 0
      %1673 = vmatpush1.bf16.msra.mxu0 0
      %1674 = vmatprep.subr.bf16.mxu0 0
      %1675 = vmatpush1.bf16.msra.mxu0 0
      %1676 = vmatprep.subr.bf16.mxu0 0
      %1677 = vmatpush1.bf16.msra.mxu0 0
      %1678 = vmatprep.subr.bf16.mxu0 0
      %1679 = vmatpush1.bf16.msra.mxu0 0
      %1680 = vmatprep.subr.bf16.mxu0 0
      %1681 = vmatpush1.bf16.msra.mxu0 0
      %1682 = vmatprep.mubr.bf16.mxu0 0
      %1683 = vmatmul.mubr.bf16.gmra.mrb[0].mxu0 %v1648
      %v1684 = vpop.f32.mrb[0].mxu0
      %v1685 = vadd.f32 0.0, %v1684
      %v1686 = vpop.f32.mrb[0].mxu0
      %v1687 = vpop.f32.mrb[0].mxu0
      %v1688 = vpop.f32.mrb[0].mxu0
      %1689 = vdwg.mxu0
      %v1691 = vsel %vm391, %v1629, 0
      %1693 = vmatprep.subr.bf16.mxu0 0
      %1694 = vmatpush1.bf16.msra.mxu0 %v1630
      %1695 = vmatprep.subr.bf16.mxu0 0
      %1696 = vmatpush1.bf16.msra.mxu0 %v1631
      %1697 = vmatprep.subr.bf16.mxu0 0
      %1698 = vmatpush1.bf16.msra.mxu0 0
      %1699 = vmatprep.subr.bf16.mxu0 0
      %1700 = vmatpush1.bf16.msra.mxu0 0
      %1701 = vmatprep.subr.bf16.mxu0 0
      %1702 = vmatpush1.bf16.msra.mxu0 0
      %1703 = vmatprep.subr.bf16.mxu0 0
      %1704 = vmatpush1.bf16.msra.mxu0 0
      %1705 = vmatprep.subr.bf16.mxu0 0
      %1706 = vmatpush1.bf16.msra.mxu0 0
      %1707 = vmatprep.subr.bf16.mxu0 0
      %1708 = vmatpush1.bf16.msra.mxu0 0
      %1709 = vmatprep.subr.bf16.mxu0 0
      %1710 = vmatpush1.bf16.msra.mxu0 0
      %1711 = vmatprep.subr.bf16.mxu0 0
      %1712 = vmatpush1.bf16.msra.mxu0 0
      %1713 = vmatprep.subr.bf16.mxu0 0
      %1714 = vmatpush1.bf16.msra.mxu0 0
      %1715 = vmatprep.subr.bf16.mxu0 0
      %1716 = vmatpush1.bf16.msra.mxu0 0
      %1717 = vmatprep.subr.bf16.mxu0 0
      %1718 = vmatpush1.bf16.msra.mxu0 0
      %1719 = vmatprep.subr.bf16.mxu0 0
      %1720 = vmatpush1.bf16.msra.mxu0 0
      %1721 = vmatprep.subr.bf16.mxu0 0
      %1722 = vmatpush1.bf16.msra.mxu0 0
      %1723 = vmatprep.subr.bf16.mxu0 0
      %1724 = vmatpush1.bf16.msra.mxu0 0
      %1725 = vmatprep.mubr.bf16.mxu0 0
      %1726 = vmatmul.mubr.bf16.gmra.mrb[0].mxu0 %v1691
      %v1727 = vpop.f32.mrb[0].mxu0
      %v1728 = vadd.f32 %v1685, %v1727
      %v1729 = vpop.f32.mrb[0].mxu0
      %v1730 = vpop.f32.mrb[0].mxu0
      %v1731 = vpop.f32.mrb[0].mxu0
      %1732 = vdwg.mxu0
      %s1733 = scalar_lea.vmem %s5, 64
      %v1734 = vld [vmem:[%s1733] sm:$0xff]
      %v1735 = vld [vmem:[%s1733 + $0x8] sm:$0xff]
      %v1736 = vld [vmem:[%s1733 + $0x10] sm:$0xff]
      %v1737 = vld [vmem:[%s1733 + $0x18] sm:$0xff]
      %v1738 = vpack.c.bf16 %v1735, %v1734
      %v1739 = vpack.c.bf16 %v1737, %v1736
      %v1741 = vrot.slane %v1637, 1
      %v1743 = vsel %vm391, %v1741, 0
      %1745 = vmatprep.subr.bf16.mxu0 0
      %1746 = vmatpush1.bf16.msra.mxu0 %v1738
      %1747 = vmatprep.subr.bf16.mxu0 0
      %1748 = vmatpush1.bf16.msra.mxu0 %v1739
      %1749 = vmatprep.subr.bf16.mxu0 0
      %1750 = vmatpush1.bf16.msra.mxu0 0
      %1751 = vmatprep.subr.bf16.mxu0 0
      %1752 = vmatpush1.bf16.msra.mxu0 0
      %1753 = vmatprep.subr.bf16.mxu0 0
      %1754 = vmatpush1.bf16.msra.mxu0 0
      %1755 = vmatprep.subr.bf16.mxu0 0
      %1756 = vmatpush1.bf16.msra.mxu0 0
      %1757 = vmatprep.subr.bf16.mxu0 0
      %1758 = vmatpush1.bf16.msra.mxu0 0
      %1759 = vmatprep.subr.bf16.mxu0 0
      %1760 = vmatpush1.bf16.msra.mxu0 0
      %1761 = vmatprep.subr.bf16.mxu0 0
      %1762 = vmatpush1.bf16.msra.mxu0 0
      %1763 = vmatprep.subr.bf16.mxu0 0
      %1764 = vmatpush1.bf16.msra.mxu0 0
      %1765 = vmatprep.subr.bf16.mxu0 0
      %1766 = vmatpush1.bf16.msra.mxu0 0
      %1767 = vmatprep.subr.bf16.mxu0 0
      %1768 = vmatpush1.bf16.msra.mxu0 0
      %1769 = vmatprep.subr.bf16.mxu0 0
      %1770 = vmatpush1.bf16.msra.mxu0 0
      %1771 = vmatprep.subr.bf16.mxu0 0
      %1772 = vmatpush1.bf16.msra.mxu0 0
      %1773 = vmatprep.subr.bf16.mxu0 0
      %1774 = vmatpush1.bf16.msra.mxu0 0
      %1775 = vmatprep.subr.bf16.mxu0 0
      %1776 = vmatpush1.bf16.msra.mxu0 0
      %1777 = vmatprep.mubr.bf16.mxu0 0
      %1778 = vmatmul.mubr.bf16.gmra.mrb[0].mxu0 %v1743
      %v1779 = vpop.f32.mrb[0].mxu0
      %v1780 = vadd.f32 0.0, %v1779
      %v1781 = vpop.f32.mrb[0].mxu0
      %v1782 = vpop.f32.mrb[0].mxu0
      %v1783 = vpop.f32.mrb[0].mxu0
      %1784 = vdwg.mxu0
      %v1785 = vadd.f32 %v1728, %v1780
      %v1786 = vld [vmem:[%s6] sm:$0x1]
      %v1788 = vlaneseq
      %v1789 = vshrl.u32 %v1788, 7
      %v1790 = vsub.s32 0, %v1789
      %v1791 = vrot.slane %v1786, %v1790
      %v1793 = vadd.f32 %v1785, %v1791
      %v1794 = vmax.f32 %v1793, 0.0
      %vm1795 = vcmask 392192
      %1796 = vst.msk [vmem:[#allocation3] sm:$0xff] %vm1795, 0.0
      %vm1797 = vcmask 386048
      %1798 = vst.msk [vmem:[#allocation3 + $0x8] sm:$0x3] %vm1797, 0.0
      %1799 = vst.msk [vmem:[#allocation3 + $0x1] sm:$0xff] %vm1795, %v1794
      %v1800 = vld [vmem:[#allocation3] sm:$0xff]
      %v1801 = vld [vmem:[#allocation3 + $0x8] sm:$0x3]
      %v1802 = vld [vmem:[%s7] sm:$0xff]
      %v1803 = vld [vmem:[%s7 + $0x8] sm:$0xff]
      %v1804 = vld [vmem:[%s7 + $0x10] sm:$0xff]
      %v1805 = vld [vmem:[%s7 + $0x18] sm:$0xff]
      %v1806 = vld [vmem:[%s7 + $0x20] sm:$0xff]
      %v1807 = vld [vmem:[%s7 + $0x28] sm:$0xff]
      %v1808 = vpack.c.bf16 %v1800, %v1800
      %v1809 = vpack.c.bf16 %v1803, %v1802
      %v1810 = vpack.c.bf16 %v1805, %v1804
      %v1811 = vpack.c.bf16 %v1807, %v1806
      %s1812 = scalar_lea.vmem %s7, 48
      %v1813 = vld [vmem:[%s1812] sm:$0xff]
      %v1814 = vld [vmem:[%s1812 + $0x8] sm:$0xff]
      %v1815 = vld [vmem:[%s1812 + $0x10] sm:$0xff]
      %v1816 = vld [vmem:[%s1812 + $0x18] sm:$0xff]
      %v1817 = vld [vmem:[%s1812 + $0x20] sm:$0xff]
      %v1818 = vld [vmem:[%s1812 + $0x28] sm:$0xff]
      %v1819 = vpack.c.bf16 %v1801, %v1800
      %v1820 = vpack.c.bf16 %v1814, %v1813
      %v1821 = vpack.c.bf16 %v1816, %v1815
      %v1822 = vpack.c.bf16 %v1818, %v1817
      %v1824 = vshrl.u32 %v1819, 16
      %v1826 = vshll.u32 %v1819, 16
      %v1828 = vrot.slane %v1826, 1
      %v1829 = vor.u32 %v1824, %v1828
      %v1831 = vsel %vm1795, %v1829, 0
      %1833 = vmatprep.subr.bf16.mxu0 0
      %1834 = vmatpush1.bf16.msra.mxu0 %v1820
      %1835 = vmatprep.subr.bf16.mxu0 0
      %1836 = vmatpush1.bf16.msra.mxu0 %v1821
      %1837 = vmatprep.subr.bf16.mxu0 0
      %1838 = vmatpush1.bf16.msra.mxu0 %v1822
      %1839 = vmatprep.subr.bf16.mxu0 0
      %1840 = vmatpush1.bf16.msra.mxu0 0
      %1841 = vmatprep.subr.bf16.mxu0 0
      %1842 = vmatpush1.bf16.msra.mxu0 0
      %1843 = vmatprep.subr.bf16.mxu0 0
      %1844 = vmatpush1.bf16.msra.mxu0 0
      %1845 = vmatprep.subr.bf16.mxu0 0
      %1846 = vmatpush1.bf16.msra.mxu0 0
      %1847 = vmatprep.subr.bf16.mxu0 0
      %1848 = vmatpush1.bf16.msra.mxu0 0
      %1849 = vmatprep.subr.bf16.mxu0 0
      %1850 = vmatpush1.bf16.msra.mxu0 0
      %1851 = vmatprep.subr.bf16.mxu0 0
      %1852 = vmatpush1.bf16.msra.mxu0 0
      %1853 = vmatprep.subr.bf16.mxu0 0
      %1854 = vmatpush1.bf16.msra.mxu0 0
      %1855 = vmatprep.subr.bf16.mxu0 0
      %1856 = vmatpush1.bf16.msra.mxu0 0
      %1857 = vmatprep.subr.bf16.mxu0 0
      %1858 = vmatpush1.bf16.msra.mxu0 0
      %1859 = vmatprep.subr.bf16.mxu0 0
      %1860 = vmatpush1.bf16.msra.mxu0 0
      %1861 = vmatprep.subr.bf16.mxu0 0
      %1862 = vmatpush1.bf16.msra.mxu0 0
      %1863 = vmatprep.subr.bf16.mxu0 0
      %1864 = vmatpush1.bf16.msra.mxu0 0
      %1865 = vmatprep.mubr.bf16.mxu0 0
      %1866 = vmatmul.mubr.bf16.gmra.mrb[0].mxu0 %v1831
      %v1867 = vpop.f32.mrb[0].mxu0
      %v1868 = vadd.f32 0.0, %v1867
      %v1869 = vpop.f32.mrb[0].mxu0
      %v1870 = vpop.f32.mrb[0].mxu0
      %v1871 = vpop.f32.mrb[0].mxu0
      %1872 = vdwg.mxu0
      %v1874 = vsel %vm1795, %v1808, 0
      %1876 = vmatprep.subr.bf16.mxu0 0
      %1877 = vmatpush1.bf16.msra.mxu0 %v1809
      %1878 = vmatprep.subr.bf16.mxu0 0
      %1879 = vmatpush1.bf16.msra.mxu0 %v1810
      %1880 = vmatprep.subr.bf16.mxu0 0
      %1881 = vmatpush1.bf16.msra.mxu0 %v1811
      %1882 = vmatprep.subr.bf16.mxu0 0
      %1883 = vmatpush1.bf16.msra.mxu0 0
      %1884 = vmatprep.subr.bf16.mxu0 0
      %1885 = vmatpush1.bf16.msra.mxu0 0
      %1886 = vmatprep.subr.bf16.mxu0 0
      %1887 = vmatpush1.bf16.msra.mxu0 0
      %1888 = vmatprep.subr.bf16.mxu0 0
      %1889 = vmatpush1.bf16.msra.mxu0 0
      %1890 = vmatprep.subr.bf16.mxu0 0
      %1891 = vmatpush1.bf16.msra.mxu0 0
      %1892 = vmatprep.subr.bf16.mxu0 0
      %1893 = vmatpush1.bf16.msra.mxu0 0
      %1894 = vmatprep.subr.bf16.mxu0 0
      %1895 = vmatpush1.bf16.msra.mxu0 0
      %1896 = vmatprep.subr.bf16.mxu0 0
      %1897 = vmatpush1.bf16.msra.mxu0 0
      %1898 = vmatprep.subr.bf16.mxu0 0
      %1899 = vmatpush1.bf16.msra.mxu0 0
      %1900 = vmatprep.subr.bf16.mxu0 0
      %1901 = vmatpush1.bf16.msra.mxu0 0
      %1902 = vmatprep.subr.bf16.mxu0 0
      %1903 = vmatpush1.bf16.msra.mxu0 0
      %1904 = vmatprep.subr.bf16.mxu0 0
      %1905 = vmatpush1.bf16.msra.mxu0 0
      %1906 = vmatprep.subr.bf16.mxu0 0
      %1907 = vmatpush1.bf16.msra.mxu0 0
      %1908 = vmatprep.mubr.bf16.mxu0 0
      %1909 = vmatmul.mubr.bf16.gmra.mrb[0].mxu0 %v1874
      %v1910 = vpop.f32.mrb[0].mxu0
      %v1911 = vadd.f32 %v1868, %v1910
      %v1912 = vpop.f32.mrb[0].mxu0
      %v1913 = vpop.f32.mrb[0].mxu0
      %v1914 = vpop.f32.mrb[0].mxu0
      %1915 = vdwg.mxu0
      %s1916 = scalar_lea.vmem %s7, 96
      %v1917 = vld [vmem:[%s1916] sm:$0xff]
      %v1918 = vld [vmem:[%s1916 + $0x8] sm:$0xff]
      %v1919 = vld [vmem:[%s1916 + $0x10] sm:$0xff]
      %v1920 = vld [vmem:[%s1916 + $0x18] sm:$0xff]
      %v1921 = vld [vmem:[%s1916 + $0x20] sm:$0xff]
      %v1922 = vld [vmem:[%s1916 + $0x28] sm:$0xff]
      %v1923 = vpack.c.bf16 %v1918, %v1917
      %v1924 = vpack.c.bf16 %v1920, %v1919
      %v1925 = vpack.c.bf16 %v1922, %v1921
      %v1927 = vrot.slane %v1819, 1
      %v1929 = vsel %vm1795, %v1927, 0
      %1931 = vmatprep.subr.bf16.mxu0 0
      %1932 = vmatpush1.bf16.msra.mxu0 %v1923
      %1933 = vmatprep.subr.bf16.mxu0 0
      %1934 = vmatpush1.bf16.msra.mxu0 %v1924
      %1935 = vmatprep.subr.bf16.mxu0 0
      %1936 = vmatpush1.bf16.msra.mxu0 %v1925
      %1937 = vmatprep.subr.bf16.mxu0 0
      %1938 = vmatpush1.bf16.msra.mxu0 0
      %1939 = vmatprep.subr.bf16.mxu0 0
      %1940 = vmatpush1.bf16.msra.mxu0 0
      %1941 = vmatprep.subr.bf16.mxu0 0
      %1942 = vmatpush1.bf16.msra.mxu0 0
      %1943 = vmatprep.subr.bf16.mxu0 0
      %1944 = vmatpush1.bf16.msra.mxu0 0
      %1945 = vmatprep.subr.bf16.mxu0 0
      %1946 = vmatpush1.bf16.msra.mxu0 0
      %1947 = vmatprep.subr.bf16.mxu0 0
      %1948 = vmatpush1.bf16.msra.mxu0 0
      %1949 = vmatprep.subr.bf16.mxu0 0
      %1950 = vmatpush1.bf16.msra.mxu0 0
      %1951 = vmatprep.subr.bf16.mxu0 0
      %1952 = vmatpush1.bf16.msra.mxu0 0
      %1953 = vmatprep.subr.bf16.mxu0 0
      %1954 = vmatpush1.bf16.msra.mxu0 0
      %1955 = vmatprep.subr.bf16.mxu0 0
      %1956 = vmatpush1.bf16.msra.mxu0 0
      %1957 = vmatprep.subr.bf16.mxu0 0
      %1958 = vmatpush1.bf16.msra.mxu0 0
      %1959 = vmatprep.subr.bf16.mxu0 0
      %1960 = vmatpush1.bf16.msra.mxu0 0
      %1961 = vmatprep.subr.bf16.mxu0 0
      %1962 = vmatpush1.bf16.msra.mxu0 0
      %1963 = vmatprep.mubr.bf16.mxu0 0
      %1964 = vmatmul.mubr.bf16.gmra.mrb[0].mxu0 %v1929
      %v1965 = vpop.f32.mrb[0].mxu0
      %v1966 = vadd.f32 0.0, %v1965
      %v1967 = vpop.f32.mrb[0].mxu0
      %v1968 = vpop.f32.mrb[0].mxu0
      %v1969 = vpop.f32.mrb[0].mxu0
      %1970 = vdwg.mxu0
      %v1971 = vadd.f32 %v1911, %v1966
      %v1972 = vld [vmem:[%s8] sm:$0x1]
      %v1974 = vlaneseq
      %v1975 = vshrl.u32 %v1974, 7
      %v1976 = vsub.s32 0, %v1975
      %v1977 = vrot.slane %v1972, %v1976
      %v1979 = vadd.f32 %v1971, %v1977
      %v1980 = vmax.f32 %v1979, 0.0
      %v1981 = vld [vmem:[%s9] sm:$0x1]
      %v1982 = vld [vmem:[%s10] sm:$0x1]
      %v1983 = vsel %vm391, %v1980, 0.0
      %1984 = vadd.xlane.f32.xlu0 %v1983
      %v1985 = vpop.xlane.xlu0 %1984
      %v1986 = vmul.f32 %v1985, %v1593
      %v1987 = vsub.f32 %v1980, %v1986
      %v1988 = vmul.f32 %v1987, %v1987
      %v1989 = vsel %vm391, %v1988, 0.0
      %1990 = vadd.xlane.f32.xlu0 %v1989
      %v1991 = vpop.xlane.xlu0 %1990
      %v1992 = vmul.f32 %v1991, %v1593
      %v1993 = vadd.f32 %v1992, 1e-05
      %v1994 = vrsqrt.pop %v1993
      %v1995 = vmul.f32 %v1987, %v1994
      %v1997 = vlaneseq
      %v1998 = vshrl.u32 %v1997, 7
      %v1999 = vsub.s32 0, %v1998
      %v2000 = vrot.slane %v1981, %v1999
      %v2002 = vmul.f32 %v1995, %v2000
      %v2004 = vlaneseq
      %v2005 = vshrl.u32 %v2004, 7
      %v2006 = vsub.s32 0, %v2005
      %v2007 = vrot.slane %v1982, %v2006
      %v2009 = vadd.f32 %v2002, %v2007
      %v2010 = vadd.f32 %v1618, %v2009
      %2011 = vst.msk [vmem:[%s381] sm:$0xff] %vm391, %v2010
      %p2012 = scmp.lt.s32.totalorder %s22, 1
      %s2013 = scalar_select %p2012, %s22, 1
      %s2014 = smul.addr %s2013, 8
      %s2015 = scalar_lea.vmem %s11, %s2014
      // Predicated region
      $region65: #{_encoder_half.3} parent=63 // pred_check
        %p2016 = pneg %p276
      $region66: #{_encoder_half.3} parent=63 // pred_check_branch
        %2018 = sbr.rel (%p2016) target = $region68
      $region67: #{_encoder_half.3} parent=63 // pred_region
        _
      $region68: #{_encoder_half.3} parent=63 // pred_fallthru
        _
    $region64: #{_encoder_half.3} parent=5 // pred_fallthru
      _
    %p2019 = scmp.le.s32.totalorder 2, %s17
    // Predicated region
    $region69: #{_encoder_half.3} parent=5 // pred_check
      %p2020 = pneg %p2019
    $region70: #{_encoder_half.3} parent=5 // pred_check_branch
      %2022 = sbr.rel (%p2020) target = $region72
    $region71: #{_encoder_half.3} parent=5 // pred_region
      %s2023 = ssub.s32 %s17, 2
      // Predicated region
      $region73: #{_encoder_half.3} parent=71 // pred_check
        %p2024 = pneg %p282
      $region74: #{_encoder_half.3} parent=71 // pred_check_branch
        %2026 = sbr.rel (%p2024) target = $region76
      $region75: #{_encoder_half.3} parent=71 // pred_region
        %p2027 = scmp.lt.s32.totalorder %s23, 1
        %s2028 = scalar_select %p2027, %s23, 1
        %s2029 = smul.addr %s2028, 8
        %s2030 = scalar_lea.vmem %s11, %s2029
      $region76: #{_encoder_half.3} parent=71 // pred_fallthru
        _
    $region72: #{_encoder_half.3} parent=5 // pred_fallthru
      _
  $region6: #{_encoder_half.3} parent=0 // loop_footer
    %s21 = sadd.s32 1, %s17
  $region7: #{_encoder_half.3} parent=0 // loop_footer_branch
    %16 = sbr.rel target = $region3
  $region8: #{_encoder_half.3} parent=0 // loop_exit
    _

</llo_original>
